<compile_context>
chip_gen: v6e
topology: v6e:2x2x1
jax: 0.10.0
libtpu: 0.0.40
codegen_flags: <defaults>
</compile_context>

<pallas_src>
import jax
import jax.numpy as jnp
from jax.experimental import pallas as pl
from jax.experimental.pallas import tpu as pltpu


def _classifier_kernel(x_ref, wrows_ref, p_ref, b_ref, o_ref):
    # x_ref:     (R, H*W)  f32, R = tn*C; row r = sample r//C, channel r%C
    # wrows_ref: (R, OUT)  f32, row r = w[:, r%C] / (H*W)   (pool scale folded in)
    # p_ref:     (tn, R)   f32, p[s, r] = 1.0 iff r//C == s (group-sum selector)
    # b_ref:     (1, OUT)  f32
    # o_ref:     (tn, OUT) f32
    rowsum = jnp.sum(x_ref[...], axis=-1, keepdims=True)      # (R, 1) per-(sample,channel) sum
    contrib = rowsum * wrows_ref[...]                          # (R, OUT) VPU broadcast multiply
    o_ref[...] = (
        jnp.dot(p_ref[...], contrib, preferred_element_type=jnp.float32)
        + b_ref[...]
    )


def super_simple_classifier(x_nchw, w, b, *, tn=16):
    """x_nchw: (N, 3, 224, 224) f32; w: (2, 3) f32; b: (2,) f32 -> (N, 2) f32."""
    N, C, H, W = x_nchw.shape
    assert C == 3 and H == 224 and W == 224, "module semantics require 3x224x224 input"
    out_dim = w.shape[0]
    HW = H * W
    assert (tn * C) % 8 == 0, "tn*C must be a multiple of 8 (sublane tiling)"

    # Pad batch to a multiple of tn (zero samples -> bias-only rows, sliced off below).
    n_pad = (-N) % tn
    if n_pad:
        x_nchw = jnp.pad(x_nchw, ((0, n_pad), (0, 0), (0, 0), (0, 0)))
    Np = N + n_pad

    R = tn * C
    x_flat = x_nchw.reshape(Np * C, HW)  # contiguous reshape, no data movement

    # Fold the average-pool 1/(H*W) into the weights; one (scaled) weight row per block row.
    w_rows = jnp.tile(w.T.astype(jnp.float32) / float(HW), (tn, 1))               # (R, OUT)
    # Group-sum selector matrix: sums the C consecutive channel rows of each sample.
    p_mat = (jnp.arange(R, dtype=jnp.int32) // C
             == jnp.arange(tn, dtype=jnp.int32)[:, None]).astype(jnp.float32)     # (tn, R)
    b2 = b.reshape(1, out_dim).astype(jnp.float32)

    out = pl.pallas_call(
        _classifier_kernel,
        out_shape=jax.ShapeDtypeStruct((Np, out_dim), jnp.float32),
        grid_spec=pltpu.PrefetchScalarGridSpec(
            num_scalar_prefetch=0,
            grid=(Np // tn,),
            in_specs=[
                pl.BlockSpec((R, HW), lambda i: (i, 0)),       # x block (pipelined over batch)
                pl.BlockSpec((R, out_dim), lambda i: (0, 0)),  # tiled scaled weights (constant)
                pl.BlockSpec((tn, R), lambda i: (0, 0)),       # group-sum selector (constant)
                pl.BlockSpec((1, out_dim), lambda i: (0, 0)),  # bias (constant)
            ],
            out_specs=pl.BlockSpec((tn, out_dim), lambda i: (i, 0)),
        ),
        compiler_params=pltpu.CompilerParams(
            dimension_semantics=("parallel",),        # megacore split over batch on v7x
            vmem_limit_bytes=32 * 1024 * 1024,        # tn=16 -> ~18.5 MiB double-buffered
        ),
    )(x_flat, w_rows, p_mat, b2)
    return out[:N]


if __name__ == "__main__":
    key = jax.random.PRNGKey(0)
    kx, kw, kb = jax.random.split(key, 3)

    # AvgPool2d(224) + view(-1, 3) implies (N, 3, 224, 224) input.
    N, C, H, W = 2, 3, 224, 224
    x = jax.random.normal(kx, (N, C, H, W), dtype=jnp.float32)

    # Deterministic Linear(3, 2) params (PyTorch-style uniform(-1/sqrt(in), 1/sqrt(in))).
    bound = 1.0 / jnp.sqrt(3.0)
    w = jax.random.uniform(kw, (2, 3), minval=-bound, maxval=bound, dtype=jnp.float32)
    b = jax.random.uniform(kb, (2,), minval=-bound, maxval=bound, dtype=jnp.float32)

    out = jax.block_until_ready(super_simple_classifier(x, w, b))

    # Pure-JAX reference for correctness.
    ref = jnp.mean(x, axis=(2, 3)) @ w.T + b
    assert out.shape == (N, 2)
    assert jnp.allclose(out, ref, atol=1e-4, rtol=1e-4), (out, ref)

    print("KERNEL_OK")
</pallas_src>

<mosaic_0001>
module attributes {stable_mosaic.version = 11 : i64} {
  func.func @_classifier_kernel(%arg0: i32, %arg1: memref<48x50176xf32, #tpu.memory_space<vmem>>, %arg2: memref<48x2xf32, #tpu.memory_space<vmem>>, %arg3: memref<16x48xf32, #tpu.memory_space<vmem>>, %arg4: memref<1x2xf32, #tpu.memory_space<vmem>>, %arg5: memref<16x2xf32, #tpu.memory_space<vmem>>) attributes {dimension_semantics = [#tpu.dimension_semantics<parallel>], iteration_bounds = array<i64: 1>, scalar_prefetch = 0 : i64, scratch_operands = 0 : i64, tpu.core_type = #tpu.core_type<tc>, window_params = [{transform_indices = @transform_0, window_bounds = array<i64: 48, 50176>}, {pipeline_mode = #tpu.pipeline_mode<synchronous>, transform_indices = @transform_1, window_bounds = array<i64: 48, 2>}, {pipeline_mode = #tpu.pipeline_mode<synchronous>, transform_indices = @transform_2, window_bounds = array<i64: 16, 48>}, {pipeline_mode = #tpu.pipeline_mode<synchronous>, transform_indices = @transform_3, window_bounds = array<i64: 1, 2>}, {transform_indices = @transform_4, window_bounds = array<i64: 16, 2>}]} {
    %c0 = arith.constant 0 : index
    %c0_0 = arith.constant 0 : index
    %0 = vector.load %arg1[%c0, %c0_0] : memref<48x50176xf32, #tpu.memory_space<vmem>>, vector<48x50176xf32>
    %cst = arith.constant dense<0.000000e+00> : vector<48xf32>
    %1 = vector.multi_reduction <add>, %0, %cst [1] : vector<48x50176xf32> to vector<48xf32>
    %2 = vector.shape_cast %1 : vector<48xf32> to vector<48x1xf32>
    %c0_1 = arith.constant 0 : index
    %c0_2 = arith.constant 0 : index
    %3 = vector.load %arg2[%c0_1, %c0_2] : memref<48x2xf32, #tpu.memory_space<vmem>>, vector<48x2xf32>
    %4 = vector.broadcast %2 : vector<48x1xf32> to vector<48x2xf32>
    %5 = arith.mulf %4, %3 : vector<48x2xf32>
    %c0_3 = arith.constant 0 : index
    %c0_4 = arith.constant 0 : index
    %6 = vector.load %arg3[%c0_3, %c0_4] : memref<16x48xf32, #tpu.memory_space<vmem>>, vector<16x48xf32>
    %cst_5 = arith.constant dense<0.000000e+00> : vector<16x2xf32>
    %7 = tpu.matmul %6, %5, %cst_5 {dimension_numbers = #tpu.dot_dimension_numbers<[1], [0], [0], [1], [0, 0, 1, 1], [], []>} : vector<16x48xf32>, vector<48x2xf32>, vector<16x2xf32> -> vector<16x2xf32>
    %c0_6 = arith.constant 0 : index
    %c0_7 = arith.constant 0 : index
    %8 = vector.load %arg4[%c0_6, %c0_7] : memref<1x2xf32, #tpu.memory_space<vmem>>, vector<1x2xf32>
    %9 = vector.broadcast %8 : vector<1x2xf32> to vector<16x2xf32>
    %10 = arith.addf %7, %9 : vector<16x2xf32>
    %c0_8 = arith.constant 0 : index
    %c0_9 = arith.constant 0 : index
    %11 = vector.load %arg5[%c0_8, %c0_9] : memref<16x2xf32, #tpu.memory_space<vmem>>, vector<16x2xf32>
    tpu.vector_store %arg5[%c0_8, %c0_9], %10 {strides = array<i32>} : memref<16x2xf32, #tpu.memory_space<vmem>>, vector<16x2xf32>,
    return
  }
  func.func @transform_0(%arg0: i32) -> (i32, i32) {
    %c0_i32 = arith.constant 0 : i32
    %c0_i32_0 = arith.constant 0 : i32
    return %arg0, %c0_i32 : i32, i32
  }
  func.func @transform_1(%arg0: i32) -> (i32, i32) {
    %c0_i32 = arith.constant 0 : i32
    %c0_i32_0 = arith.constant 0 : i32
    %c0_i32_1 = arith.constant 0 : i32
    return %c0_i32, %c0_i32_0 : i32, i32
  }
  func.func @transform_2(%arg0: i32) -> (i32, i32) {
    %c0_i32 = arith.constant 0 : i32
    %c0_i32_0 = arith.constant 0 : i32
    %c0_i32_1 = arith.constant 0 : i32
    return %c0_i32, %c0_i32_0 : i32, i32
  }
  func.func @transform_3(%arg0: i32) -> (i32, i32) {
    %c0_i32 = arith.constant 0 : i32
    %c0_i32_0 = arith.constant 0 : i32
    %c0_i32_1 = arith.constant 0 : i32
    return %c0_i32, %c0_i32_0 : i32, i32
  }
  func.func @transform_4(%arg0: i32) -> (i32, i32) {
    %c0_i32 = arith.constant 0 : i32
    %c0_i32_0 = arith.constant 0 : i32
    return %arg0, %c0_i32 : i32, i32
  }
}

</mosaic_0001>

<llo_original>
// kernel: tpu_custom_call.1
$region0: #{tpu_custom_call.1}
  #allocation0 [shape = 'u32[]', space=smem, size = 0x4, offset = 0x4, fixed_abs, tag = 'smem constant byte address 0x4 - core index']
  #allocation1 [shape = 'u32[144,128]{1,0:T(1,128)}', space=vmem, size = 0x12000, scoped, tag = 'internal scratch']
  %s0 = inlined_call_operand.hbm [shape: f32[48,50176], index: 0, kind: input, shape index: {}]
  %s1 = inlined_call_operand.vmem [shape: f32[48,2], index: 1, kind: input, shape index: {}]
  %s2 = inlined_call_operand.hbm [shape: f32[16,48], index: 2, kind: input, shape index: {}]
  %s3 = inlined_call_operand.hbm [shape: f32[1,2], index: 3, kind: input, shape index: {}]
  %s4 = inlined_call_operand.vmem [shape: f32[16,2], index: 4, kind: output, shape index: {}]
  %s5 = sld [smem:[#allocation0]]
  $region38: #{tpu_custom_call.1} parent=0
    _
  %s7 = ssub.s32 1, %s5
  %s8 = scalar_select 0, %s7, %s5
  $region1: #{tpu_custom_call.1} parent=0
    #allocation2 [shape = 'u8[9633792]{0}', space=vmem, size = 0x930000, scoped, tag = 'input window, operand 0, single buffered']
    #allocation3 [shape = 's32[1]{0}', space=sflag, size = 0x4, scoped, tag = 'scoped memory for tpu_custom_call.1']
    #allocation4 [shape = 'u8[8192]{0}', space=vmem, size = 0x2000, scoped, tag = 'input window, operand 2, single buffered']
    #allocation5 [shape = 's32[1]{0}', space=sflag, size = 0x4, scoped, tag = 'scoped memory for tpu_custom_call.1']
    #allocation6 [shape = 'u8[512]{0}', space=vmem, size = 0x400, scoped, tag = 'input window, operand 3, single buffered']
    %9 = vsyncpa [#allocation3], 0
    %10 = vsyncpa [#allocation5], 0
    // Predicated region
    $region2: #{tpu_custom_call.1} parent=1 // pred_check
      _
    $region3: #{tpu_custom_call.1} parent=1 // pred_check_branch
      %12 = sbr.rel (0) target = $region5
    $region4: #{tpu_custom_call.1} parent=1 // pred_region
      %s14 = ssub.s32 301056, 301056
      %15 = vsyncadd [#allocation3], %s14
      %s16 = sshll.u32 [#allocation2], 4
      %s17 = int_to_ptr.vmem [resolvable:$true] %s16
      %22 = dma.hbm_to_vmem [thread:$0]  %s0, 301056, %s17, [#allocation3], 50176, 50176, 3136
    $region5: #{tpu_custom_call.1} parent=1 // pred_fallthru
      _
    // Predicated region
    $region6: #{tpu_custom_call.1} parent=1 // pred_check
      _
    $region7: #{tpu_custom_call.1} parent=1 // pred_check_branch
      %24 = sbr.rel (0) target = $region9
    $region8: #{tpu_custom_call.1} parent=1 // pred_region
      _
    $region9: #{tpu_custom_call.1} parent=1 // pred_fallthru
      _
    // Predicated region
    $region10: #{tpu_custom_call.1} parent=1 // pred_check
      _
    $region11: #{tpu_custom_call.1} parent=1 // pred_check_branch
      %26 = sbr.rel (0) target = $region13
    $region12: #{tpu_custom_call.1} parent=1 // pred_region
      %s28 = ssub.s32 256, 256
      %29 = vsyncadd [#allocation5], %s28
      %s30 = sshll.u32 [#allocation4], 4
      %s31 = int_to_ptr.vmem [resolvable:$true] %s30
      %36 = dma.hbm_to_vmem [thread:$0]  %s2, 256, %s31, [#allocation5], 128, 128, 8
    $region13: #{tpu_custom_call.1} parent=1 // pred_fallthru
      _
    // Predicated region
    $region14: #{tpu_custom_call.1} parent=1 // pred_check
      _
    $region15: #{tpu_custom_call.1} parent=1 // pred_check_branch
      %38 = sbr.rel (0) target = $region17
    $region16: #{tpu_custom_call.1} parent=1 // pred_region
      %s40 = ssub.s32 16, 16
      %41 = vsyncadd [#allocation5], %s40
      %s43 = sshll.u32 [#allocation6], 4
      %s44 = int_to_ptr.vmem [resolvable:$true] %s43
      %46 = dma.hbm_to_vmem [thread:$0]  %s3, 16, %s44, [#allocation5]
    $region17: #{tpu_custom_call.1} parent=1 // pred_fallthru
      _
    // Predicated region
    $region18: #{tpu_custom_call.1} parent=1 // pred_check
      _
    $region19: #{tpu_custom_call.1} parent=1 // pred_check_branch
      %48 = sbr.rel (0) target = $region21
    $region20: #{tpu_custom_call.1} parent=1 // pred_region
      %49 = dma.done [#allocation3], 301056
    $region21: #{tpu_custom_call.1} parent=1 // pred_fallthru
      _
    // Predicated region
    $region22: #{tpu_custom_call.1} parent=1 // pred_check
      _
    $region23: #{tpu_custom_call.1} parent=1 // pred_check_branch
      %51 = sbr.rel (0) target = $region25
    $region24: #{tpu_custom_call.1} parent=1 // pred_region
      %52 = dma.done [#allocation5], 256
    $region25: #{tpu_custom_call.1} parent=1 // pred_fallthru
      _
    // Predicated region
    $region26: #{tpu_custom_call.1} parent=1 // pred_check
      _
    $region27: #{tpu_custom_call.1} parent=1 // pred_check_branch
      %54 = sbr.rel (0) target = $region29
    $region28: #{tpu_custom_call.1} parent=1 // pred_region
      %55 = dma.done [#allocation5], 16
    $region29: #{tpu_custom_call.1} parent=1 // pred_fallthru
      _
    %v56 = vld [vmem:[#allocation2] sm:$0xff]
    %v57 = vld [vmem:[#allocation2 + $0x8] sm:$0xff]
    %v58 = vld [vmem:[#allocation2 + $0x10] sm:$0xff]
    %v59 = vld [vmem:[#allocation2 + $0x18] sm:$0xff]
    %v60 = vld [vmem:[#allocation2 + $0x20] sm:$0xff]
    %v61 = vld [vmem:[#allocation2 + $0x28] sm:$0xff]
    %v62 = vld [vmem:[#allocation2 + $0x30] sm:$0xff]
    %v63 = vld [vmem:[#allocation2 + $0x38] sm:$0xff]
    %v64 = vld [vmem:[#allocation2 + $0x40] sm:$0xff]
    %v65 = vld [vmem:[#allocation2 + $0x48] sm:$0xff]
    %v66 = vld [vmem:[#allocation2 + $0x50] sm:$0xff]
    %v67 = vld [vmem:[#allocation2 + $0x58] sm:$0xff]
    %v68 = vld [vmem:[#allocation2 + $0x60] sm:$0xff]
    %v69 = vld [vmem:[#allocation2 + $0x68] sm:$0xff]
    %v70 = vld [vmem:[#allocation2 + $0x70] sm:$0xff]
    %v71 = vld [vmem:[#allocation2 + $0x78] sm:$0xff]
    %v72 = vld [vmem:[#allocation2 + $0x80] sm:$0xff]
    %v73 = vld [vmem:[#allocation2 + $0x88] sm:$0xff]
    %v74 = vld [vmem:[#allocation2 + $0x90] sm:$0xff]
    %v75 = vld [vmem:[#allocation2 + $0x98] sm:$0xff]
    %v76 = vld [vmem:[#allocation2 + $0xa0] sm:$0xff]
    %v77 = vld [vmem:[#allocation2 + $0xa8] sm:$0xff]
    %v78 = vld [vmem:[#allocation2 + $0xb0] sm:$0xff]
    %v79 = vld [vmem:[#allocation2 + $0xb8] sm:$0xff]
    %v80 = vld [vmem:[#allocation2 + $0xc0] sm:$0xff]
    %v81 = vld [vmem:[#allocation2 + $0xc8] sm:$0xff]
    %v82 = vld [vmem:[#allocation2 + $0xd0] sm:$0xff]
    %v83 = vld [vmem:[#allocation2 + $0xd8] sm:$0xff]
    %v84 = vld [vmem:[#allocation2 + $0xe0] sm:$0xff]
    %v85 = vld [vmem:[#allocation2 + $0xe8] sm:$0xff]
    %v86 = vld [vmem:[#allocation2 + $0xf0] sm:$0xff]
    %v87 = vld [vmem:[#allocation2 + $0xf8] sm:$0xff]
    %v88 = vld [vmem:[#allocation2 + $0x100] sm:$0xff]
    %v89 = vld [vmem:[#allocation2 + $0x108] sm:$0xff]
    %v90 = vld [vmem:[#allocation2 + $0x110] sm:$0xff]
    %v91 = vld [vmem:[#allocation2 + $0x118] sm:$0xff]
    %v92 = vld [vmem:[#allocation2 + $0x120] sm:$0xff]
    %v93 = vld [vmem:[#allocation2 + $0x128] sm:$0xff]
    %v94 = vld [vmem:[#allocation2 + $0x130] sm:$0xff]
    %v95 = vld [vmem:[#allocation2 + $0x138] sm:$0xff]
    %v96 = vld [vmem:[#allocation2 + $0x140] sm:$0xff]
    %v97 = vld [vmem:[#allocation2 + $0x148] sm:$0xff]
    %v98 = vld [vmem:[#allocation2 + $0x150] sm:$0xff]
    %v99 = vld [vmem:[#allocation2 + $0x158] sm:$0xff]
    %v100 = vld [vmem:[#allocation2 + $0x160] sm:$0xff]
    %v101 = vld [vmem:[#allocation2 + $0x168] sm:$0xff]
    %v102 = vld [vmem:[#allocation2 + $0x170] sm:$0xff]
    %v103 = vld [vmem:[#allocation2 + $0x178] sm:$0xff]
    %v104 = vld [vmem:[#allocation2 + $0x180] sm:$0xff]
    %v105 = vld [vmem:[#allocation2 + $0x188] sm:$0xff]
    %v106 = vld [vmem:[#allocation2 + $0x190] sm:$0xff]
    %v107 = vld [vmem:[#allocation2 + $0x198] sm:$0xff]
    %v108 = vld [vmem:[#allocation2 + $0x1a0] sm:$0xff]
    %v109 = vld [vmem:[#allocation2 + $0x1a8] sm:$0xff]
    %v110 = vld [vmem:[#allocation2 + $0x1b0] sm:$0xff]
    %v111 = vld [vmem:[#allocation2 + $0x1b8] sm:$0xff]
    %v112 = vld [vmem:[#allocation2 + $0x1c0] sm:$0xff]
    %v113 = vld [vmem:[#allocation2 + $0x1c8] sm:$0xff]
    %v114 = vld [vmem:[#allocation2 + $0x1d0] sm:$0xff]
    %v115 = vld [vmem:[#allocation2 + $0x1d8] sm:$0xff]
    %v116 = vld [vmem:[#allocation2 + $0x1e0] sm:$0xff]
    %v117 = vld [vmem:[#allocation2 + $0x1e8] sm:$0xff]
    %v118 = vld [vmem:[#allocation2 + $0x1f0] sm:$0xff]
    %v119 = vld [vmem:[#allocation2 + $0x1f8] sm:$0xff]
    %v120 = vld [vmem:[#allocation2 + $0x200] sm:$0xff]
    %v121 = vld [vmem:[#allocation2 + $0x208] sm:$0xff]
    %v122 = vld [vmem:[#allocation2 + $0x210] sm:$0xff]
    %v123 = vld [vmem:[#allocation2 + $0x218] sm:$0xff]
    %v124 = vld [vmem:[#allocation2 + $0x220] sm:$0xff]
    %v125 = vld [vmem:[#allocation2 + $0x228] sm:$0xff]
    %v126 = vld [vmem:[#allocation2 + $0x230] sm:$0xff]
    %v127 = vld [vmem:[#allocation2 + $0x238] sm:$0xff]
    %v128 = vld [vmem:[#allocation2 + $0x240] sm:$0xff]
    %v129 = vld [vmem:[#allocation2 + $0x248] sm:$0xff]
    %v130 = vld [vmem:[#allocation2 + $0x250] sm:$0xff]
    %v131 = vld [vmem:[#allocation2 + $0x258] sm:$0xff]
    %v132 = vld [vmem:[#allocation2 + $0x260] sm:$0xff]
    %v133 = vld [vmem:[#allocation2 + $0x268] sm:$0xff]
    %v134 = vld [vmem:[#allocation2 + $0x270] sm:$0xff]
    %v135 = vld [vmem:[#allocation2 + $0x278] sm:$0xff]
    %v136 = vld [vmem:[#allocation2 + $0x280] sm:$0xff]
    %v137 = vld [vmem:[#allocation2 + $0x288] sm:$0xff]
    %v138 = vld [vmem:[#allocation2 + $0x290] sm:$0xff]
    %v139 = vld [vmem:[#allocation2 + $0x298] sm:$0xff]
    %v140 = vld [vmem:[#allocation2 + $0x2a0] sm:$0xff]
    %v141 = vld [vmem:[#allocation2 + $0x2a8] sm:$0xff]
    %v142 = vld [vmem:[#allocation2 + $0x2b0] sm:$0xff]
    %v143 = vld [vmem:[#allocation2 + $0x2b8] sm:$0xff]
    %v144 = vld [vmem:[#allocation2 + $0x2c0] sm:$0xff]
    %v145 = vld [vmem:[#allocation2 + $0x2c8] sm:$0xff]
    %v146 = vld [vmem:[#allocation2 + $0x2d0] sm:$0xff]
    %v147 = vld [vmem:[#allocation2 + $0x2d8] sm:$0xff]
    %v148 = vld [vmem:[#allocation2 + $0x2e0] sm:$0xff]
    %v149 = vld [vmem:[#allocation2 + $0x2e8] sm:$0xff]
    %v150 = vld [vmem:[#allocation2 + $0x2f0] sm:$0xff]
    %v151 = vld [vmem:[#allocation2 + $0x2f8] sm:$0xff]
    %v152 = vld [vmem:[#allocation2 + $0x300] sm:$0xff]
    %v153 = vld [vmem:[#allocation2 + $0x308] sm:$0xff]
    %v154 = vld [vmem:[#allocation2 + $0x310] sm:$0xff]
    %v155 = vld [vmem:[#allocation2 + $0x318] sm:$0xff]
    %v156 = vld [vmem:[#allocation2 + $0x320] sm:$0xff]
    %v157 = vld [vmem:[#allocation2 + $0x328] sm:$0xff]
    %v158 = vld [vmem:[#allocation2 + $0x330] sm:$0xff]
    %v159 = vld [vmem:[#allocation2 + $0x338] sm:$0xff]
    %v160 = vld [vmem:[#allocation2 + $0x340] sm:$0xff]
    %v161 = vld [vmem:[#allocation2 + $0x348] sm:$0xff]
    %v162 = vld [vmem:[#allocation2 + $0x350] sm:$0xff]
    %v163 = vld [vmem:[#allocation2 + $0x358] sm:$0xff]
    %v164 = vld [vmem:[#allocation2 + $0x360] sm:$0xff]
    %v165 = vld [vmem:[#allocation2 + $0x368] sm:$0xff]
    %v166 = vld [vmem:[#allocation2 + $0x370] sm:$0xff]
    %v167 = vld [vmem:[#allocation2 + $0x378] sm:$0xff]
    %v168 = vld [vmem:[#allocation2 + $0x380] sm:$0xff]
    %v169 = vld [vmem:[#allocation2 + $0x388] sm:$0xff]
    %v170 = vld [vmem:[#allocation2 + $0x390] sm:$0xff]
    %v171 = vld [vmem:[#allocation2 + $0x398] sm:$0xff]
    %v172 = vld [vmem:[#allocation2 + $0x3a0] sm:$0xff]
    %v173 = vld [vmem:[#allocation2 + $0x3a8] sm:$0xff]
    %v174 = vld [vmem:[#allocation2 + $0x3b0] sm:$0xff]
    %v175 = vld [vmem:[#allocation2 + $0x3b8] sm:$0xff]
    %v176 = vld [vmem:[#allocation2 + $0x3c0] sm:$0xff]
    %v177 = vld [vmem:[#allocation2 + $0x3c8] sm:$0xff]
    %v178 = vld [vmem:[#allocation2 + $0x3d0] sm:$0xff]
    %v179 = vld [vmem:[#allocation2 + $0x3d8] sm:$0xff]
    %v180 = vld [vmem:[#allocation2 + $0x3e0] sm:$0xff]
    %v181 = vld [vmem:[#allocation2 + $0x3e8] sm:$0xff]
    %v182 = vld [vmem:[#allocation2 + $0x3f0] sm:$0xff]
    %v183 = vld [vmem:[#allocation2 + $0x3f8] sm:$0xff]
    %v184 = vld [vmem:[#allocation2 + $0x400] sm:$0xff]
    %v185 = vld [vmem:[#allocation2 + $0x408] sm:$0xff]
    %v186 = vld [vmem:[#allocation2 + $0x410] sm:$0xff]
    %v187 = vld [vmem:[#allocation2 + $0x418] sm:$0xff]
    %v188 = vld [vmem:[#allocation2 + $0x420] sm:$0xff]
    %v189 = vld [vmem:[#allocation2 + $0x428] sm:$0xff]
    %v190 = vld [vmem:[#allocation2 + $0x430] sm:$0xff]
    %v191 = vld [vmem:[#allocation2 + $0x438] sm:$0xff]
    %v192 = vld [vmem:[#allocation2 + $0x440] sm:$0xff]
    %v193 = vld [vmem:[#allocation2 + $0x448] sm:$0xff]
    %v194 = vld [vmem:[#allocation2 + $0x450] sm:$0xff]
    %v195 = vld [vmem:[#allocation2 + $0x458] sm:$0xff]
    %v196 = vld [vmem:[#allocation2 + $0x460] sm:$0xff]
    %v197 = vld [vmem:[#allocation2 + $0x468] sm:$0xff]
    %v198 = vld [vmem:[#allocation2 + $0x470] sm:$0xff]
    %v199 = vld [vmem:[#allocation2 + $0x478] sm:$0xff]
    %v200 = vld [vmem:[#allocation2 + $0x480] sm:$0xff]
    %v201 = vld [vmem:[#allocation2 + $0x488] sm:$0xff]
    %v202 = vld [vmem:[#allocation2 + $0x490] sm:$0xff]
    %v203 = vld [vmem:[#allocation2 + $0x498] sm:$0xff]
    %v204 = vld [vmem:[#allocation2 + $0x4a0] sm:$0xff]
    %v205 = vld [vmem:[#allocation2 + $0x4a8] sm:$0xff]
    %v206 = vld [vmem:[#allocation2 + $0x4b0] sm:$0xff]
    %v207 = vld [vmem:[#allocation2 + $0x4b8] sm:$0xff]
    %v208 = vld [vmem:[#allocation2 + $0x4c0] sm:$0xff]
    %v209 = vld [vmem:[#allocation2 + $0x4c8] sm:$0xff]
    %v210 = vld [vmem:[#allocation2 + $0x4d0] sm:$0xff]
    %v211 = vld [vmem:[#allocation2 + $0x4d8] sm:$0xff]
    %v212 = vld [vmem:[#allocation2 + $0x4e0] sm:$0xff]
    %v213 = vld [vmem:[#allocation2 + $0x4e8] sm:$0xff]
    %v214 = vld [vmem:[#allocation2 + $0x4f0] sm:$0xff]
    %v215 = vld [vmem:[#allocation2 + $0x4f8] sm:$0xff]
    %v216 = vld [vmem:[#allocation2 + $0x500] sm:$0xff]
    %v217 = vld [vmem:[#allocation2 + $0x508] sm:$0xff]
    %v218 = vld [vmem:[#allocation2 + $0x510] sm:$0xff]
    %v219 = vld [vmem:[#allocation2 + $0x518] sm:$0xff]
    %v220 = vld [vmem:[#allocation2 + $0x520] sm:$0xff]
    %v221 = vld [vmem:[#allocation2 + $0x528] sm:$0xff]
    %v222 = vld [vmem:[#allocation2 + $0x530] sm:$0xff]
    %v223 = vld [vmem:[#allocation2 + $0x538] sm:$0xff]
    %v224 = vld [vmem:[#allocation2 + $0x540] sm:$0xff]
    %v225 = vld [vmem:[#allocation2 + $0x548] sm:$0xff]
    %v226 = vld [vmem:[#allocation2 + $0x550] sm:$0xff]
    %v227 = vld [vmem:[#allocation2 + $0x558] sm:$0xff]
    %v228 = vld [vmem:[#allocation2 + $0x560] sm:$0xff]
    %v229 = vld [vmem:[#allocation2 + $0x568] sm:$0xff]
    %v230 = vld [vmem:[#allocation2 + $0x570] sm:$0xff]
    %v231 = vld [vmem:[#allocation2 + $0x578] sm:$0xff]
    %v232 = vld [vmem:[#allocation2 + $0x580] sm:$0xff]
    %v233 = vld [vmem:[#allocation2 + $0x588] sm:$0xff]
    %v234 = vld [vmem:[#allocation2 + $0x590] sm:$0xff]
    %v235 = vld [vmem:[#allocation2 + $0x598] sm:$0xff]
    %v236 = vld [vmem:[#allocation2 + $0x5a0] sm:$0xff]
    %v237 = vld [vmem:[#allocation2 + $0x5a8] sm:$0xff]
    %v238 = vld [vmem:[#allocation2 + $0x5b0] sm:$0xff]
    %v239 = vld [vmem:[#allocation2 + $0x5b8] sm:$0xff]
    %v240 = vld [vmem:[#allocation2 + $0x5c0] sm:$0xff]
    %v241 = vld [vmem:[#allocation2 + $0x5c8] sm:$0xff]
    %v242 = vld [vmem:[#allocation2 + $0x5d0] sm:$0xff]
    %v243 = vld [vmem:[#allocation2 + $0x5d8] sm:$0xff]
    %v244 = vld [vmem:[#allocation2 + $0x5e0] sm:$0xff]
    %v245 = vld [vmem:[#allocation2 + $0x5e8] sm:$0xff]
    %v246 = vld [vmem:[#allocation2 + $0x5f0] sm:$0xff]
    %v247 = vld [vmem:[#allocation2 + $0x5f8] sm:$0xff]
    %v248 = vld [vmem:[#allocation2 + $0x600] sm:$0xff]
    %v249 = vld [vmem:[#allocation2 + $0x608] sm:$0xff]
    %v250 = vld [vmem:[#allocation2 + $0x610] sm:$0xff]
    %v251 = vld [vmem:[#allocation2 + $0x618] sm:$0xff]
    %v252 = vld [vmem:[#allocation2 + $0x620] sm:$0xff]
    %v253 = vld [vmem:[#allocation2 + $0x628] sm:$0xff]
    %v254 = vld [vmem:[#allocation2 + $0x630] sm:$0xff]
    %v255 = vld [vmem:[#allocation2 + $0x638] sm:$0xff]
    %v256 = vld [vmem:[#allocation2 + $0x640] sm:$0xff]
    %v257 = vld [vmem:[#allocation2 + $0x648] sm:$0xff]
    %v258 = vld [vmem:[#allocation2 + $0x650] sm:$0xff]
    %v259 = vld [vmem:[#allocation2 + $0x658] sm:$0xff]
    %v260 = vld [vmem:[#allocation2 + $0x660] sm:$0xff]
    %v261 = vld [vmem:[#allocation2 + $0x668] sm:$0xff]
    %v262 = vld [vmem:[#allocation2 + $0x670] sm:$0xff]
    %v263 = vld [vmem:[#allocation2 + $0x678] sm:$0xff]
    %v264 = vld [vmem:[#allocation2 + $0x680] sm:$0xff]
    %v265 = vld [vmem:[#allocation2 + $0x688] sm:$0xff]
    %v266 = vld [vmem:[#allocation2 + $0x690] sm:$0xff]
    %v267 = vld [vmem:[#allocation2 + $0x698] sm:$0xff]
    %v268 = vld [vmem:[#allocation2 + $0x6a0] sm:$0xff]
    %v269 = vld [vmem:[#allocation2 + $0x6a8] sm:$0xff]
    %v270 = vld [vmem:[#allocation2 + $0x6b0] sm:$0xff]
    %v271 = vld [vmem:[#allocation2 + $0x6b8] sm:$0xff]
    %v272 = vld [vmem:[#allocation2 + $0x6c0] sm:$0xff]
    %v273 = vld [vmem:[#allocation2 + $0x6c8] sm:$0xff]
    %v274 = vld [vmem:[#allocation2 + $0x6d0] sm:$0xff]
    %v275 = vld [vmem:[#allocation2 + $0x6d8] sm:$0xff]
    %v276 = vld [vmem:[#allocation2 + $0x6e0] sm:$0xff]
    %v277 = vld [vmem:[#allocation2 + $0x6e8] sm:$0xff]
    %v278 = vld [vmem:[#allocation2 + $0x6f0] sm:$0xff]
    %v279 = vld [vmem:[#allocation2 + $0x6f8] sm:$0xff]
    %v280 = vld [vmem:[#allocation2 + $0x700] sm:$0xff]
    %v281 = vld [vmem:[#allocation2 + $0x708] sm:$0xff]
    %v282 = vld [vmem:[#allocation2 + $0x710] sm:$0xff]
    %v283 = vld [vmem:[#allocation2 + $0x718] sm:$0xff]
    %v284 = vld [vmem:[#allocation2 + $0x720] sm:$0xff]
    %v285 = vld [vmem:[#allocation2 + $0x728] sm:$0xff]
    %v286 = vld [vmem:[#allocation2 + $0x730] sm:$0xff]
    %v287 = vld [vmem:[#allocation2 + $0x738] sm:$0xff]
    %v288 = vld [vmem:[#allocation2 + $0x740] sm:$0xff]
    %v289 = vld [vmem:[#allocation2 + $0x748] sm:$0xff]
    %v290 = vld [vmem:[#allocation2 + $0x750] sm:$0xff]
    %v291 = vld [vmem:[#allocation2 + $0x758] sm:$0xff]
    %v292 = vld [vmem:[#allocation2 + $0x760] sm:$0xff]
    %v293 = vld [vmem:[#allocation2 + $0x768] sm:$0xff]
    %v294 = vld [vmem:[#allocation2 + $0x770] sm:$0xff]
    %v295 = vld [vmem:[#allocation2 + $0x778] sm:$0xff]
    %v296 = vld [vmem:[#allocation2 + $0x780] sm:$0xff]
    %v297 = vld [vmem:[#allocation2 + $0x788] sm:$0xff]
    %v298 = vld [vmem:[#allocation2 + $0x790] sm:$0xff]
    %v299 = vld [vmem:[#allocation2 + $0x798] sm:$0xff]
    %v300 = vld [vmem:[#allocation2 + $0x7a0] sm:$0xff]
    %v301 = vld [vmem:[#allocation2 + $0x7a8] sm:$0xff]
    %v302 = vld [vmem:[#allocation2 + $0x7b0] sm:$0xff]
    %v303 = vld [vmem:[#allocation2 + $0x7b8] sm:$0xff]
    %v304 = vld [vmem:[#allocation2 + $0x7c0] sm:$0xff]
    %v305 = vld [vmem:[#allocation2 + $0x7c8] sm:$0xff]
    %v306 = vld [vmem:[#allocation2 + $0x7d0] sm:$0xff]
    %v307 = vld [vmem:[#allocation2 + $0x7d8] sm:$0xff]
    %v308 = vld [vmem:[#allocation2 + $0x7e0] sm:$0xff]
    %v309 = vld [vmem:[#allocation2 + $0x7e8] sm:$0xff]
    %v310 = vld [vmem:[#allocation2 + $0x7f0] sm:$0xff]
    %v311 = vld [vmem:[#allocation2 + $0x7f8] sm:$0xff]
    %v312 = vld [vmem:[#allocation2 + $0x800] sm:$0xff]
    %v313 = vld [vmem:[#allocation2 + $0x808] sm:$0xff]
    %v314 = vld [vmem:[#allocation2 + $0x810] sm:$0xff]
    %v315 = vld [vmem:[#allocation2 + $0x818] sm:$0xff]
    %v316 = vld [vmem:[#allocation2 + $0x820] sm:$0xff]
    %v317 = vld [vmem:[#allocation2 + $0x828] sm:$0xff]
    %v318 = vld [vmem:[#allocation2 + $0x830] sm:$0xff]
    %v319 = vld [vmem:[#allocation2 + $0x838] sm:$0xff]
    %v320 = vld [vmem:[#allocation2 + $0x840] sm:$0xff]
    %v321 = vld [vmem:[#allocation2 + $0x848] sm:$0xff]
    %v322 = vld [vmem:[#allocation2 + $0x850] sm:$0xff]
    %v323 = vld [vmem:[#allocation2 + $0x858] sm:$0xff]
    %v324 = vld [vmem:[#allocation2 + $0x860] sm:$0xff]
    %v325 = vld [vmem:[#allocation2 + $0x868] sm:$0xff]
    %v326 = vld [vmem:[#allocation2 + $0x870] sm:$0xff]
    %v327 = vld [vmem:[#allocation2 + $0x878] sm:$0xff]
    %v328 = vld [vmem:[#allocation2 + $0x880] sm:$0xff]
    %v329 = vld [vmem:[#allocation2 + $0x888] sm:$0xff]
    %v330 = vld [vmem:[#allocation2 + $0x890] sm:$0xff]
    %v331 = vld [vmem:[#allocation2 + $0x898] sm:$0xff]
    %v332 = vld [vmem:[#allocation2 + $0x8a0] sm:$0xff]
    %v333 = vld [vmem:[#allocation2 + $0x8a8] sm:$0xff]
    %v334 = vld [vmem:[#allocation2 + $0x8b0] sm:$0xff]
    %v335 = vld [vmem:[#allocation2 + $0x8b8] sm:$0xff]
    %v336 = vld [vmem:[#allocation2 + $0x8c0] sm:$0xff]
    %v337 = vld [vmem:[#allocation2 + $0x8c8] sm:$0xff]
    %v338 = vld [vmem:[#allocation2 + $0x8d0] sm:$0xff]
    %v339 = vld [vmem:[#allocation2 + $0x8d8] sm:$0xff]
    %v340 = vld [vmem:[#allocation2 + $0x8e0] sm:$0xff]
    %v341 = vld [vmem:[#allocation2 + $0x8e8] sm:$0xff]
    %v342 = vld [vmem:[#allocation2 + $0x8f0] sm:$0xff]
    %v343 = vld [vmem:[#allocation2 + $0x8f8] sm:$0xff]
    %v344 = vld [vmem:[#allocation2 + $0x900] sm:$0xff]
    %v345 = vld [vmem:[#allocation2 + $0x908] sm:$0xff]
    %v346 = vld [vmem:[#allocation2 + $0x910] sm:$0xff]
    %v347 = vld [vmem:[#allocation2 + $0x918] sm:$0xff]
    %v348 = vld [vmem:[#allocation2 + $0x920] sm:$0xff]
    %v349 = vld [vmem:[#allocation2 + $0x928] sm:$0xff]
    %v350 = vld [vmem:[#allocation2 + $0x930] sm:$0xff]
    %v351 = vld [vmem:[#allocation2 + $0x938] sm:$0xff]
    %v352 = vld [vmem:[#allocation2 + $0x940] sm:$0xff]
    %v353 = vld [vmem:[#allocation2 + $0x948] sm:$0xff]
    %v354 = vld [vmem:[#allocation2 + $0x950] sm:$0xff]
    %v355 = vld [vmem:[#allocation2 + $0x958] sm:$0xff]
    %v356 = vld [vmem:[#allocation2 + $0x960] sm:$0xff]
    %v357 = vld [vmem:[#allocation2 + $0x968] sm:$0xff]
    %v358 = vld [vmem:[#allocation2 + $0x970] sm:$0xff]
    %v359 = vld [vmem:[#allocation2 + $0x978] sm:$0xff]
    %v360 = vld [vmem:[#allocation2 + $0x980] sm:$0xff]
    %v361 = vld [vmem:[#allocation2 + $0x988] sm:$0xff]
    %v362 = vld [vmem:[#allocation2 + $0x990] sm:$0xff]
    %v363 = vld [vmem:[#allocation2 + $0x998] sm:$0xff]
    %v364 = vld [vmem:[#allocation2 + $0x9a0] sm:$0xff]
    %v365 = vld [vmem:[#allocation2 + $0x9a8] sm:$0xff]
    %v366 = vld [vmem:[#allocation2 + $0x9b0] sm:$0xff]
    %v367 = vld [vmem:[#allocation2 + $0x9b8] sm:$0xff]
    %v368 = vld [vmem:[#allocation2 + $0x9c0] sm:$0xff]
    %v369 = vld [vmem:[#allocation2 + $0x9c8] sm:$0xff]
    %v370 = vld [vmem:[#allocation2 + $0x9d0] sm:$0xff]
    %v371 = vld [vmem:[#allocation2 + $0x9d8] sm:$0xff]
    %v372 = vld [vmem:[#allocation2 + $0x9e0] sm:$0xff]
    %v373 = vld [vmem:[#allocation2 + $0x9e8] sm:$0xff]
    %v374 = vld [vmem:[#allocation2 + $0x9f0] sm:$0xff]
    %v375 = vld [vmem:[#allocation2 + $0x9f8] sm:$0xff]
    %v376 = vld [vmem:[#allocation2 + $0xa00] sm:$0xff]
    %v377 = vld [vmem:[#allocation2 + $0xa08] sm:$0xff]
    %v378 = vld [vmem:[#allocation2 + $0xa10] sm:$0xff]
    %v379 = vld [vmem:[#allocation2 + $0xa18] sm:$0xff]
    %v380 = vld [vmem:[#allocation2 + $0xa20] sm:$0xff]
    %v381 = vld [vmem:[#allocation2 + $0xa28] sm:$0xff]
    %v382 = vld [vmem:[#allocation2 + $0xa30] sm:$0xff]
    %v383 = vld [vmem:[#allocation2 + $0xa38] sm:$0xff]
    %v384 = vld [vmem:[#allocation2 + $0xa40] sm:$0xff]
    %v385 = vld [vmem:[#allocation2 + $0xa48] sm:$0xff]
    %v386 = vld [vmem:[#allocation2 + $0xa50] sm:$0xff]
    %v387 = vld [vmem:[#allocation2 + $0xa58] sm:$0xff]
    %v388 = vld [vmem:[#allocation2 + $0xa60] sm:$0xff]
    %v389 = vld [vmem:[#allocation2 + $0xa68] sm:$0xff]
    %v390 = vld [vmem:[#allocation2 + $0xa70] sm:$0xff]
    %v391 = vld [vmem:[#allocation2 + $0xa78] sm:$0xff]
    %v392 = vld [vmem:[#allocation2 + $0xa80] sm:$0xff]
    %v393 = vld [vmem:[#allocation2 + $0xa88] sm:$0xff]
    %v394 = vld [vmem:[#allocation2 + $0xa90] sm:$0xff]
    %v395 = vld [vmem:[#allocation2 + $0xa98] sm:$0xff]
    %v396 = vld [vmem:[#allocation2 + $0xaa0] sm:$0xff]
    %v397 = vld [vmem:[#allocation2 + $0xaa8] sm:$0xff]
    %v398 = vld [vmem:[#allocation2 + $0xab0] sm:$0xff]
    %v399 = vld [vmem:[#allocation2 + $0xab8] sm:$0xff]
    %v400 = vld [vmem:[#allocation2 + $0xac0] sm:$0xff]
    %v401 = vld [vmem:[#allocation2 + $0xac8] sm:$0xff]
    %v402 = vld [vmem:[#allocation2 + $0xad0] sm:$0xff]
    %v403 = vld [vmem:[#allocation2 + $0xad8] sm:$0xff]
    %v404 = vld [vmem:[#allocation2 + $0xae0] sm:$0xff]
    %v405 = vld [vmem:[#allocation2 + $0xae8] sm:$0xff]
    %v406 = vld [vmem:[#allocation2 + $0xaf0] sm:$0xff]
    %v407 = vld [vmem:[#allocation2 + $0xaf8] sm:$0xff]
    %v408 = vld [vmem:[#allocation2 + $0xb00] sm:$0xff]
    %v409 = vld [vmem:[#allocation2 + $0xb08] sm:$0xff]
    %v410 = vld [vmem:[#allocation2 + $0xb10] sm:$0xff]
    %v411 = vld [vmem:[#allocation2 + $0xb18] sm:$0xff]
    %v412 = vld [vmem:[#allocation2 + $0xb20] sm:$0xff]
    %v413 = vld [vmem:[#allocation2 + $0xb28] sm:$0xff]
    %v414 = vld [vmem:[#allocation2 + $0xb30] sm:$0xff]
    %v415 = vld [vmem:[#allocation2 + $0xb38] sm:$0xff]
    %v416 = vld [vmem:[#allocation2 + $0xb40] sm:$0xff]
    %v417 = vld [vmem:[#allocation2 + $0xb48] sm:$0xff]
    %v418 = vld [vmem:[#allocation2 + $0xb50] sm:$0xff]
    %v419 = vld [vmem:[#allocation2 + $0xb58] sm:$0xff]
    %v420 = vld [vmem:[#allocation2 + $0xb60] sm:$0xff]
    %v421 = vld [vmem:[#allocation2 + $0xb68] sm:$0xff]
    %v422 = vld [vmem:[#allocation2 + $0xb70] sm:$0xff]
    %v423 = vld [vmem:[#allocation2 + $0xb78] sm:$0xff]
    %v424 = vld [vmem:[#allocation2 + $0xb80] sm:$0xff]
    %v425 = vld [vmem:[#allocation2 + $0xb88] sm:$0xff]
    %v426 = vld [vmem:[#allocation2 + $0xb90] sm:$0xff]
    %v427 = vld [vmem:[#allocation2 + $0xb98] sm:$0xff]
    %v428 = vld [vmem:[#allocation2 + $0xba0] sm:$0xff]
    %v429 = vld [vmem:[#allocation2 + $0xba8] sm:$0xff]
    %v430 = vld [vmem:[#allocation2 + $0xbb0] sm:$0xff]
    %v431 = vld [vmem:[#allocation2 + $0xbb8] sm:$0xff]
    %v432 = vld [vmem:[#allocation2 + $0xbc0] sm:$0xff]
    %v433 = vld [vmem:[#allocation2 + $0xbc8] sm:$0xff]
    %v434 = vld [vmem:[#allocation2 + $0xbd0] sm:$0xff]
    %v435 = vld [vmem:[#allocation2 + $0xbd8] sm:$0xff]
    %v436 = vld [vmem:[#allocation2 + $0xbe0] sm:$0xff]
    %v437 = vld [vmem:[#allocation2 + $0xbe8] sm:$0xff]
    %v438 = vld [vmem:[#allocation2 + $0xbf0] sm:$0xff]
    %v439 = vld [vmem:[#allocation2 + $0xbf8] sm:$0xff]
    %v440 = vld [vmem:[#allocation2 + $0xc00] sm:$0xff]
    %v441 = vld [vmem:[#allocation2 + $0xc08] sm:$0xff]
    %v442 = vld [vmem:[#allocation2 + $0xc10] sm:$0xff]
    %v443 = vld [vmem:[#allocation2 + $0xc18] sm:$0xff]
    %v444 = vld [vmem:[#allocation2 + $0xc20] sm:$0xff]
    %v445 = vld [vmem:[#allocation2 + $0xc28] sm:$0xff]
    %v446 = vld [vmem:[#allocation2 + $0xc30] sm:$0xff]
    %v447 = vld [vmem:[#allocation2 + $0xc38] sm:$0xff]
    %v448 = vld [vmem:[#allocation2 + $0xc40] sm:$0xff]
    %v449 = vld [vmem:[#allocation2 + $0xc48] sm:$0xff]
    %v450 = vld [vmem:[#allocation2 + $0xc50] sm:$0xff]
    %v451 = vld [vmem:[#allocation2 + $0xc58] sm:$0xff]
    %v452 = vld [vmem:[#allocation2 + $0xc60] sm:$0xff]
    %v453 = vld [vmem:[#allocation2 + $0xc68] sm:$0xff]
    %v454 = vld [vmem:[#allocation2 + $0xc70] sm:$0xff]
    %v455 = vld [vmem:[#allocation2 + $0xc78] sm:$0xff]
    %v456 = vld [vmem:[#allocation2 + $0xc80] sm:$0xff]
    %v457 = vld [vmem:[#allocation2 + $0xc88] sm:$0xff]
    %v458 = vld [vmem:[#allocation2 + $0xc90] sm:$0xff]
    %v459 = vld [vmem:[#allocation2 + $0xc98] sm:$0xff]
    %v460 = vld [vmem:[#allocation2 + $0xca0] sm:$0xff]
    %v461 = vld [vmem:[#allocation2 + $0xca8] sm:$0xff]
    %v462 = vld [vmem:[#allocation2 + $0xcb0] sm:$0xff]
    %v463 = vld [vmem:[#allocation2 + $0xcb8] sm:$0xff]
    %v464 = vld [vmem:[#allocation2 + $0xcc0] sm:$0xff]
    %v465 = vld [vmem:[#allocation2 + $0xcc8] sm:$0xff]
    %v466 = vld [vmem:[#allocation2 + $0xcd0] sm:$0xff]
    %v467 = vld [vmem:[#allocation2 + $0xcd8] sm:$0xff]
    %v468 = vld [vmem:[#allocation2 + $0xce0] sm:$0xff]
    %v469 = vld [vmem:[#allocation2 + $0xce8] sm:$0xff]
    %v470 = vld [vmem:[#allocation2 + $0xcf0] sm:$0xff]
    %v471 = vld [vmem:[#allocation2 + $0xcf8] sm:$0xff]
    %v472 = vld [vmem:[#allocation2 + $0xd00] sm:$0xff]
    %v473 = vld [vmem:[#allocation2 + $0xd08] sm:$0xff]
    %v474 = vld [vmem:[#allocation2 + $0xd10] sm:$0xff]
    %v475 = vld [vmem:[#allocation2 + $0xd18] sm:$0xff]
    %v476 = vld [vmem:[#allocation2 + $0xd20] sm:$0xff]
    %v477 = vld [vmem:[#allocation2 + $0xd28] sm:$0xff]
    %v478 = vld [vmem:[#allocation2 + $0xd30] sm:$0xff]
    %v479 = vld [vmem:[#allocation2 + $0xd38] sm:$0xff]
    %v480 = vld [vmem:[#allocation2 + $0xd40] sm:$0xff]
    %v481 = vld [vmem:[#allocation2 + $0xd48] sm:$0xff]
    %v482 = vld [vmem:[#allocation2 + $0xd50] sm:$0xff]
    %v483 = vld [vmem:[#allocation2 + $0xd58] sm:$0xff]
    %v484 = vld [vmem:[#allocation2 + $0xd60] sm:$0xff]
    %v485 = vld [vmem:[#allocation2 + $0xd68] sm:$0xff]
    %v486 = vld [vmem:[#allocation2 + $0xd70] sm:$0xff]
    %v487 = vld [vmem:[#allocation2 + $0xd78] sm:$0xff]
    %v488 = vld [vmem:[#allocation2 + $0xd80] sm:$0xff]
    %v489 = vld [vmem:[#allocation2 + $0xd88] sm:$0xff]
    %v490 = vld [vmem:[#allocation2 + $0xd90] sm:$0xff]
    %v491 = vld [vmem:[#allocation2 + $0xd98] sm:$0xff]
    %v492 = vld [vmem:[#allocation2 + $0xda0] sm:$0xff]
    %v493 = vld [vmem:[#allocation2 + $0xda8] sm:$0xff]
    %v494 = vld [vmem:[#allocation2 + $0xdb0] sm:$0xff]
    %v495 = vld [vmem:[#allocation2 + $0xdb8] sm:$0xff]
    %v496 = vld [vmem:[#allocation2 + $0xdc0] sm:$0xff]
    %v497 = vld [vmem:[#allocation2 + $0xdc8] sm:$0xff]
    %v498 = vld [vmem:[#allocation2 + $0xdd0] sm:$0xff]
    %v499 = vld [vmem:[#allocation2 + $0xdd8] sm:$0xff]
    %v500 = vld [vmem:[#allocation2 + $0xde0] sm:$0xff]
    %v501 = vld [vmem:[#allocation2 + $0xde8] sm:$0xff]
    %v502 = vld [vmem:[#allocation2 + $0xdf0] sm:$0xff]
    %v503 = vld [vmem:[#allocation2 + $0xdf8] sm:$0xff]
    %v504 = vld [vmem:[#allocation2 + $0xe00] sm:$0xff]
    %v505 = vld [vmem:[#allocation2 + $0xe08] sm:$0xff]
    %v506 = vld [vmem:[#allocation2 + $0xe10] sm:$0xff]
    %v507 = vld [vmem:[#allocation2 + $0xe18] sm:$0xff]
    %v508 = vld [vmem:[#allocation2 + $0xe20] sm:$0xff]
    %v509 = vld [vmem:[#allocation2 + $0xe28] sm:$0xff]
    %v510 = vld [vmem:[#allocation2 + $0xe30] sm:$0xff]
    %v511 = vld [vmem:[#allocation2 + $0xe38] sm:$0xff]
    %v512 = vld [vmem:[#allocation2 + $0xe40] sm:$0xff]
    %v513 = vld [vmem:[#allocation2 + $0xe48] sm:$0xff]
    %v514 = vld [vmem:[#allocation2 + $0xe50] sm:$0xff]
    %v515 = vld [vmem:[#allocation2 + $0xe58] sm:$0xff]
    %v516 = vld [vmem:[#allocation2 + $0xe60] sm:$0xff]
    %v517 = vld [vmem:[#allocation2 + $0xe68] sm:$0xff]
    %v518 = vld [vmem:[#allocation2 + $0xe70] sm:$0xff]
    %v519 = vld [vmem:[#allocation2 + $0xe78] sm:$0xff]
    %v520 = vld [vmem:[#allocation2 + $0xe80] sm:$0xff]
    %v521 = vld [vmem:[#allocation2 + $0xe88] sm:$0xff]
    %v522 = vld [vmem:[#allocation2 + $0xe90] sm:$0xff]
    %v523 = vld [vmem:[#allocation2 + $0xe98] sm:$0xff]
    %v524 = vld [vmem:[#allocation2 + $0xea0] sm:$0xff]
    %v525 = vld [vmem:[#allocation2 + $0xea8] sm:$0xff]
    %v526 = vld [vmem:[#allocation2 + $0xeb0] sm:$0xff]
    %v527 = vld [vmem:[#allocation2 + $0xeb8] sm:$0xff]
    %v528 = vld [vmem:[#allocation2 + $0xec0] sm:$0xff]
    %v529 = vld [vmem:[#allocation2 + $0xec8] sm:$0xff]
    %v530 = vld [vmem:[#allocation2 + $0xed0] sm:$0xff]
    %v531 = vld [vmem:[#allocation2 + $0xed8] sm:$0xff]
    %v532 = vld [vmem:[#allocation2 + $0xee0] sm:$0xff]
    %v533 = vld [vmem:[#allocation2 + $0xee8] sm:$0xff]
    %v534 = vld [vmem:[#allocation2 + $0xef0] sm:$0xff]
    %v535 = vld [vmem:[#allocation2 + $0xef8] sm:$0xff]
    %v536 = vld [vmem:[#allocation2 + $0xf00] sm:$0xff]
    %v537 = vld [vmem:[#allocation2 + $0xf08] sm:$0xff]
    %v538 = vld [vmem:[#allocation2 + $0xf10] sm:$0xff]
    %v539 = vld [vmem:[#allocation2 + $0xf18] sm:$0xff]
    %v540 = vld [vmem:[#allocation2 + $0xf20] sm:$0xff]
    %v541 = vld [vmem:[#allocation2 + $0xf28] sm:$0xff]
    %v542 = vld [vmem:[#allocation2 + $0xf30] sm:$0xff]
    %v543 = vld [vmem:[#allocation2 + $0xf38] sm:$0xff]
    %v544 = vld [vmem:[#allocation2 + $0xf40] sm:$0xff]
    %v545 = vld [vmem:[#allocation2 + $0xf48] sm:$0xff]
    %v546 = vld [vmem:[#allocation2 + $0xf50] sm:$0xff]
    %v547 = vld [vmem:[#allocation2 + $0xf58] sm:$0xff]
    %v548 = vld [vmem:[#allocation2 + $0xf60] sm:$0xff]
    %v549 = vld [vmem:[#allocation2 + $0xf68] sm:$0xff]
    %v550 = vld [vmem:[#allocation2 + $0xf70] sm:$0xff]
    %v551 = vld [vmem:[#allocation2 + $0xf78] sm:$0xff]
    %v552 = vld [vmem:[#allocation2 + $0xf80] sm:$0xff]
    %v553 = vld [vmem:[#allocation2 + $0xf88] sm:$0xff]
    %v554 = vld [vmem:[#allocation2 + $0xf90] sm:$0xff]
    %v555 = vld [vmem:[#allocation2 + $0xf98] sm:$0xff]
    %v556 = vld [vmem:[#allocation2 + $0xfa0] sm:$0xff]
    %v557 = vld [vmem:[#allocation2 + $0xfa8] sm:$0xff]
    %v558 = vld [vmem:[#allocation2 + $0xfb0] sm:$0xff]
    %v559 = vld [vmem:[#allocation2 + $0xfb8] sm:$0xff]
    %v560 = vld [vmem:[#allocation2 + $0xfc0] sm:$0xff]
    %v561 = vld [vmem:[#allocation2 + $0xfc8] sm:$0xff]
    %v562 = vld [vmem:[#allocation2 + $0xfd0] sm:$0xff]
    %v563 = vld [vmem:[#allocation2 + $0xfd8] sm:$0xff]
    %v564 = vld [vmem:[#allocation2 + $0xfe0] sm:$0xff]
    %v565 = vld [vmem:[#allocation2 + $0xfe8] sm:$0xff]
    %v566 = vld [vmem:[#allocation2 + $0xff0] sm:$0xff]
    %v567 = vld [vmem:[#allocation2 + $0xff8] sm:$0xff]
    %v568 = vld [vmem:[#allocation2 + $0x1000] sm:$0xff]
    %v569 = vld [vmem:[#allocation2 + $0x1008] sm:$0xff]
    %v570 = vld [vmem:[#allocation2 + $0x1010] sm:$0xff]
    %v571 = vld [vmem:[#allocation2 + $0x1018] sm:$0xff]
    %v572 = vld [vmem:[#allocation2 + $0x1020] sm:$0xff]
    %v573 = vld [vmem:[#allocation2 + $0x1028] sm:$0xff]
    %v574 = vld [vmem:[#allocation2 + $0x1030] sm:$0xff]
    %v575 = vld [vmem:[#allocation2 + $0x1038] sm:$0xff]
    %v576 = vld [vmem:[#allocation2 + $0x1040] sm:$0xff]
    %v577 = vld [vmem:[#allocation2 + $0x1048] sm:$0xff]
    %v578 = vld [vmem:[#allocation2 + $0x1050] sm:$0xff]
    %v579 = vld [vmem:[#allocation2 + $0x1058] sm:$0xff]
    %v580 = vld [vmem:[#allocation2 + $0x1060] sm:$0xff]
    %v581 = vld [vmem:[#allocation2 + $0x1068] sm:$0xff]
    %v582 = vld [vmem:[#allocation2 + $0x1070] sm:$0xff]
    %v583 = vld [vmem:[#allocation2 + $0x1078] sm:$0xff]
    %v584 = vld [vmem:[#allocation2 + $0x1080] sm:$0xff]
    %v585 = vld [vmem:[#allocation2 + $0x1088] sm:$0xff]
    %v586 = vld [vmem:[#allocation2 + $0x1090] sm:$0xff]
    %v587 = vld [vmem:[#allocation2 + $0x1098] sm:$0xff]
    %v588 = vld [vmem:[#allocation2 + $0x10a0] sm:$0xff]
    %v589 = vld [vmem:[#allocation2 + $0x10a8] sm:$0xff]
    %v590 = vld [vmem:[#allocation2 + $0x10b0] sm:$0xff]
    %v591 = vld [vmem:[#allocation2 + $0x10b8] sm:$0xff]
    %v592 = vld [vmem:[#allocation2 + $0x10c0] sm:$0xff]
    %v593 = vld [vmem:[#allocation2 + $0x10c8] sm:$0xff]
    %v594 = vld [vmem:[#allocation2 + $0x10d0] sm:$0xff]
    %v595 = vld [vmem:[#allocation2 + $0x10d8] sm:$0xff]
    %v596 = vld [vmem:[#allocation2 + $0x10e0] sm:$0xff]
    %v597 = vld [vmem:[#allocation2 + $0x10e8] sm:$0xff]
    %v598 = vld [vmem:[#allocation2 + $0x10f0] sm:$0xff]
    %v599 = vld [vmem:[#allocation2 + $0x10f8] sm:$0xff]
    %v600 = vld [vmem:[#allocation2 + $0x1100] sm:$0xff]
    %v601 = vld [vmem:[#allocation2 + $0x1108] sm:$0xff]
    %v602 = vld [vmem:[#allocation2 + $0x1110] sm:$0xff]
    %v603 = vld [vmem:[#allocation2 + $0x1118] sm:$0xff]
    %v604 = vld [vmem:[#allocation2 + $0x1120] sm:$0xff]
    %v605 = vld [vmem:[#allocation2 + $0x1128] sm:$0xff]
    %v606 = vld [vmem:[#allocation2 + $0x1130] sm:$0xff]
    %v607 = vld [vmem:[#allocation2 + $0x1138] sm:$0xff]
    %v608 = vld [vmem:[#allocation2 + $0x1140] sm:$0xff]
    %v609 = vld [vmem:[#allocation2 + $0x1148] sm:$0xff]
    %v610 = vld [vmem:[#allocation2 + $0x1150] sm:$0xff]
    %v611 = vld [vmem:[#allocation2 + $0x1158] sm:$0xff]
    %v612 = vld [vmem:[#allocation2 + $0x1160] sm:$0xff]
    %v613 = vld [vmem:[#allocation2 + $0x1168] sm:$0xff]
    %v614 = vld [vmem:[#allocation2 + $0x1170] sm:$0xff]
    %v615 = vld [vmem:[#allocation2 + $0x1178] sm:$0xff]
    %v616 = vld [vmem:[#allocation2 + $0x1180] sm:$0xff]
    %v617 = vld [vmem:[#allocation2 + $0x1188] sm:$0xff]
    %v618 = vld [vmem:[#allocation2 + $0x1190] sm:$0xff]
    %v619 = vld [vmem:[#allocation2 + $0x1198] sm:$0xff]
    %v620 = vld [vmem:[#allocation2 + $0x11a0] sm:$0xff]
    %v621 = vld [vmem:[#allocation2 + $0x11a8] sm:$0xff]
    %v622 = vld [vmem:[#allocation2 + $0x11b0] sm:$0xff]
    %v623 = vld [vmem:[#allocation2 + $0x11b8] sm:$0xff]
    %v624 = vld [vmem:[#allocation2 + $0x11c0] sm:$0xff]
    %v625 = vld [vmem:[#allocation2 + $0x11c8] sm:$0xff]
    %v626 = vld [vmem:[#allocation2 + $0x11d0] sm:$0xff]
    %v627 = vld [vmem:[#allocation2 + $0x11d8] sm:$0xff]
    %v628 = vld [vmem:[#allocation2 + $0x11e0] sm:$0xff]
    %v629 = vld [vmem:[#allocation2 + $0x11e8] sm:$0xff]
    %v630 = vld [vmem:[#allocation2 + $0x11f0] sm:$0xff]
    %v631 = vld [vmem:[#allocation2 + $0x11f8] sm:$0xff]
    %v632 = vld [vmem:[#allocation2 + $0x1200] sm:$0xff]
    %v633 = vld [vmem:[#allocation2 + $0x1208] sm:$0xff]
    %v634 = vld [vmem:[#allocation2 + $0x1210] sm:$0xff]
    %v635 = vld [vmem:[#allocation2 + $0x1218] sm:$0xff]
    %v636 = vld [vmem:[#allocation2 + $0x1220] sm:$0xff]
    %v637 = vld [vmem:[#allocation2 + $0x1228] sm:$0xff]
    %v638 = vld [vmem:[#allocation2 + $0x1230] sm:$0xff]
    %v639 = vld [vmem:[#allocation2 + $0x1238] sm:$0xff]
    %v640 = vld [vmem:[#allocation2 + $0x1240] sm:$0xff]
    %v641 = vld [vmem:[#allocation2 + $0x1248] sm:$0xff]
    %v642 = vld [vmem:[#allocation2 + $0x1250] sm:$0xff]
    %v643 = vld [vmem:[#allocation2 + $0x1258] sm:$0xff]
    %v644 = vld [vmem:[#allocation2 + $0x1260] sm:$0xff]
    %v645 = vld [vmem:[#allocation2 + $0x1268] sm:$0xff]
    %v646 = vld [vmem:[#allocation2 + $0x1270] sm:$0xff]
    %v647 = vld [vmem:[#allocation2 + $0x1278] sm:$0xff]
    %v648 = vld [vmem:[#allocation2 + $0x1280] sm:$0xff]
    %v649 = vld [vmem:[#allocation2 + $0x1288] sm:$0xff]
    %v650 = vld [vmem:[#allocation2 + $0x1290] sm:$0xff]
    %v651 = vld [vmem:[#allocation2 + $0x1298] sm:$0xff]
    %v652 = vld [vmem:[#allocation2 + $0x12a0] sm:$0xff]
    %v653 = vld [vmem:[#allocation2 + $0x12a8] sm:$0xff]
    %v654 = vld [vmem:[#allocation2 + $0x12b0] sm:$0xff]
    %v655 = vld [vmem:[#allocation2 + $0x12b8] sm:$0xff]
    %v656 = vld [vmem:[#allocation2 + $0x12c0] sm:$0xff]
    %v657 = vld [vmem:[#allocation2 + $0x12c8] sm:$0xff]
    %v658 = vld [vmem:[#allocation2 + $0x12d0] sm:$0xff]
    %v659 = vld [vmem:[#allocation2 + $0x12d8] sm:$0xff]
    %v660 = vld [vmem:[#allocation2 + $0x12e0] sm:$0xff]
    %v661 = vld [vmem:[#allocation2 + $0x12e8] sm:$0xff]
    %v662 = vld [vmem:[#allocation2 + $0x12f0] sm:$0xff]
    %v663 = vld [vmem:[#allocation2 + $0x12f8] sm:$0xff]
    %v664 = vld [vmem:[#allocation2 + $0x1300] sm:$0xff]
    %v665 = vld [vmem:[#allocation2 + $0x1308] sm:$0xff]
    %v666 = vld [vmem:[#allocation2 + $0x1310] sm:$0xff]
    %v667 = vld [vmem:[#allocation2 + $0x1318] sm:$0xff]
    %v668 = vld [vmem:[#allocation2 + $0x1320] sm:$0xff]
    %v669 = vld [vmem:[#allocation2 + $0x1328] sm:$0xff]
    %v670 = vld [vmem:[#allocation2 + $0x1330] sm:$0xff]
    %v671 = vld [vmem:[#allocation2 + $0x1338] sm:$0xff]
    %v672 = vld [vmem:[#allocation2 + $0x1340] sm:$0xff]
    %v673 = vld [vmem:[#allocation2 + $0x1348] sm:$0xff]
    %v674 = vld [vmem:[#allocation2 + $0x1350] sm:$0xff]
    %v675 = vld [vmem:[#allocation2 + $0x1358] sm:$0xff]
    %v676 = vld [vmem:[#allocation2 + $0x1360] sm:$0xff]
    %v677 = vld [vmem:[#allocation2 + $0x1368] sm:$0xff]
    %v678 = vld [vmem:[#allocation2 + $0x1370] sm:$0xff]
    %v679 = vld [vmem:[#allocation2 + $0x1378] sm:$0xff]
    %v680 = vld [vmem:[#allocation2 + $0x1380] sm:$0xff]
    %v681 = vld [vmem:[#allocation2 + $0x1388] sm:$0xff]
    %v682 = vld [vmem:[#allocation2 + $0x1390] sm:$0xff]
    %v683 = vld [vmem:[#allocation2 + $0x1398] sm:$0xff]
    %v684 = vld [vmem:[#allocation2 + $0x13a0] sm:$0xff]
    %v685 = vld [vmem:[#allocation2 + $0x13a8] sm:$0xff]
    %v686 = vld [vmem:[#allocation2 + $0x13b0] sm:$0xff]
    %v687 = vld [vmem:[#allocation2 + $0x13b8] sm:$0xff]
    %v688 = vld [vmem:[#allocation2 + $0x13c0] sm:$0xff]
    %v689 = vld [vmem:[#allocation2 + $0x13c8] sm:$0xff]
    %v690 = vld [vmem:[#allocation2 + $0x13d0] sm:$0xff]
    %v691 = vld [vmem:[#allocation2 + $0x13d8] sm:$0xff]
    %v692 = vld [vmem:[#allocation2 + $0x13e0] sm:$0xff]
    %v693 = vld [vmem:[#allocation2 + $0x13e8] sm:$0xff]
    %v694 = vld [vmem:[#allocation2 + $0x13f0] sm:$0xff]
    %v695 = vld [vmem:[#allocation2 + $0x13f8] sm:$0xff]
    %v696 = vld [vmem:[#allocation2 + $0x1400] sm:$0xff]
    %v697 = vld [vmem:[#allocation2 + $0x1408] sm:$0xff]
    %v698 = vld [vmem:[#allocation2 + $0x1410] sm:$0xff]
    %v699 = vld [vmem:[#allocation2 + $0x1418] sm:$0xff]
    %v700 = vld [vmem:[#allocation2 + $0x1420] sm:$0xff]
    %v701 = vld [vmem:[#allocation2 + $0x1428] sm:$0xff]
    %v702 = vld [vmem:[#allocation2 + $0x1430] sm:$0xff]
    %v703 = vld [vmem:[#allocation2 + $0x1438] sm:$0xff]
    %v704 = vld [vmem:[#allocation2 + $0x1440] sm:$0xff]
    %v705 = vld [vmem:[#allocation2 + $0x1448] sm:$0xff]
    %v706 = vld [vmem:[#allocation2 + $0x1450] sm:$0xff]
    %v707 = vld [vmem:[#allocation2 + $0x1458] sm:$0xff]
    %v708 = vld [vmem:[#allocation2 + $0x1460] sm:$0xff]
    %v709 = vld [vmem:[#allocation2 + $0x1468] sm:$0xff]
    %v710 = vld [vmem:[#allocation2 + $0x1470] sm:$0xff]
    %v711 = vld [vmem:[#allocation2 + $0x1478] sm:$0xff]
    %v712 = vld [vmem:[#allocation2 + $0x1480] sm:$0xff]
    %v713 = vld [vmem:[#allocation2 + $0x1488] sm:$0xff]
    %v714 = vld [vmem:[#allocation2 + $0x1490] sm:$0xff]
    %v715 = vld [vmem:[#allocation2 + $0x1498] sm:$0xff]
    %v716 = vld [vmem:[#allocation2 + $0x14a0] sm:$0xff]
    %v717 = vld [vmem:[#allocation2 + $0x14a8] sm:$0xff]
    %v718 = vld [vmem:[#allocation2 + $0x14b0] sm:$0xff]
    %v719 = vld [vmem:[#allocation2 + $0x14b8] sm:$0xff]
    %v720 = vld [vmem:[#allocation2 + $0x14c0] sm:$0xff]
    %v721 = vld [vmem:[#allocation2 + $0x14c8] sm:$0xff]
    %v722 = vld [vmem:[#allocation2 + $0x14d0] sm:$0xff]
    %v723 = vld [vmem:[#allocation2 + $0x14d8] sm:$0xff]
    %v724 = vld [vmem:[#allocation2 + $0x14e0] sm:$0xff]
    %v725 = vld [vmem:[#allocation2 + $0x14e8] sm:$0xff]
    %v726 = vld [vmem:[#allocation2 + $0x14f0] sm:$0xff]
    %v727 = vld [vmem:[#allocation2 + $0x14f8] sm:$0xff]
    %v728 = vld [vmem:[#allocation2 + $0x1500] sm:$0xff]
    %v729 = vld [vmem:[#allocation2 + $0x1508] sm:$0xff]
    %v730 = vld [vmem:[#allocation2 + $0x1510] sm:$0xff]
    %v731 = vld [vmem:[#allocation2 + $0x1518] sm:$0xff]
    %v732 = vld [vmem:[#allocation2 + $0x1520] sm:$0xff]
    %v733 = vld [vmem:[#allocation2 + $0x1528] sm:$0xff]
    %v734 = vld [vmem:[#allocation2 + $0x1530] sm:$0xff]
    %v735 = vld [vmem:[#allocation2 + $0x1538] sm:$0xff]
    %v736 = vld [vmem:[#allocation2 + $0x1540] sm:$0xff]
    %v737 = vld [vmem:[#allocation2 + $0x1548] sm:$0xff]
    %v738 = vld [vmem:[#allocation2 + $0x1550] sm:$0xff]
    %v739 = vld [vmem:[#allocation2 + $0x1558] sm:$0xff]
    %v740 = vld [vmem:[#allocation2 + $0x1560] sm:$0xff]
    %v741 = vld [vmem:[#allocation2 + $0x1568] sm:$0xff]
    %v742 = vld [vmem:[#allocation2 + $0x1570] sm:$0xff]
    %v743 = vld [vmem:[#allocation2 + $0x1578] sm:$0xff]
    %v744 = vld [vmem:[#allocation2 + $0x1580] sm:$0xff]
    %v745 = vld [vmem:[#allocation2 + $0x1588] sm:$0xff]
    %v746 = vld [vmem:[#allocation2 + $0x1590] sm:$0xff]
    %v747 = vld [vmem:[#allocation2 + $0x1598] sm:$0xff]
    %v748 = vld [vmem:[#allocation2 + $0x15a0] sm:$0xff]
    %v749 = vld [vmem:[#allocation2 + $0x15a8] sm:$0xff]
    %v750 = vld [vmem:[#allocation2 + $0x15b0] sm:$0xff]
    %v751 = vld [vmem:[#allocation2 + $0x15b8] sm:$0xff]
    %v752 = vld [vmem:[#allocation2 + $0x15c0] sm:$0xff]
    %v753 = vld [vmem:[#allocation2 + $0x15c8] sm:$0xff]
    %v754 = vld [vmem:[#allocation2 + $0x15d0] sm:$0xff]
    %v755 = vld [vmem:[#allocation2 + $0x15d8] sm:$0xff]
    %v756 = vld [vmem:[#allocation2 + $0x15e0] sm:$0xff]
    %v757 = vld [vmem:[#allocation2 + $0x15e8] sm:$0xff]
    %v758 = vld [vmem:[#allocation2 + $0x15f0] sm:$0xff]
    %v759 = vld [vmem:[#allocation2 + $0x15f8] sm:$0xff]
    %v760 = vld [vmem:[#allocation2 + $0x1600] sm:$0xff]
    %v761 = vld [vmem:[#allocation2 + $0x1608] sm:$0xff]
    %v762 = vld [vmem:[#allocation2 + $0x1610] sm:$0xff]
    %v763 = vld [vmem:[#allocation2 + $0x1618] sm:$0xff]
    %v764 = vld [vmem:[#allocation2 + $0x1620] sm:$0xff]
    %v765 = vld [vmem:[#allocation2 + $0x1628] sm:$0xff]
    %v766 = vld [vmem:[#allocation2 + $0x1630] sm:$0xff]
    %v767 = vld [vmem:[#allocation2 + $0x1638] sm:$0xff]
    %v768 = vld [vmem:[#allocation2 + $0x1640] sm:$0xff]
    %v769 = vld [vmem:[#allocation2 + $0x1648] sm:$0xff]
    %v770 = vld [vmem:[#allocation2 + $0x1650] sm:$0xff]
    %v771 = vld [vmem:[#allocation2 + $0x1658] sm:$0xff]
    %v772 = vld [vmem:[#allocation2 + $0x1660] sm:$0xff]
    %v773 = vld [vmem:[#allocation2 + $0x1668] sm:$0xff]
    %v774 = vld [vmem:[#allocation2 + $0x1670] sm:$0xff]
    %v775 = vld [vmem:[#allocation2 + $0x1678] sm:$0xff]
    %v776 = vld [vmem:[#allocation2 + $0x1680] sm:$0xff]
    %v777 = vld [vmem:[#allocation2 + $0x1688] sm:$0xff]
    %v778 = vld [vmem:[#allocation2 + $0x1690] sm:$0xff]
    %v779 = vld [vmem:[#allocation2 + $0x1698] sm:$0xff]
    %v780 = vld [vmem:[#allocation2 + $0x16a0] sm:$0xff]
    %v781 = vld [vmem:[#allocation2 + $0x16a8] sm:$0xff]
    %v782 = vld [vmem:[#allocation2 + $0x16b0] sm:$0xff]
    %v783 = vld [vmem:[#allocation2 + $0x16b8] sm:$0xff]
    %v784 = vld [vmem:[#allocation2 + $0x16c0] sm:$0xff]
    %v785 = vld [vmem:[#allocation2 + $0x16c8] sm:$0xff]
    %v786 = vld [vmem:[#allocation2 + $0x16d0] sm:$0xff]
    %v787 = vld [vmem:[#allocation2 + $0x16d8] sm:$0xff]
    %v788 = vld [vmem:[#allocation2 + $0x16e0] sm:$0xff]
    %v789 = vld [vmem:[#allocation2 + $0x16e8] sm:$0xff]
    %v790 = vld [vmem:[#allocation2 + $0x16f0] sm:$0xff]
    %v791 = vld [vmem:[#allocation2 + $0x16f8] sm:$0xff]
    %v792 = vld [vmem:[#allocation2 + $0x1700] sm:$0xff]
    %v793 = vld [vmem:[#allocation2 + $0x1708] sm:$0xff]
    %v794 = vld [vmem:[#allocation2 + $0x1710] sm:$0xff]
    %v795 = vld [vmem:[#allocation2 + $0x1718] sm:$0xff]
    %v796 = vld [vmem:[#allocation2 + $0x1720] sm:$0xff]
    %v797 = vld [vmem:[#allocation2 + $0x1728] sm:$0xff]
    %v798 = vld [vmem:[#allocation2 + $0x1730] sm:$0xff]
    %v799 = vld [vmem:[#allocation2 + $0x1738] sm:$0xff]
    %v800 = vld [vmem:[#allocation2 + $0x1740] sm:$0xff]
    %v801 = vld [vmem:[#allocation2 + $0x1748] sm:$0xff]
    %v802 = vld [vmem:[#allocation2 + $0x1750] sm:$0xff]
    %v803 = vld [vmem:[#allocation2 + $0x1758] sm:$0xff]
    %v804 = vld [vmem:[#allocation2 + $0x1760] sm:$0xff]
    %v805 = vld [vmem:[#allocation2 + $0x1768] sm:$0xff]
    %v806 = vld [vmem:[#allocation2 + $0x1770] sm:$0xff]
    %v807 = vld [vmem:[#allocation2 + $0x1778] sm:$0xff]
    %v808 = vld [vmem:[#allocation2 + $0x1780] sm:$0xff]
    %v809 = vld [vmem:[#allocation2 + $0x1788] sm:$0xff]
    %v810 = vld [vmem:[#allocation2 + $0x1790] sm:$0xff]
    %v811 = vld [vmem:[#allocation2 + $0x1798] sm:$0xff]
    %v812 = vld [vmem:[#allocation2 + $0x17a0] sm:$0xff]
    %v813 = vld [vmem:[#allocation2 + $0x17a8] sm:$0xff]
    %v814 = vld [vmem:[#allocation2 + $0x17b0] sm:$0xff]
    %v815 = vld [vmem:[#allocation2 + $0x17b8] sm:$0xff]
    %v816 = vld [vmem:[#allocation2 + $0x17c0] sm:$0xff]
    %v817 = vld [vmem:[#allocation2 + $0x17c8] sm:$0xff]
    %v818 = vld [vmem:[#allocation2 + $0x17d0] sm:$0xff]
    %v819 = vld [vmem:[#allocation2 + $0x17d8] sm:$0xff]
    %v820 = vld [vmem:[#allocation2 + $0x17e0] sm:$0xff]
    %v821 = vld [vmem:[#allocation2 + $0x17e8] sm:$0xff]
    %v822 = vld [vmem:[#allocation2 + $0x17f0] sm:$0xff]
    %v823 = vld [vmem:[#allocation2 + $0x17f8] sm:$0xff]
    %v824 = vld [vmem:[#allocation2 + $0x1800] sm:$0xff]
    %v825 = vld [vmem:[#allocation2 + $0x1808] sm:$0xff]
    %v826 = vld [vmem:[#allocation2 + $0x1810] sm:$0xff]
    %v827 = vld [vmem:[#allocation2 + $0x1818] sm:$0xff]
    %v828 = vld [vmem:[#allocation2 + $0x1820] sm:$0xff]
    %v829 = vld [vmem:[#allocation2 + $0x1828] sm:$0xff]
    %v830 = vld [vmem:[#allocation2 + $0x1830] sm:$0xff]
    %v831 = vld [vmem:[#allocation2 + $0x1838] sm:$0xff]
    %v832 = vld [vmem:[#allocation2 + $0x1840] sm:$0xff]
    %v833 = vld [vmem:[#allocation2 + $0x1848] sm:$0xff]
    %v834 = vld [vmem:[#allocation2 + $0x1850] sm:$0xff]
    %v835 = vld [vmem:[#allocation2 + $0x1858] sm:$0xff]
    %v836 = vld [vmem:[#allocation2 + $0x1860] sm:$0xff]
    %v837 = vld [vmem:[#allocation2 + $0x1868] sm:$0xff]
    %v838 = vld [vmem:[#allocation2 + $0x1870] sm:$0xff]
    %v839 = vld [vmem:[#allocation2 + $0x1878] sm:$0xff]
    %v840 = vld [vmem:[#allocation2 + $0x1880] sm:$0xff]
    %v841 = vld [vmem:[#allocation2 + $0x1888] sm:$0xff]
    %v842 = vld [vmem:[#allocation2 + $0x1890] sm:$0xff]
    %v843 = vld [vmem:[#allocation2 + $0x1898] sm:$0xff]
    %v844 = vld [vmem:[#allocation2 + $0x18a0] sm:$0xff]
    %v845 = vld [vmem:[#allocation2 + $0x18a8] sm:$0xff]
    %v846 = vld [vmem:[#allocation2 + $0x18b0] sm:$0xff]
    %v847 = vld [vmem:[#allocation2 + $0x18b8] sm:$0xff]
    %v848 = vld [vmem:[#allocation2 + $0x18c0] sm:$0xff]
    %v849 = vld [vmem:[#allocation2 + $0x18c8] sm:$0xff]
    %v850 = vld [vmem:[#allocation2 + $0x18d0] sm:$0xff]
    %v851 = vld [vmem:[#allocation2 + $0x18d8] sm:$0xff]
    %v852 = vld [vmem:[#allocation2 + $0x18e0] sm:$0xff]
    %v853 = vld [vmem:[#allocation2 + $0x18e8] sm:$0xff]
    %v854 = vld [vmem:[#allocation2 + $0x18f0] sm:$0xff]
    %v855 = vld [vmem:[#allocation2 + $0x18f8] sm:$0xff]
    %v856 = vld [vmem:[#allocation2 + $0x1900] sm:$0xff]
    %v857 = vld [vmem:[#allocation2 + $0x1908] sm:$0xff]
    %v858 = vld [vmem:[#allocation2 + $0x1910] sm:$0xff]
    %v859 = vld [vmem:[#allocation2 + $0x1918] sm:$0xff]
    %v860 = vld [vmem:[#allocation2 + $0x1920] sm:$0xff]
    %v861 = vld [vmem:[#allocation2 + $0x1928] sm:$0xff]
    %v862 = vld [vmem:[#allocation2 + $0x1930] sm:$0xff]
    %v863 = vld [vmem:[#allocation2 + $0x1938] sm:$0xff]
    %v864 = vld [vmem:[#allocation2 + $0x1940] sm:$0xff]
    %v865 = vld [vmem:[#allocation2 + $0x1948] sm:$0xff]
    %v866 = vld [vmem:[#allocation2 + $0x1950] sm:$0xff]
    %v867 = vld [vmem:[#allocation2 + $0x1958] sm:$0xff]
    %v868 = vld [vmem:[#allocation2 + $0x1960] sm:$0xff]
    %v869 = vld [vmem:[#allocation2 + $0x1968] sm:$0xff]
    %v870 = vld [vmem:[#allocation2 + $0x1970] sm:$0xff]
    %v871 = vld [vmem:[#allocation2 + $0x1978] sm:$0xff]
    %v872 = vld [vmem:[#allocation2 + $0x1980] sm:$0xff]
    %v873 = vld [vmem:[#allocation2 + $0x1988] sm:$0xff]
    %v874 = vld [vmem:[#allocation2 + $0x1990] sm:$0xff]
    %v875 = vld [vmem:[#allocation2 + $0x1998] sm:$0xff]
    %v876 = vld [vmem:[#allocation2 + $0x19a0] sm:$0xff]
    %v877 = vld [vmem:[#allocation2 + $0x19a8] sm:$0xff]
    %v878 = vld [vmem:[#allocation2 + $0x19b0] sm:$0xff]
    %v879 = vld [vmem:[#allocation2 + $0x19b8] sm:$0xff]
    %v880 = vld [vmem:[#allocation2 + $0x19c0] sm:$0xff]
    %v881 = vld [vmem:[#allocation2 + $0x19c8] sm:$0xff]
    %v882 = vld [vmem:[#allocation2 + $0x19d0] sm:$0xff]
    %v883 = vld [vmem:[#allocation2 + $0x19d8] sm:$0xff]
    %v884 = vld [vmem:[#allocation2 + $0x19e0] sm:$0xff]
    %v885 = vld [vmem:[#allocation2 + $0x19e8] sm:$0xff]
    %v886 = vld [vmem:[#allocation2 + $0x19f0] sm:$0xff]
    %v887 = vld [vmem:[#allocation2 + $0x19f8] sm:$0xff]
    %v888 = vld [vmem:[#allocation2 + $0x1a00] sm:$0xff]
    %v889 = vld [vmem:[#allocation2 + $0x1a08] sm:$0xff]
    %v890 = vld [vmem:[#allocation2 + $0x1a10] sm:$0xff]
    %v891 = vld [vmem:[#allocation2 + $0x1a18] sm:$0xff]
    %v892 = vld [vmem:[#allocation2 + $0x1a20] sm:$0xff]
    %v893 = vld [vmem:[#allocation2 + $0x1a28] sm:$0xff]
    %v894 = vld [vmem:[#allocation2 + $0x1a30] sm:$0xff]
    %v895 = vld [vmem:[#allocation2 + $0x1a38] sm:$0xff]
    %v896 = vld [vmem:[#allocation2 + $0x1a40] sm:$0xff]
    %v897 = vld [vmem:[#allocation2 + $0x1a48] sm:$0xff]
    %v898 = vld [vmem:[#allocation2 + $0x1a50] sm:$0xff]
    %v899 = vld [vmem:[#allocation2 + $0x1a58] sm:$0xff]
    %v900 = vld [vmem:[#allocation2 + $0x1a60] sm:$0xff]
    %v901 = vld [vmem:[#allocation2 + $0x1a68] sm:$0xff]
    %v902 = vld [vmem:[#allocation2 + $0x1a70] sm:$0xff]
    %v903 = vld [vmem:[#allocation2 + $0x1a78] sm:$0xff]
    %v904 = vld [vmem:[#allocation2 + $0x1a80] sm:$0xff]
    %v905 = vld [vmem:[#allocation2 + $0x1a88] sm:$0xff]
    %v906 = vld [vmem:[#allocation2 + $0x1a90] sm:$0xff]
    %v907 = vld [vmem:[#allocation2 + $0x1a98] sm:$0xff]
    %v908 = vld [vmem:[#allocation2 + $0x1aa0] sm:$0xff]
    %v909 = vld [vmem:[#allocation2 + $0x1aa8] sm:$0xff]
    %v910 = vld [vmem:[#allocation2 + $0x1ab0] sm:$0xff]
    %v911 = vld [vmem:[#allocation2 + $0x1ab8] sm:$0xff]
    %v912 = vld [vmem:[#allocation2 + $0x1ac0] sm:$0xff]
    %v913 = vld [vmem:[#allocation2 + $0x1ac8] sm:$0xff]
    %v914 = vld [vmem:[#allocation2 + $0x1ad0] sm:$0xff]
    %v915 = vld [vmem:[#allocation2 + $0x1ad8] sm:$0xff]
    %v916 = vld [vmem:[#allocation2 + $0x1ae0] sm:$0xff]
    %v917 = vld [vmem:[#allocation2 + $0x1ae8] sm:$0xff]
    %v918 = vld [vmem:[#allocation2 + $0x1af0] sm:$0xff]
    %v919 = vld [vmem:[#allocation2 + $0x1af8] sm:$0xff]
    %v920 = vld [vmem:[#allocation2 + $0x1b00] sm:$0xff]
    %v921 = vld [vmem:[#allocation2 + $0x1b08] sm:$0xff]
    %v922 = vld [vmem:[#allocation2 + $0x1b10] sm:$0xff]
    %v923 = vld [vmem:[#allocation2 + $0x1b18] sm:$0xff]
    %v924 = vld [vmem:[#allocation2 + $0x1b20] sm:$0xff]
    %v925 = vld [vmem:[#allocation2 + $0x1b28] sm:$0xff]
    %v926 = vld [vmem:[#allocation2 + $0x1b30] sm:$0xff]
    %v927 = vld [vmem:[#allocation2 + $0x1b38] sm:$0xff]
    %v928 = vld [vmem:[#allocation2 + $0x1b40] sm:$0xff]
    %v929 = vld [vmem:[#allocation2 + $0x1b48] sm:$0xff]
    %v930 = vld [vmem:[#allocation2 + $0x1b50] sm:$0xff]
    %v931 = vld [vmem:[#allocation2 + $0x1b58] sm:$0xff]
    %v932 = vld [vmem:[#allocation2 + $0x1b60] sm:$0xff]
    %v933 = vld [vmem:[#allocation2 + $0x1b68] sm:$0xff]
    %v934 = vld [vmem:[#allocation2 + $0x1b70] sm:$0xff]
    %v935 = vld [vmem:[#allocation2 + $0x1b78] sm:$0xff]
    %v936 = vld [vmem:[#allocation2 + $0x1b80] sm:$0xff]
    %v937 = vld [vmem:[#allocation2 + $0x1b88] sm:$0xff]
    %v938 = vld [vmem:[#allocation2 + $0x1b90] sm:$0xff]
    %v939 = vld [vmem:[#allocation2 + $0x1b98] sm:$0xff]
    %v940 = vld [vmem:[#allocation2 + $0x1ba0] sm:$0xff]
    %v941 = vld [vmem:[#allocation2 + $0x1ba8] sm:$0xff]
    %v942 = vld [vmem:[#allocation2 + $0x1bb0] sm:$0xff]
    %v943 = vld [vmem:[#allocation2 + $0x1bb8] sm:$0xff]
    %v944 = vld [vmem:[#allocation2 + $0x1bc0] sm:$0xff]
    %v945 = vld [vmem:[#allocation2 + $0x1bc8] sm:$0xff]
    %v946 = vld [vmem:[#allocation2 + $0x1bd0] sm:$0xff]
    %v947 = vld [vmem:[#allocation2 + $0x1bd8] sm:$0xff]
    %v948 = vld [vmem:[#allocation2 + $0x1be0] sm:$0xff]
    %v949 = vld [vmem:[#allocation2 + $0x1be8] sm:$0xff]
    %v950 = vld [vmem:[#allocation2 + $0x1bf0] sm:$0xff]
    %v951 = vld [vmem:[#allocation2 + $0x1bf8] sm:$0xff]
    %v952 = vld [vmem:[#allocation2 + $0x1c00] sm:$0xff]
    %v953 = vld [vmem:[#allocation2 + $0x1c08] sm:$0xff]
    %v954 = vld [vmem:[#allocation2 + $0x1c10] sm:$0xff]
    %v955 = vld [vmem:[#allocation2 + $0x1c18] sm:$0xff]
    %v956 = vld [vmem:[#allocation2 + $0x1c20] sm:$0xff]
    %v957 = vld [vmem:[#allocation2 + $0x1c28] sm:$0xff]
    %v958 = vld [vmem:[#allocation2 + $0x1c30] sm:$0xff]
    %v959 = vld [vmem:[#allocation2 + $0x1c38] sm:$0xff]
    %v960 = vld [vmem:[#allocation2 + $0x1c40] sm:$0xff]
    %v961 = vld [vmem:[#allocation2 + $0x1c48] sm:$0xff]
    %v962 = vld [vmem:[#allocation2 + $0x1c50] sm:$0xff]
    %v963 = vld [vmem:[#allocation2 + $0x1c58] sm:$0xff]
    %v964 = vld [vmem:[#allocation2 + $0x1c60] sm:$0xff]
    %v965 = vld [vmem:[#allocation2 + $0x1c68] sm:$0xff]
    %v966 = vld [vmem:[#allocation2 + $0x1c70] sm:$0xff]
    %v967 = vld [vmem:[#allocation2 + $0x1c78] sm:$0xff]
    %v968 = vld [vmem:[#allocation2 + $0x1c80] sm:$0xff]
    %v969 = vld [vmem:[#allocation2 + $0x1c88] sm:$0xff]
    %v970 = vld [vmem:[#allocation2 + $0x1c90] sm:$0xff]
    %v971 = vld [vmem:[#allocation2 + $0x1c98] sm:$0xff]
    %v972 = vld [vmem:[#allocation2 + $0x1ca0] sm:$0xff]
    %v973 = vld [vmem:[#allocation2 + $0x1ca8] sm:$0xff]
    %v974 = vld [vmem:[#allocation2 + $0x1cb0] sm:$0xff]
    %v975 = vld [vmem:[#allocation2 + $0x1cb8] sm:$0xff]
    %v976 = vld [vmem:[#allocation2 + $0x1cc0] sm:$0xff]
    %v977 = vld [vmem:[#allocation2 + $0x1cc8] sm:$0xff]
    %v978 = vld [vmem:[#allocation2 + $0x1cd0] sm:$0xff]
    %v979 = vld [vmem:[#allocation2 + $0x1cd8] sm:$0xff]
    %v980 = vld [vmem:[#allocation2 + $0x1ce0] sm:$0xff]
    %v981 = vld [vmem:[#allocation2 + $0x1ce8] sm:$0xff]
    %v982 = vld [vmem:[#allocation2 + $0x1cf0] sm:$0xff]
    %v983 = vld [vmem:[#allocation2 + $0x1cf8] sm:$0xff]
    %v984 = vld [vmem:[#allocation2 + $0x1d00] sm:$0xff]
    %v985 = vld [vmem:[#allocation2 + $0x1d08] sm:$0xff]
    %v986 = vld [vmem:[#allocation2 + $0x1d10] sm:$0xff]
    %v987 = vld [vmem:[#allocation2 + $0x1d18] sm:$0xff]
    %v988 = vld [vmem:[#allocation2 + $0x1d20] sm:$0xff]
    %v989 = vld [vmem:[#allocation2 + $0x1d28] sm:$0xff]
    %v990 = vld [vmem:[#allocation2 + $0x1d30] sm:$0xff]
    %v991 = vld [vmem:[#allocation2 + $0x1d38] sm:$0xff]
    %v992 = vld [vmem:[#allocation2 + $0x1d40] sm:$0xff]
    %v993 = vld [vmem:[#allocation2 + $0x1d48] sm:$0xff]
    %v994 = vld [vmem:[#allocation2 + $0x1d50] sm:$0xff]
    %v995 = vld [vmem:[#allocation2 + $0x1d58] sm:$0xff]
    %v996 = vld [vmem:[#allocation2 + $0x1d60] sm:$0xff]
    %v997 = vld [vmem:[#allocation2 + $0x1d68] sm:$0xff]
    %v998 = vld [vmem:[#allocation2 + $0x1d70] sm:$0xff]
    %v999 = vld [vmem:[#allocation2 + $0x1d78] sm:$0xff]
    %v1000 = vld [vmem:[#allocation2 + $0x1d80] sm:$0xff]
    %v1001 = vld [vmem:[#allocation2 + $0x1d88] sm:$0xff]
    %v1002 = vld [vmem:[#allocation2 + $0x1d90] sm:$0xff]
    %v1003 = vld [vmem:[#allocation2 + $0x1d98] sm:$0xff]
    %v1004 = vld [vmem:[#allocation2 + $0x1da0] sm:$0xff]
    %v1005 = vld [vmem:[#allocation2 + $0x1da8] sm:$0xff]
    %v1006 = vld [vmem:[#allocation2 + $0x1db0] sm:$0xff]
    %v1007 = vld [vmem:[#allocation2 + $0x1db8] sm:$0xff]
    %v1008 = vld [vmem:[#allocation2 + $0x1dc0] sm:$0xff]
    %v1009 = vld [vmem:[#allocation2 + $0x1dc8] sm:$0xff]
    %v1010 = vld [vmem:[#allocation2 + $0x1dd0] sm:$0xff]
    %v1011 = vld [vmem:[#allocation2 + $0x1dd8] sm:$0xff]
    %v1012 = vld [vmem:[#allocation2 + $0x1de0] sm:$0xff]
    %v1013 = vld [vmem:[#allocation2 + $0x1de8] sm:$0xff]
    %v1014 = vld [vmem:[#allocation2 + $0x1df0] sm:$0xff]
    %v1015 = vld [vmem:[#allocation2 + $0x1df8] sm:$0xff]
    %v1016 = vld [vmem:[#allocation2 + $0x1e00] sm:$0xff]
    %v1017 = vld [vmem:[#allocation2 + $0x1e08] sm:$0xff]
    %v1018 = vld [vmem:[#allocation2 + $0x1e10] sm:$0xff]
    %v1019 = vld [vmem:[#allocation2 + $0x1e18] sm:$0xff]
    %v1020 = vld [vmem:[#allocation2 + $0x1e20] sm:$0xff]
    %v1021 = vld [vmem:[#allocation2 + $0x1e28] sm:$0xff]
    %v1022 = vld [vmem:[#allocation2 + $0x1e30] sm:$0xff]
    %v1023 = vld [vmem:[#allocation2 + $0x1e38] sm:$0xff]
    %v1024 = vld [vmem:[#allocation2 + $0x1e40] sm:$0xff]
    %v1025 = vld [vmem:[#allocation2 + $0x1e48] sm:$0xff]
    %v1026 = vld [vmem:[#allocation2 + $0x1e50] sm:$0xff]
    %v1027 = vld [vmem:[#allocation2 + $0x1e58] sm:$0xff]
    %v1028 = vld [vmem:[#allocation2 + $0x1e60] sm:$0xff]
    %v1029 = vld [vmem:[#allocation2 + $0x1e68] sm:$0xff]
    %v1030 = vld [vmem:[#allocation2 + $0x1e70] sm:$0xff]
    %v1031 = vld [vmem:[#allocation2 + $0x1e78] sm:$0xff]
    %v1032 = vld [vmem:[#allocation2 + $0x1e80] sm:$0xff]
    %v1033 = vld [vmem:[#allocation2 + $0x1e88] sm:$0xff]
    %v1034 = vld [vmem:[#allocation2 + $0x1e90] sm:$0xff]
    %v1035 = vld [vmem:[#allocation2 + $0x1e98] sm:$0xff]
    %v1036 = vld [vmem:[#allocation2 + $0x1ea0] sm:$0xff]
    %v1037 = vld [vmem:[#allocation2 + $0x1ea8] sm:$0xff]
    %v1038 = vld [vmem:[#allocation2 + $0x1eb0] sm:$0xff]
    %v1039 = vld [vmem:[#allocation2 + $0x1eb8] sm:$0xff]
    %v1040 = vld [vmem:[#allocation2 + $0x1ec0] sm:$0xff]
    %v1041 = vld [vmem:[#allocation2 + $0x1ec8] sm:$0xff]
    %v1042 = vld [vmem:[#allocation2 + $0x1ed0] sm:$0xff]
    %v1043 = vld [vmem:[#allocation2 + $0x1ed8] sm:$0xff]
    %v1044 = vld [vmem:[#allocation2 + $0x1ee0] sm:$0xff]
    %v1045 = vld [vmem:[#allocation2 + $0x1ee8] sm:$0xff]
    %v1046 = vld [vmem:[#allocation2 + $0x1ef0] sm:$0xff]
    %v1047 = vld [vmem:[#allocation2 + $0x1ef8] sm:$0xff]
    %v1048 = vld [vmem:[#allocation2 + $0x1f00] sm:$0xff]
    %v1049 = vld [vmem:[#allocation2 + $0x1f08] sm:$0xff]
    %v1050 = vld [vmem:[#allocation2 + $0x1f10] sm:$0xff]
    %v1051 = vld [vmem:[#allocation2 + $0x1f18] sm:$0xff]
    %v1052 = vld [vmem:[#allocation2 + $0x1f20] sm:$0xff]
    %v1053 = vld [vmem:[#allocation2 + $0x1f28] sm:$0xff]
    %v1054 = vld [vmem:[#allocation2 + $0x1f30] sm:$0xff]
    %v1055 = vld [vmem:[#allocation2 + $0x1f38] sm:$0xff]
    %v1056 = vld [vmem:[#allocation2 + $0x1f40] sm:$0xff]
    %v1057 = vld [vmem:[#allocation2 + $0x1f48] sm:$0xff]
    %v1058 = vld [vmem:[#allocation2 + $0x1f50] sm:$0xff]
    %v1059 = vld [vmem:[#allocation2 + $0x1f58] sm:$0xff]
    %v1060 = vld [vmem:[#allocation2 + $0x1f60] sm:$0xff]
    %v1061 = vld [vmem:[#allocation2 + $0x1f68] sm:$0xff]
    %v1062 = vld [vmem:[#allocation2 + $0x1f70] sm:$0xff]
    %v1063 = vld [vmem:[#allocation2 + $0x1f78] sm:$0xff]
    %v1064 = vld [vmem:[#allocation2 + $0x1f80] sm:$0xff]
    %v1065 = vld [vmem:[#allocation2 + $0x1f88] sm:$0xff]
    %v1066 = vld [vmem:[#allocation2 + $0x1f90] sm:$0xff]
    %v1067 = vld [vmem:[#allocation2 + $0x1f98] sm:$0xff]
    %v1068 = vld [vmem:[#allocation2 + $0x1fa0] sm:$0xff]
    %v1069 = vld [vmem:[#allocation2 + $0x1fa8] sm:$0xff]
    %v1070 = vld [vmem:[#allocation2 + $0x1fb0] sm:$0xff]
    %v1071 = vld [vmem:[#allocation2 + $0x1fb8] sm:$0xff]
    %v1072 = vld [vmem:[#allocation2 + $0x1fc0] sm:$0xff]
    %v1073 = vld [vmem:[#allocation2 + $0x1fc8] sm:$0xff]
    %v1074 = vld [vmem:[#allocation2 + $0x1fd0] sm:$0xff]
    %v1075 = vld [vmem:[#allocation2 + $0x1fd8] sm:$0xff]
    %v1076 = vld [vmem:[#allocation2 + $0x1fe0] sm:$0xff]
    %v1077 = vld [vmem:[#allocation2 + $0x1fe8] sm:$0xff]
    %v1078 = vld [vmem:[#allocation2 + $0x1ff0] sm:$0xff]
    %v1079 = vld [vmem:[#allocation2 + $0x1ff8] sm:$0xff]
    %v1080 = vld [vmem:[#allocation2 + $0x2000] sm:$0xff]
    %v1081 = vld [vmem:[#allocation2 + $0x2008] sm:$0xff]
    %v1082 = vld [vmem:[#allocation2 + $0x2010] sm:$0xff]
    %v1083 = vld [vmem:[#allocation2 + $0x2018] sm:$0xff]
    %v1084 = vld [vmem:[#allocation2 + $0x2020] sm:$0xff]
    %v1085 = vld [vmem:[#allocation2 + $0x2028] sm:$0xff]
    %v1086 = vld [vmem:[#allocation2 + $0x2030] sm:$0xff]
    %v1087 = vld [vmem:[#allocation2 + $0x2038] sm:$0xff]
    %v1088 = vld [vmem:[#allocation2 + $0x2040] sm:$0xff]
    %v1089 = vld [vmem:[#allocation2 + $0x2048] sm:$0xff]
    %v1090 = vld [vmem:[#allocation2 + $0x2050] sm:$0xff]
    %v1091 = vld [vmem:[#allocation2 + $0x2058] sm:$0xff]
    %v1092 = vld [vmem:[#allocation2 + $0x2060] sm:$0xff]
    %v1093 = vld [vmem:[#allocation2 + $0x2068] sm:$0xff]
    %v1094 = vld [vmem:[#allocation2 + $0x2070] sm:$0xff]
    %v1095 = vld [vmem:[#allocation2 + $0x2078] sm:$0xff]
    %v1096 = vld [vmem:[#allocation2 + $0x2080] sm:$0xff]
    %v1097 = vld [vmem:[#allocation2 + $0x2088] sm:$0xff]
    %v1098 = vld [vmem:[#allocation2 + $0x2090] sm:$0xff]
    %v1099 = vld [vmem:[#allocation2 + $0x2098] sm:$0xff]
    %v1100 = vld [vmem:[#allocation2 + $0x20a0] sm:$0xff]
    %v1101 = vld [vmem:[#allocation2 + $0x20a8] sm:$0xff]
    %v1102 = vld [vmem:[#allocation2 + $0x20b0] sm:$0xff]
    %v1103 = vld [vmem:[#allocation2 + $0x20b8] sm:$0xff]
    %v1104 = vld [vmem:[#allocation2 + $0x20c0] sm:$0xff]
    %v1105 = vld [vmem:[#allocation2 + $0x20c8] sm:$0xff]
    %v1106 = vld [vmem:[#allocation2 + $0x20d0] sm:$0xff]
    %v1107 = vld [vmem:[#allocation2 + $0x20d8] sm:$0xff]
    %v1108 = vld [vmem:[#allocation2 + $0x20e0] sm:$0xff]
    %v1109 = vld [vmem:[#allocation2 + $0x20e8] sm:$0xff]
    %v1110 = vld [vmem:[#allocation2 + $0x20f0] sm:$0xff]
    %v1111 = vld [vmem:[#allocation2 + $0x20f8] sm:$0xff]
    %v1112 = vld [vmem:[#allocation2 + $0x2100] sm:$0xff]
    %v1113 = vld [vmem:[#allocation2 + $0x2108] sm:$0xff]
    %v1114 = vld [vmem:[#allocation2 + $0x2110] sm:$0xff]
    %v1115 = vld [vmem:[#allocation2 + $0x2118] sm:$0xff]
    %v1116 = vld [vmem:[#allocation2 + $0x2120] sm:$0xff]
    %v1117 = vld [vmem:[#allocation2 + $0x2128] sm:$0xff]
    %v1118 = vld [vmem:[#allocation2 + $0x2130] sm:$0xff]
    %v1119 = vld [vmem:[#allocation2 + $0x2138] sm:$0xff]
    %v1120 = vld [vmem:[#allocation2 + $0x2140] sm:$0xff]
    %v1121 = vld [vmem:[#allocation2 + $0x2148] sm:$0xff]
    %v1122 = vld [vmem:[#allocation2 + $0x2150] sm:$0xff]
    %v1123 = vld [vmem:[#allocation2 + $0x2158] sm:$0xff]
    %v1124 = vld [vmem:[#allocation2 + $0x2160] sm:$0xff]
    %v1125 = vld [vmem:[#allocation2 + $0x2168] sm:$0xff]
    %v1126 = vld [vmem:[#allocation2 + $0x2170] sm:$0xff]
    %v1127 = vld [vmem:[#allocation2 + $0x2178] sm:$0xff]
    %v1128 = vld [vmem:[#allocation2 + $0x2180] sm:$0xff]
    %v1129 = vld [vmem:[#allocation2 + $0x2188] sm:$0xff]
    %v1130 = vld [vmem:[#allocation2 + $0x2190] sm:$0xff]
    %v1131 = vld [vmem:[#allocation2 + $0x2198] sm:$0xff]
    %v1132 = vld [vmem:[#allocation2 + $0x21a0] sm:$0xff]
    %v1133 = vld [vmem:[#allocation2 + $0x21a8] sm:$0xff]
    %v1134 = vld [vmem:[#allocation2 + $0x21b0] sm:$0xff]
    %v1135 = vld [vmem:[#allocation2 + $0x21b8] sm:$0xff]
    %v1136 = vld [vmem:[#allocation2 + $0x21c0] sm:$0xff]
    %v1137 = vld [vmem:[#allocation2 + $0x21c8] sm:$0xff]
    %v1138 = vld [vmem:[#allocation2 + $0x21d0] sm:$0xff]
    %v1139 = vld [vmem:[#allocation2 + $0x21d8] sm:$0xff]
    %v1140 = vld [vmem:[#allocation2 + $0x21e0] sm:$0xff]
    %v1141 = vld [vmem:[#allocation2 + $0x21e8] sm:$0xff]
    %v1142 = vld [vmem:[#allocation2 + $0x21f0] sm:$0xff]
    %v1143 = vld [vmem:[#allocation2 + $0x21f8] sm:$0xff]
    %v1144 = vld [vmem:[#allocation2 + $0x2200] sm:$0xff]
    %v1145 = vld [vmem:[#allocation2 + $0x2208] sm:$0xff]
    %v1146 = vld [vmem:[#allocation2 + $0x2210] sm:$0xff]
    %v1147 = vld [vmem:[#allocation2 + $0x2218] sm:$0xff]
    %v1148 = vld [vmem:[#allocation2 + $0x2220] sm:$0xff]
    %v1149 = vld [vmem:[#allocation2 + $0x2228] sm:$0xff]
    %v1150 = vld [vmem:[#allocation2 + $0x2230] sm:$0xff]
    %v1151 = vld [vmem:[#allocation2 + $0x2238] sm:$0xff]
    %v1152 = vld [vmem:[#allocation2 + $0x2240] sm:$0xff]
    %v1153 = vld [vmem:[#allocation2 + $0x2248] sm:$0xff]
    %v1154 = vld [vmem:[#allocation2 + $0x2250] sm:$0xff]
    %v1155 = vld [vmem:[#allocation2 + $0x2258] sm:$0xff]
    %v1156 = vld [vmem:[#allocation2 + $0x2260] sm:$0xff]
    %v1157 = vld [vmem:[#allocation2 + $0x2268] sm:$0xff]
    %v1158 = vld [vmem:[#allocation2 + $0x2270] sm:$0xff]
    %v1159 = vld [vmem:[#allocation2 + $0x2278] sm:$0xff]
    %v1160 = vld [vmem:[#allocation2 + $0x2280] sm:$0xff]
    %v1161 = vld [vmem:[#allocation2 + $0x2288] sm:$0xff]
    %v1162 = vld [vmem:[#allocation2 + $0x2290] sm:$0xff]
    %v1163 = vld [vmem:[#allocation2 + $0x2298] sm:$0xff]
    %v1164 = vld [vmem:[#allocation2 + $0x22a0] sm:$0xff]
    %v1165 = vld [vmem:[#allocation2 + $0x22a8] sm:$0xff]
    %v1166 = vld [vmem:[#allocation2 + $0x22b0] sm:$0xff]
    %v1167 = vld [vmem:[#allocation2 + $0x22b8] sm:$0xff]
    %v1168 = vld [vmem:[#allocation2 + $0x22c0] sm:$0xff]
    %v1169 = vld [vmem:[#allocation2 + $0x22c8] sm:$0xff]
    %v1170 = vld [vmem:[#allocation2 + $0x22d0] sm:$0xff]
    %v1171 = vld [vmem:[#allocation2 + $0x22d8] sm:$0xff]
    %v1172 = vld [vmem:[#allocation2 + $0x22e0] sm:$0xff]
    %v1173 = vld [vmem:[#allocation2 + $0x22e8] sm:$0xff]
    %v1174 = vld [vmem:[#allocation2 + $0x22f0] sm:$0xff]
    %v1175 = vld [vmem:[#allocation2 + $0x22f8] sm:$0xff]
    %v1176 = vld [vmem:[#allocation2 + $0x2300] sm:$0xff]
    %v1177 = vld [vmem:[#allocation2 + $0x2308] sm:$0xff]
    %v1178 = vld [vmem:[#allocation2 + $0x2310] sm:$0xff]
    %v1179 = vld [vmem:[#allocation2 + $0x2318] sm:$0xff]
    %v1180 = vld [vmem:[#allocation2 + $0x2320] sm:$0xff]
    %v1181 = vld [vmem:[#allocation2 + $0x2328] sm:$0xff]
    %v1182 = vld [vmem:[#allocation2 + $0x2330] sm:$0xff]
    %v1183 = vld [vmem:[#allocation2 + $0x2338] sm:$0xff]
    %v1184 = vld [vmem:[#allocation2 + $0x2340] sm:$0xff]
    %v1185 = vld [vmem:[#allocation2 + $0x2348] sm:$0xff]
    %v1186 = vld [vmem:[#allocation2 + $0x2350] sm:$0xff]
    %v1187 = vld [vmem:[#allocation2 + $0x2358] sm:$0xff]
    %v1188 = vld [vmem:[#allocation2 + $0x2360] sm:$0xff]
    %v1189 = vld [vmem:[#allocation2 + $0x2368] sm:$0xff]
    %v1190 = vld [vmem:[#allocation2 + $0x2370] sm:$0xff]
    %v1191 = vld [vmem:[#allocation2 + $0x2378] sm:$0xff]
    %v1192 = vld [vmem:[#allocation2 + $0x2380] sm:$0xff]
    %v1193 = vld [vmem:[#allocation2 + $0x2388] sm:$0xff]
    %v1194 = vld [vmem:[#allocation2 + $0x2390] sm:$0xff]
    %v1195 = vld [vmem:[#allocation2 + $0x2398] sm:$0xff]
    %v1196 = vld [vmem:[#allocation2 + $0x23a0] sm:$0xff]
    %v1197 = vld [vmem:[#allocation2 + $0x23a8] sm:$0xff]
    %v1198 = vld [vmem:[#allocation2 + $0x23b0] sm:$0xff]
    %v1199 = vld [vmem:[#allocation2 + $0x23b8] sm:$0xff]
    %v1200 = vld [vmem:[#allocation2 + $0x23c0] sm:$0xff]
    %v1201 = vld [vmem:[#allocation2 + $0x23c8] sm:$0xff]
    %v1202 = vld [vmem:[#allocation2 + $0x23d0] sm:$0xff]
    %v1203 = vld [vmem:[#allocation2 + $0x23d8] sm:$0xff]
    %v1204 = vld [vmem:[#allocation2 + $0x23e0] sm:$0xff]
    %v1205 = vld [vmem:[#allocation2 + $0x23e8] sm:$0xff]
    %v1206 = vld [vmem:[#allocation2 + $0x23f0] sm:$0xff]
    %v1207 = vld [vmem:[#allocation2 + $0x23f8] sm:$0xff]
    %v1208 = vld [vmem:[#allocation2 + $0x2400] sm:$0xff]
    %v1209 = vld [vmem:[#allocation2 + $0x2408] sm:$0xff]
    %v1210 = vld [vmem:[#allocation2 + $0x2410] sm:$0xff]
    %v1211 = vld [vmem:[#allocation2 + $0x2418] sm:$0xff]
    %v1212 = vld [vmem:[#allocation2 + $0x2420] sm:$0xff]
    %v1213 = vld [vmem:[#allocation2 + $0x2428] sm:$0xff]
    %v1214 = vld [vmem:[#allocation2 + $0x2430] sm:$0xff]
    %v1215 = vld [vmem:[#allocation2 + $0x2438] sm:$0xff]
    %v1216 = vld [vmem:[#allocation2 + $0x2440] sm:$0xff]
    %v1217 = vld [vmem:[#allocation2 + $0x2448] sm:$0xff]
    %v1218 = vld [vmem:[#allocation2 + $0x2450] sm:$0xff]
    %v1219 = vld [vmem:[#allocation2 + $0x2458] sm:$0xff]
    %v1220 = vld [vmem:[#allocation2 + $0x2460] sm:$0xff]
    %v1221 = vld [vmem:[#allocation2 + $0x2468] sm:$0xff]
    %v1222 = vld [vmem:[#allocation2 + $0x2470] sm:$0xff]
    %v1223 = vld [vmem:[#allocation2 + $0x2478] sm:$0xff]
    %v1224 = vld [vmem:[#allocation2 + $0x2480] sm:$0xff]
    %v1225 = vld [vmem:[#allocation2 + $0x2488] sm:$0xff]
    %v1226 = vld [vmem:[#allocation2 + $0x2490] sm:$0xff]
    %v1227 = vld [vmem:[#allocation2 + $0x2498] sm:$0xff]
    %v1228 = vld [vmem:[#allocation2 + $0x24a0] sm:$0xff]
    %v1229 = vld [vmem:[#allocation2 + $0x24a8] sm:$0xff]
    %v1230 = vld [vmem:[#allocation2 + $0x24b0] sm:$0xff]
    %v1231 = vld [vmem:[#allocation2 + $0x24b8] sm:$0xff]
    %v1232 = vld [vmem:[#allocation2 + $0x24c0] sm:$0xff]
    %v1233 = vld [vmem:[#allocation2 + $0x24c8] sm:$0xff]
    %v1234 = vld [vmem:[#allocation2 + $0x24d0] sm:$0xff]
    %v1235 = vld [vmem:[#allocation2 + $0x24d8] sm:$0xff]
    %v1236 = vld [vmem:[#allocation2 + $0x24e0] sm:$0xff]
    %v1237 = vld [vmem:[#allocation2 + $0x24e8] sm:$0xff]
    %v1238 = vld [vmem:[#allocation2 + $0x24f0] sm:$0xff]
    %v1239 = vld [vmem:[#allocation2 + $0x24f8] sm:$0xff]
    %v1240 = vld [vmem:[#allocation2 + $0x2500] sm:$0xff]
    %v1241 = vld [vmem:[#allocation2 + $0x2508] sm:$0xff]
    %v1242 = vld [vmem:[#allocation2 + $0x2510] sm:$0xff]
    %v1243 = vld [vmem:[#allocation2 + $0x2518] sm:$0xff]
    %v1244 = vld [vmem:[#allocation2 + $0x2520] sm:$0xff]
    %v1245 = vld [vmem:[#allocation2 + $0x2528] sm:$0xff]
    %v1246 = vld [vmem:[#allocation2 + $0x2530] sm:$0xff]
    %v1247 = vld [vmem:[#allocation2 + $0x2538] sm:$0xff]
    %v1248 = vld [vmem:[#allocation2 + $0x2540] sm:$0xff]
    %v1249 = vld [vmem:[#allocation2 + $0x2548] sm:$0xff]
    %v1250 = vld [vmem:[#allocation2 + $0x2550] sm:$0xff]
    %v1251 = vld [vmem:[#allocation2 + $0x2558] sm:$0xff]
    %v1252 = vld [vmem:[#allocation2 + $0x2560] sm:$0xff]
    %v1253 = vld [vmem:[#allocation2 + $0x2568] sm:$0xff]
    %v1254 = vld [vmem:[#allocation2 + $0x2570] sm:$0xff]
    %v1255 = vld [vmem:[#allocation2 + $0x2578] sm:$0xff]
    %v1256 = vld [vmem:[#allocation2 + $0x2580] sm:$0xff]
    %v1257 = vld [vmem:[#allocation2 + $0x2588] sm:$0xff]
    %v1258 = vld [vmem:[#allocation2 + $0x2590] sm:$0xff]
    %v1259 = vld [vmem:[#allocation2 + $0x2598] sm:$0xff]
    %v1260 = vld [vmem:[#allocation2 + $0x25a0] sm:$0xff]
    %v1261 = vld [vmem:[#allocation2 + $0x25a8] sm:$0xff]
    %v1262 = vld [vmem:[#allocation2 + $0x25b0] sm:$0xff]
    %v1263 = vld [vmem:[#allocation2 + $0x25b8] sm:$0xff]
    %v1264 = vld [vmem:[#allocation2 + $0x25c0] sm:$0xff]
    %v1265 = vld [vmem:[#allocation2 + $0x25c8] sm:$0xff]
    %v1266 = vld [vmem:[#allocation2 + $0x25d0] sm:$0xff]
    %v1267 = vld [vmem:[#allocation2 + $0x25d8] sm:$0xff]
    %v1268 = vld [vmem:[#allocation2 + $0x25e0] sm:$0xff]
    %v1269 = vld [vmem:[#allocation2 + $0x25e8] sm:$0xff]
    %v1270 = vld [vmem:[#allocation2 + $0x25f0] sm:$0xff]
    %v1271 = vld [vmem:[#allocation2 + $0x25f8] sm:$0xff]
    %v1272 = vld [vmem:[#allocation2 + $0x2600] sm:$0xff]
    %v1273 = vld [vmem:[#allocation2 + $0x2608] sm:$0xff]
    %v1274 = vld [vmem:[#allocation2 + $0x2610] sm:$0xff]
    %v1275 = vld [vmem:[#allocation2 + $0x2618] sm:$0xff]
    %v1276 = vld [vmem:[#allocation2 + $0x2620] sm:$0xff]
    %v1277 = vld [vmem:[#allocation2 + $0x2628] sm:$0xff]
    %v1278 = vld [vmem:[#allocation2 + $0x2630] sm:$0xff]
    %v1279 = vld [vmem:[#allocation2 + $0x2638] sm:$0xff]
    %v1280 = vld [vmem:[#allocation2 + $0x2640] sm:$0xff]
    %v1281 = vld [vmem:[#allocation2 + $0x2648] sm:$0xff]
    %v1282 = vld [vmem:[#allocation2 + $0x2650] sm:$0xff]
    %v1283 = vld [vmem:[#allocation2 + $0x2658] sm:$0xff]
    %v1284 = vld [vmem:[#allocation2 + $0x2660] sm:$0xff]
    %v1285 = vld [vmem:[#allocation2 + $0x2668] sm:$0xff]
    %v1286 = vld [vmem:[#allocation2 + $0x2670] sm:$0xff]
    %v1287 = vld [vmem:[#allocation2 + $0x2678] sm:$0xff]
    %v1288 = vld [vmem:[#allocation2 + $0x2680] sm:$0xff]
    %v1289 = vld [vmem:[#allocation2 + $0x2688] sm:$0xff]
    %v1290 = vld [vmem:[#allocation2 + $0x2690] sm:$0xff]
    %v1291 = vld [vmem:[#allocation2 + $0x2698] sm:$0xff]
    %v1292 = vld [vmem:[#allocation2 + $0x26a0] sm:$0xff]
    %v1293 = vld [vmem:[#allocation2 + $0x26a8] sm:$0xff]
    %v1294 = vld [vmem:[#allocation2 + $0x26b0] sm:$0xff]
    %v1295 = vld [vmem:[#allocation2 + $0x26b8] sm:$0xff]
    %v1296 = vld [vmem:[#allocation2 + $0x26c0] sm:$0xff]
    %v1297 = vld [vmem:[#allocation2 + $0x26c8] sm:$0xff]
    %v1298 = vld [vmem:[#allocation2 + $0x26d0] sm:$0xff]
    %v1299 = vld [vmem:[#allocation2 + $0x26d8] sm:$0xff]
    %v1300 = vld [vmem:[#allocation2 + $0x26e0] sm:$0xff]
    %v1301 = vld [vmem:[#allocation2 + $0x26e8] sm:$0xff]
    %v1302 = vld [vmem:[#allocation2 + $0x26f0] sm:$0xff]
    %v1303 = vld [vmem:[#allocation2 + $0x26f8] sm:$0xff]
    %v1304 = vld [vmem:[#allocation2 + $0x2700] sm:$0xff]
    %v1305 = vld [vmem:[#allocation2 + $0x2708] sm:$0xff]
    %v1306 = vld [vmem:[#allocation2 + $0x2710] sm:$0xff]
    %v1307 = vld [vmem:[#allocation2 + $0x2718] sm:$0xff]
    %v1308 = vld [vmem:[#allocation2 + $0x2720] sm:$0xff]
    %v1309 = vld [vmem:[#allocation2 + $0x2728] sm:$0xff]
    %v1310 = vld [vmem:[#allocation2 + $0x2730] sm:$0xff]
    %v1311 = vld [vmem:[#allocation2 + $0x2738] sm:$0xff]
    %v1312 = vld [vmem:[#allocation2 + $0x2740] sm:$0xff]
    %v1313 = vld [vmem:[#allocation2 + $0x2748] sm:$0xff]
    %v1314 = vld [vmem:[#allocation2 + $0x2750] sm:$0xff]
    %v1315 = vld [vmem:[#allocation2 + $0x2758] sm:$0xff]
    %v1316 = vld [vmem:[#allocation2 + $0x2760] sm:$0xff]
    %v1317 = vld [vmem:[#allocation2 + $0x2768] sm:$0xff]
    %v1318 = vld [vmem:[#allocation2 + $0x2770] sm:$0xff]
    %v1319 = vld [vmem:[#allocation2 + $0x2778] sm:$0xff]
    %v1320 = vld [vmem:[#allocation2 + $0x2780] sm:$0xff]
    %v1321 = vld [vmem:[#allocation2 + $0x2788] sm:$0xff]
    %v1322 = vld [vmem:[#allocation2 + $0x2790] sm:$0xff]
    %v1323 = vld [vmem:[#allocation2 + $0x2798] sm:$0xff]
    %v1324 = vld [vmem:[#allocation2 + $0x27a0] sm:$0xff]
    %v1325 = vld [vmem:[#allocation2 + $0x27a8] sm:$0xff]
    %v1326 = vld [vmem:[#allocation2 + $0x27b0] sm:$0xff]
    %v1327 = vld [vmem:[#allocation2 + $0x27b8] sm:$0xff]
    %v1328 = vld [vmem:[#allocation2 + $0x27c0] sm:$0xff]
    %v1329 = vld [vmem:[#allocation2 + $0x27c8] sm:$0xff]
    %v1330 = vld [vmem:[#allocation2 + $0x27d0] sm:$0xff]
    %v1331 = vld [vmem:[#allocation2 + $0x27d8] sm:$0xff]
    %v1332 = vld [vmem:[#allocation2 + $0x27e0] sm:$0xff]
    %v1333 = vld [vmem:[#allocation2 + $0x27e8] sm:$0xff]
    %v1334 = vld [vmem:[#allocation2 + $0x27f0] sm:$0xff]
    %v1335 = vld [vmem:[#allocation2 + $0x27f8] sm:$0xff]
    %v1336 = vld [vmem:[#allocation2 + $0x2800] sm:$0xff]
    %v1337 = vld [vmem:[#allocation2 + $0x2808] sm:$0xff]
    %v1338 = vld [vmem:[#allocation2 + $0x2810] sm:$0xff]
    %v1339 = vld [vmem:[#allocation2 + $0x2818] sm:$0xff]
    %v1340 = vld [vmem:[#allocation2 + $0x2820] sm:$0xff]
    %v1341 = vld [vmem:[#allocation2 + $0x2828] sm:$0xff]
    %v1342 = vld [vmem:[#allocation2 + $0x2830] sm:$0xff]
    %v1343 = vld [vmem:[#allocation2 + $0x2838] sm:$0xff]
    %v1344 = vld [vmem:[#allocation2 + $0x2840] sm:$0xff]
    %v1345 = vld [vmem:[#allocation2 + $0x2848] sm:$0xff]
    %v1346 = vld [vmem:[#allocation2 + $0x2850] sm:$0xff]
    %v1347 = vld [vmem:[#allocation2 + $0x2858] sm:$0xff]
    %v1348 = vld [vmem:[#allocation2 + $0x2860] sm:$0xff]
    %v1349 = vld [vmem:[#allocation2 + $0x2868] sm:$0xff]
    %v1350 = vld [vmem:[#allocation2 + $0x2870] sm:$0xff]
    %v1351 = vld [vmem:[#allocation2 + $0x2878] sm:$0xff]
    %v1352 = vld [vmem:[#allocation2 + $0x2880] sm:$0xff]
    %v1353 = vld [vmem:[#allocation2 + $0x2888] sm:$0xff]
    %v1354 = vld [vmem:[#allocation2 + $0x2890] sm:$0xff]
    %v1355 = vld [vmem:[#allocation2 + $0x2898] sm:$0xff]
    %v1356 = vld [vmem:[#allocation2 + $0x28a0] sm:$0xff]
    %v1357 = vld [vmem:[#allocation2 + $0x28a8] sm:$0xff]
    %v1358 = vld [vmem:[#allocation2 + $0x28b0] sm:$0xff]
    %v1359 = vld [vmem:[#allocation2 + $0x28b8] sm:$0xff]
    %v1360 = vld [vmem:[#allocation2 + $0x28c0] sm:$0xff]
    %v1361 = vld [vmem:[#allocation2 + $0x28c8] sm:$0xff]
    %v1362 = vld [vmem:[#allocation2 + $0x28d0] sm:$0xff]
    %v1363 = vld [vmem:[#allocation2 + $0x28d8] sm:$0xff]
    %v1364 = vld [vmem:[#allocation2 + $0x28e0] sm:$0xff]
    %v1365 = vld [vmem:[#allocation2 + $0x28e8] sm:$0xff]
    %v1366 = vld [vmem:[#allocation2 + $0x28f0] sm:$0xff]
    %v1367 = vld [vmem:[#allocation2 + $0x28f8] sm:$0xff]
    %v1368 = vld [vmem:[#allocation2 + $0x2900] sm:$0xff]
    %v1369 = vld [vmem:[#allocation2 + $0x2908] sm:$0xff]
    %v1370 = vld [vmem:[#allocation2 + $0x2910] sm:$0xff]
    %v1371 = vld [vmem:[#allocation2 + $0x2918] sm:$0xff]
    %v1372 = vld [vmem:[#allocation2 + $0x2920] sm:$0xff]
    %v1373 = vld [vmem:[#allocation2 + $0x2928] sm:$0xff]
    %v1374 = vld [vmem:[#allocation2 + $0x2930] sm:$0xff]
    %v1375 = vld [vmem:[#allocation2 + $0x2938] sm:$0xff]
    %v1376 = vld [vmem:[#allocation2 + $0x2940] sm:$0xff]
    %v1377 = vld [vmem:[#allocation2 + $0x2948] sm:$0xff]
    %v1378 = vld [vmem:[#allocation2 + $0x2950] sm:$0xff]
    %v1379 = vld [vmem:[#allocation2 + $0x2958] sm:$0xff]
    %v1380 = vld [vmem:[#allocation2 + $0x2960] sm:$0xff]
    %v1381 = vld [vmem:[#allocation2 + $0x2968] sm:$0xff]
    %v1382 = vld [vmem:[#allocation2 + $0x2970] sm:$0xff]
    %v1383 = vld [vmem:[#allocation2 + $0x2978] sm:$0xff]
    %v1384 = vld [vmem:[#allocation2 + $0x2980] sm:$0xff]
    %v1385 = vld [vmem:[#allocation2 + $0x2988] sm:$0xff]
    %v1386 = vld [vmem:[#allocation2 + $0x2990] sm:$0xff]
    %v1387 = vld [vmem:[#allocation2 + $0x2998] sm:$0xff]
    %v1388 = vld [vmem:[#allocation2 + $0x29a0] sm:$0xff]
    %v1389 = vld [vmem:[#allocation2 + $0x29a8] sm:$0xff]
    %v1390 = vld [vmem:[#allocation2 + $0x29b0] sm:$0xff]
    %v1391 = vld [vmem:[#allocation2 + $0x29b8] sm:$0xff]
    %v1392 = vld [vmem:[#allocation2 + $0x29c0] sm:$0xff]
    %v1393 = vld [vmem:[#allocation2 + $0x29c8] sm:$0xff]
    %v1394 = vld [vmem:[#allocation2 + $0x29d0] sm:$0xff]
    %v1395 = vld [vmem:[#allocation2 + $0x29d8] sm:$0xff]
    %v1396 = vld [vmem:[#allocation2 + $0x29e0] sm:$0xff]
    %v1397 = vld [vmem:[#allocation2 + $0x29e8] sm:$0xff]
    %v1398 = vld [vmem:[#allocation2 + $0x29f0] sm:$0xff]
    %v1399 = vld [vmem:[#allocation2 + $0x29f8] sm:$0xff]
    %v1400 = vld [vmem:[#allocation2 + $0x2a00] sm:$0xff]
    %v1401 = vld [vmem:[#allocation2 + $0x2a08] sm:$0xff]
    %v1402 = vld [vmem:[#allocation2 + $0x2a10] sm:$0xff]
    %v1403 = vld [vmem:[#allocation2 + $0x2a18] sm:$0xff]
    %v1404 = vld [vmem:[#allocation2 + $0x2a20] sm:$0xff]
    %v1405 = vld [vmem:[#allocation2 + $0x2a28] sm:$0xff]
    %v1406 = vld [vmem:[#allocation2 + $0x2a30] sm:$0xff]
    %v1407 = vld [vmem:[#allocation2 + $0x2a38] sm:$0xff]
    %v1408 = vld [vmem:[#allocation2 + $0x2a40] sm:$0xff]
    %v1409 = vld [vmem:[#allocation2 + $0x2a48] sm:$0xff]
    %v1410 = vld [vmem:[#allocation2 + $0x2a50] sm:$0xff]
    %v1411 = vld [vmem:[#allocation2 + $0x2a58] sm:$0xff]
    %v1412 = vld [vmem:[#allocation2 + $0x2a60] sm:$0xff]
    %v1413 = vld [vmem:[#allocation2 + $0x2a68] sm:$0xff]
    %v1414 = vld [vmem:[#allocation2 + $0x2a70] sm:$0xff]
    %v1415 = vld [vmem:[#allocation2 + $0x2a78] sm:$0xff]
    %v1416 = vld [vmem:[#allocation2 + $0x2a80] sm:$0xff]
    %v1417 = vld [vmem:[#allocation2 + $0x2a88] sm:$0xff]
    %v1418 = vld [vmem:[#allocation2 + $0x2a90] sm:$0xff]
    %v1419 = vld [vmem:[#allocation2 + $0x2a98] sm:$0xff]
    %v1420 = vld [vmem:[#allocation2 + $0x2aa0] sm:$0xff]
    %v1421 = vld [vmem:[#allocation2 + $0x2aa8] sm:$0xff]
    %v1422 = vld [vmem:[#allocation2 + $0x2ab0] sm:$0xff]
    %v1423 = vld [vmem:[#allocation2 + $0x2ab8] sm:$0xff]
    %v1424 = vld [vmem:[#allocation2 + $0x2ac0] sm:$0xff]
    %v1425 = vld [vmem:[#allocation2 + $0x2ac8] sm:$0xff]
    %v1426 = vld [vmem:[#allocation2 + $0x2ad0] sm:$0xff]
    %v1427 = vld [vmem:[#allocation2 + $0x2ad8] sm:$0xff]
    %v1428 = vld [vmem:[#allocation2 + $0x2ae0] sm:$0xff]
    %v1429 = vld [vmem:[#allocation2 + $0x2ae8] sm:$0xff]
    %v1430 = vld [vmem:[#allocation2 + $0x2af0] sm:$0xff]
    %v1431 = vld [vmem:[#allocation2 + $0x2af8] sm:$0xff]
    %v1432 = vld [vmem:[#allocation2 + $0x2b00] sm:$0xff]
    %v1433 = vld [vmem:[#allocation2 + $0x2b08] sm:$0xff]
    %v1434 = vld [vmem:[#allocation2 + $0x2b10] sm:$0xff]
    %v1435 = vld [vmem:[#allocation2 + $0x2b18] sm:$0xff]
    %v1436 = vld [vmem:[#allocation2 + $0x2b20] sm:$0xff]
    %v1437 = vld [vmem:[#allocation2 + $0x2b28] sm:$0xff]
    %v1438 = vld [vmem:[#allocation2 + $0x2b30] sm:$0xff]
    %v1439 = vld [vmem:[#allocation2 + $0x2b38] sm:$0xff]
    %v1440 = vld [vmem:[#allocation2 + $0x2b40] sm:$0xff]
    %v1441 = vld [vmem:[#allocation2 + $0x2b48] sm:$0xff]
    %v1442 = vld [vmem:[#allocation2 + $0x2b50] sm:$0xff]
    %v1443 = vld [vmem:[#allocation2 + $0x2b58] sm:$0xff]
    %v1444 = vld [vmem:[#allocation2 + $0x2b60] sm:$0xff]
    %v1445 = vld [vmem:[#allocation2 + $0x2b68] sm:$0xff]
    %v1446 = vld [vmem:[#allocation2 + $0x2b70] sm:$0xff]
    %v1447 = vld [vmem:[#allocation2 + $0x2b78] sm:$0xff]
    %v1448 = vld [vmem:[#allocation2 + $0x2b80] sm:$0xff]
    %v1449 = vld [vmem:[#allocation2 + $0x2b88] sm:$0xff]
    %v1450 = vld [vmem:[#allocation2 + $0x2b90] sm:$0xff]
    %v1451 = vld [vmem:[#allocation2 + $0x2b98] sm:$0xff]
    %v1452 = vld [vmem:[#allocation2 + $0x2ba0] sm:$0xff]
    %v1453 = vld [vmem:[#allocation2 + $0x2ba8] sm:$0xff]
    %v1454 = vld [vmem:[#allocation2 + $0x2bb0] sm:$0xff]
    %v1455 = vld [vmem:[#allocation2 + $0x2bb8] sm:$0xff]
    %v1456 = vld [vmem:[#allocation2 + $0x2bc0] sm:$0xff]
    %v1457 = vld [vmem:[#allocation2 + $0x2bc8] sm:$0xff]
    %v1458 = vld [vmem:[#allocation2 + $0x2bd0] sm:$0xff]
    %v1459 = vld [vmem:[#allocation2 + $0x2bd8] sm:$0xff]
    %v1460 = vld [vmem:[#allocation2 + $0x2be0] sm:$0xff]
    %v1461 = vld [vmem:[#allocation2 + $0x2be8] sm:$0xff]
    %v1462 = vld [vmem:[#allocation2 + $0x2bf0] sm:$0xff]
    %v1463 = vld [vmem:[#allocation2 + $0x2bf8] sm:$0xff]
    %v1464 = vld [vmem:[#allocation2 + $0x2c00] sm:$0xff]
    %v1465 = vld [vmem:[#allocation2 + $0x2c08] sm:$0xff]
    %v1466 = vld [vmem:[#allocation2 + $0x2c10] sm:$0xff]
    %v1467 = vld [vmem:[#allocation2 + $0x2c18] sm:$0xff]
    %v1468 = vld [vmem:[#allocation2 + $0x2c20] sm:$0xff]
    %v1469 = vld [vmem:[#allocation2 + $0x2c28] sm:$0xff]
    %v1470 = vld [vmem:[#allocation2 + $0x2c30] sm:$0xff]
    %v1471 = vld [vmem:[#allocation2 + $0x2c38] sm:$0xff]
    %v1472 = vld [vmem:[#allocation2 + $0x2c40] sm:$0xff]
    %v1473 = vld [vmem:[#allocation2 + $0x2c48] sm:$0xff]
    %v1474 = vld [vmem:[#allocation2 + $0x2c50] sm:$0xff]
    %v1475 = vld [vmem:[#allocation2 + $0x2c58] sm:$0xff]
    %v1476 = vld [vmem:[#allocation2 + $0x2c60] sm:$0xff]
    %v1477 = vld [vmem:[#allocation2 + $0x2c68] sm:$0xff]
    %v1478 = vld [vmem:[#allocation2 + $0x2c70] sm:$0xff]
    %v1479 = vld [vmem:[#allocation2 + $0x2c78] sm:$0xff]
    %v1480 = vld [vmem:[#allocation2 + $0x2c80] sm:$0xff]
    %v1481 = vld [vmem:[#allocation2 + $0x2c88] sm:$0xff]
    %v1482 = vld [vmem:[#allocation2 + $0x2c90] sm:$0xff]
    %v1483 = vld [vmem:[#allocation2 + $0x2c98] sm:$0xff]
    %v1484 = vld [vmem:[#allocation2 + $0x2ca0] sm:$0xff]
    %v1485 = vld [vmem:[#allocation2 + $0x2ca8] sm:$0xff]
    %v1486 = vld [vmem:[#allocation2 + $0x2cb0] sm:$0xff]
    %v1487 = vld [vmem:[#allocation2 + $0x2cb8] sm:$0xff]
    %v1488 = vld [vmem:[#allocation2 + $0x2cc0] sm:$0xff]
    %v1489 = vld [vmem:[#allocation2 + $0x2cc8] sm:$0xff]
    %v1490 = vld [vmem:[#allocation2 + $0x2cd0] sm:$0xff]
    %v1491 = vld [vmem:[#allocation2 + $0x2cd8] sm:$0xff]
    %v1492 = vld [vmem:[#allocation2 + $0x2ce0] sm:$0xff]
    %v1493 = vld [vmem:[#allocation2 + $0x2ce8] sm:$0xff]
    %v1494 = vld [vmem:[#allocation2 + $0x2cf0] sm:$0xff]
    %v1495 = vld [vmem:[#allocation2 + $0x2cf8] sm:$0xff]
    %v1496 = vld [vmem:[#allocation2 + $0x2d00] sm:$0xff]
    %v1497 = vld [vmem:[#allocation2 + $0x2d08] sm:$0xff]
    %v1498 = vld [vmem:[#allocation2 + $0x2d10] sm:$0xff]
    %v1499 = vld [vmem:[#allocation2 + $0x2d18] sm:$0xff]
    %v1500 = vld [vmem:[#allocation2 + $0x2d20] sm:$0xff]
    %v1501 = vld [vmem:[#allocation2 + $0x2d28] sm:$0xff]
    %v1502 = vld [vmem:[#allocation2 + $0x2d30] sm:$0xff]
    %v1503 = vld [vmem:[#allocation2 + $0x2d38] sm:$0xff]
    %v1504 = vld [vmem:[#allocation2 + $0x2d40] sm:$0xff]
    %v1505 = vld [vmem:[#allocation2 + $0x2d48] sm:$0xff]
    %v1506 = vld [vmem:[#allocation2 + $0x2d50] sm:$0xff]
    %v1507 = vld [vmem:[#allocation2 + $0x2d58] sm:$0xff]
    %v1508 = vld [vmem:[#allocation2 + $0x2d60] sm:$0xff]
    %v1509 = vld [vmem:[#allocation2 + $0x2d68] sm:$0xff]
    %v1510 = vld [vmem:[#allocation2 + $0x2d70] sm:$0xff]
    %v1511 = vld [vmem:[#allocation2 + $0x2d78] sm:$0xff]
    %v1512 = vld [vmem:[#allocation2 + $0x2d80] sm:$0xff]
    %v1513 = vld [vmem:[#allocation2 + $0x2d88] sm:$0xff]
    %v1514 = vld [vmem:[#allocation2 + $0x2d90] sm:$0xff]
    %v1515 = vld [vmem:[#allocation2 + $0x2d98] sm:$0xff]
    %v1516 = vld [vmem:[#allocation2 + $0x2da0] sm:$0xff]
    %v1517 = vld [vmem:[#allocation2 + $0x2da8] sm:$0xff]
    %v1518 = vld [vmem:[#allocation2 + $0x2db0] sm:$0xff]
    %v1519 = vld [vmem:[#allocation2 + $0x2db8] sm:$0xff]
    %v1520 = vld [vmem:[#allocation2 + $0x2dc0] sm:$0xff]
    %v1521 = vld [vmem:[#allocation2 + $0x2dc8] sm:$0xff]
    %v1522 = vld [vmem:[#allocation2 + $0x2dd0] sm:$0xff]
    %v1523 = vld [vmem:[#allocation2 + $0x2dd8] sm:$0xff]
    %v1524 = vld [vmem:[#allocation2 + $0x2de0] sm:$0xff]
    %v1525 = vld [vmem:[#allocation2 + $0x2de8] sm:$0xff]
    %v1526 = vld [vmem:[#allocation2 + $0x2df0] sm:$0xff]
    %v1527 = vld [vmem:[#allocation2 + $0x2df8] sm:$0xff]
    %v1528 = vld [vmem:[#allocation2 + $0x2e00] sm:$0xff]
    %v1529 = vld [vmem:[#allocation2 + $0x2e08] sm:$0xff]
    %v1530 = vld [vmem:[#allocation2 + $0x2e10] sm:$0xff]
    %v1531 = vld [vmem:[#allocation2 + $0x2e18] sm:$0xff]
    %v1532 = vld [vmem:[#allocation2 + $0x2e20] sm:$0xff]
    %v1533 = vld [vmem:[#allocation2 + $0x2e28] sm:$0xff]
    %v1534 = vld [vmem:[#allocation2 + $0x2e30] sm:$0xff]
    %v1535 = vld [vmem:[#allocation2 + $0x2e38] sm:$0xff]
    %v1536 = vld [vmem:[#allocation2 + $0x2e40] sm:$0xff]
    %v1537 = vld [vmem:[#allocation2 + $0x2e48] sm:$0xff]
    %v1538 = vld [vmem:[#allocation2 + $0x2e50] sm:$0xff]
    %v1539 = vld [vmem:[#allocation2 + $0x2e58] sm:$0xff]
    %v1540 = vld [vmem:[#allocation2 + $0x2e60] sm:$0xff]
    %v1541 = vld [vmem:[#allocation2 + $0x2e68] sm:$0xff]
    %v1542 = vld [vmem:[#allocation2 + $0x2e70] sm:$0xff]
    %v1543 = vld [vmem:[#allocation2 + $0x2e78] sm:$0xff]
    %v1544 = vld [vmem:[#allocation2 + $0x2e80] sm:$0xff]
    %v1545 = vld [vmem:[#allocation2 + $0x2e88] sm:$0xff]
    %v1546 = vld [vmem:[#allocation2 + $0x2e90] sm:$0xff]
    %v1547 = vld [vmem:[#allocation2 + $0x2e98] sm:$0xff]
    %v1548 = vld [vmem:[#allocation2 + $0x2ea0] sm:$0xff]
    %v1549 = vld [vmem:[#allocation2 + $0x2ea8] sm:$0xff]
    %v1550 = vld [vmem:[#allocation2 + $0x2eb0] sm:$0xff]
    %v1551 = vld [vmem:[#allocation2 + $0x2eb8] sm:$0xff]
    %v1552 = vld [vmem:[#allocation2 + $0x2ec0] sm:$0xff]
    %v1553 = vld [vmem:[#allocation2 + $0x2ec8] sm:$0xff]
    %v1554 = vld [vmem:[#allocation2 + $0x2ed0] sm:$0xff]
    %v1555 = vld [vmem:[#allocation2 + $0x2ed8] sm:$0xff]
    %v1556 = vld [vmem:[#allocation2 + $0x2ee0] sm:$0xff]
    %v1557 = vld [vmem:[#allocation2 + $0x2ee8] sm:$0xff]
    %v1558 = vld [vmem:[#allocation2 + $0x2ef0] sm:$0xff]
    %v1559 = vld [vmem:[#allocation2 + $0x2ef8] sm:$0xff]
    %v1560 = vld [vmem:[#allocation2 + $0x2f00] sm:$0xff]
    %v1561 = vld [vmem:[#allocation2 + $0x2f08] sm:$0xff]
    %v1562 = vld [vmem:[#allocation2 + $0x2f10] sm:$0xff]
    %v1563 = vld [vmem:[#allocation2 + $0x2f18] sm:$0xff]
    %v1564 = vld [vmem:[#allocation2 + $0x2f20] sm:$0xff]
    %v1565 = vld [vmem:[#allocation2 + $0x2f28] sm:$0xff]
    %v1566 = vld [vmem:[#allocation2 + $0x2f30] sm:$0xff]
    %v1567 = vld [vmem:[#allocation2 + $0x2f38] sm:$0xff]
    %v1568 = vld [vmem:[#allocation2 + $0x2f40] sm:$0xff]
    %v1569 = vld [vmem:[#allocation2 + $0x2f48] sm:$0xff]
    %v1570 = vld [vmem:[#allocation2 + $0x2f50] sm:$0xff]
    %v1571 = vld [vmem:[#allocation2 + $0x2f58] sm:$0xff]
    %v1572 = vld [vmem:[#allocation2 + $0x2f60] sm:$0xff]
    %v1573 = vld [vmem:[#allocation2 + $0x2f68] sm:$0xff]
    %v1574 = vld [vmem:[#allocation2 + $0x2f70] sm:$0xff]
    %v1575 = vld [vmem:[#allocation2 + $0x2f78] sm:$0xff]
    %v1576 = vld [vmem:[#allocation2 + $0x2f80] sm:$0xff]
    %v1577 = vld [vmem:[#allocation2 + $0x2f88] sm:$0xff]
    %v1578 = vld [vmem:[#allocation2 + $0x2f90] sm:$0xff]
    %v1579 = vld [vmem:[#allocation2 + $0x2f98] sm:$0xff]
    %v1580 = vld [vmem:[#allocation2 + $0x2fa0] sm:$0xff]
    %v1581 = vld [vmem:[#allocation2 + $0x2fa8] sm:$0xff]
    %v1582 = vld [vmem:[#allocation2 + $0x2fb0] sm:$0xff]
    %v1583 = vld [vmem:[#allocation2 + $0x2fb8] sm:$0xff]
    %v1584 = vld [vmem:[#allocation2 + $0x2fc0] sm:$0xff]
    %v1585 = vld [vmem:[#allocation2 + $0x2fc8] sm:$0xff]
    %v1586 = vld [vmem:[#allocation2 + $0x2fd0] sm:$0xff]
    %v1587 = vld [vmem:[#allocation2 + $0x2fd8] sm:$0xff]
    %v1588 = vld [vmem:[#allocation2 + $0x2fe0] sm:$0xff]
    %v1589 = vld [vmem:[#allocation2 + $0x2fe8] sm:$0xff]
    %v1590 = vld [vmem:[#allocation2 + $0x2ff0] sm:$0xff]
    %v1591 = vld [vmem:[#allocation2 + $0x2ff8] sm:$0xff]
    %v1592 = vld [vmem:[#allocation2 + $0x3000] sm:$0xff]
    %v1593 = vld [vmem:[#allocation2 + $0x3008] sm:$0xff]
    %v1594 = vld [vmem:[#allocation2 + $0x3010] sm:$0xff]
    %v1595 = vld [vmem:[#allocation2 + $0x3018] sm:$0xff]
    %v1596 = vld [vmem:[#allocation2 + $0x3020] sm:$0xff]
    %v1597 = vld [vmem:[#allocation2 + $0x3028] sm:$0xff]
    %v1598 = vld [vmem:[#allocation2 + $0x3030] sm:$0xff]
    %v1599 = vld [vmem:[#allocation2 + $0x3038] sm:$0xff]
    %v1600 = vld [vmem:[#allocation2 + $0x3040] sm:$0xff]
    %v1601 = vld [vmem:[#allocation2 + $0x3048] sm:$0xff]
    %v1602 = vld [vmem:[#allocation2 + $0x3050] sm:$0xff]
    %v1603 = vld [vmem:[#allocation2 + $0x3058] sm:$0xff]
    %v1604 = vld [vmem:[#allocation2 + $0x3060] sm:$0xff]
    %v1605 = vld [vmem:[#allocation2 + $0x3068] sm:$0xff]
    %v1606 = vld [vmem:[#allocation2 + $0x3070] sm:$0xff]
    %v1607 = vld [vmem:[#allocation2 + $0x3078] sm:$0xff]
    %v1608 = vld [vmem:[#allocation2 + $0x3080] sm:$0xff]
    %v1609 = vld [vmem:[#allocation2 + $0x3088] sm:$0xff]
    %v1610 = vld [vmem:[#allocation2 + $0x3090] sm:$0xff]
    %v1611 = vld [vmem:[#allocation2 + $0x3098] sm:$0xff]
    %v1612 = vld [vmem:[#allocation2 + $0x30a0] sm:$0xff]
    %v1613 = vld [vmem:[#allocation2 + $0x30a8] sm:$0xff]
    %v1614 = vld [vmem:[#allocation2 + $0x30b0] sm:$0xff]
    %v1615 = vld [vmem:[#allocation2 + $0x30b8] sm:$0xff]
    %v1616 = vld [vmem:[#allocation2 + $0x30c0] sm:$0xff]
    %v1617 = vld [vmem:[#allocation2 + $0x30c8] sm:$0xff]
    %v1618 = vld [vmem:[#allocation2 + $0x30d0] sm:$0xff]
    %v1619 = vld [vmem:[#allocation2 + $0x30d8] sm:$0xff]
    %v1620 = vld [vmem:[#allocation2 + $0x30e0] sm:$0xff]
    %v1621 = vld [vmem:[#allocation2 + $0x30e8] sm:$0xff]
    %v1622 = vld [vmem:[#allocation2 + $0x30f0] sm:$0xff]
    %v1623 = vld [vmem:[#allocation2 + $0x30f8] sm:$0xff]
    %v1624 = vld [vmem:[#allocation2 + $0x3100] sm:$0xff]
    %v1625 = vld [vmem:[#allocation2 + $0x3108] sm:$0xff]
    %v1626 = vld [vmem:[#allocation2 + $0x3110] sm:$0xff]
    %v1627 = vld [vmem:[#allocation2 + $0x3118] sm:$0xff]
    %v1628 = vld [vmem:[#allocation2 + $0x3120] sm:$0xff]
    %v1629 = vld [vmem:[#allocation2 + $0x3128] sm:$0xff]
    %v1630 = vld [vmem:[#allocation2 + $0x3130] sm:$0xff]
    %v1631 = vld [vmem:[#allocation2 + $0x3138] sm:$0xff]
    %v1632 = vld [vmem:[#allocation2 + $0x3140] sm:$0xff]
    %v1633 = vld [vmem:[#allocation2 + $0x3148] sm:$0xff]
    %v1634 = vld [vmem:[#allocation2 + $0x3150] sm:$0xff]
    %v1635 = vld [vmem:[#allocation2 + $0x3158] sm:$0xff]
    %v1636 = vld [vmem:[#allocation2 + $0x3160] sm:$0xff]
    %v1637 = vld [vmem:[#allocation2 + $0x3168] sm:$0xff]
    %v1638 = vld [vmem:[#allocation2 + $0x3170] sm:$0xff]
    %v1639 = vld [vmem:[#allocation2 + $0x3178] sm:$0xff]
    %v1640 = vld [vmem:[#allocation2 + $0x3180] sm:$0xff]
    %v1641 = vld [vmem:[#allocation2 + $0x3188] sm:$0xff]
    %v1642 = vld [vmem:[#allocation2 + $0x3190] sm:$0xff]
    %v1643 = vld [vmem:[#allocation2 + $0x3198] sm:$0xff]
    %v1644 = vld [vmem:[#allocation2 + $0x31a0] sm:$0xff]
    %v1645 = vld [vmem:[#allocation2 + $0x31a8] sm:$0xff]
    %v1646 = vld [vmem:[#allocation2 + $0x31b0] sm:$0xff]
    %v1647 = vld [vmem:[#allocation2 + $0x31b8] sm:$0xff]
    %v1648 = vld [vmem:[#allocation2 + $0x31c0] sm:$0xff]
    %v1649 = vld [vmem:[#allocation2 + $0x31c8] sm:$0xff]
    %v1650 = vld [vmem:[#allocation2 + $0x31d0] sm:$0xff]
    %v1651 = vld [vmem:[#allocation2 + $0x31d8] sm:$0xff]
    %v1652 = vld [vmem:[#allocation2 + $0x31e0] sm:$0xff]
    %v1653 = vld [vmem:[#allocation2 + $0x31e8] sm:$0xff]
    %v1654 = vld [vmem:[#allocation2 + $0x31f0] sm:$0xff]
    %v1655 = vld [vmem:[#allocation2 + $0x31f8] sm:$0xff]
    %v1656 = vld [vmem:[#allocation2 + $0x3200] sm:$0xff]
    %v1657 = vld [vmem:[#allocation2 + $0x3208] sm:$0xff]
    %v1658 = vld [vmem:[#allocation2 + $0x3210] sm:$0xff]
    %v1659 = vld [vmem:[#allocation2 + $0x3218] sm:$0xff]
    %v1660 = vld [vmem:[#allocation2 + $0x3220] sm:$0xff]
    %v1661 = vld [vmem:[#allocation2 + $0x3228] sm:$0xff]
    %v1662 = vld [vmem:[#allocation2 + $0x3230] sm:$0xff]
    %v1663 = vld [vmem:[#allocation2 + $0x3238] sm:$0xff]
    %v1664 = vld [vmem:[#allocation2 + $0x3240] sm:$0xff]
    %v1665 = vld [vmem:[#allocation2 + $0x3248] sm:$0xff]
    %v1666 = vld [vmem:[#allocation2 + $0x3250] sm:$0xff]
    %v1667 = vld [vmem:[#allocation2 + $0x3258] sm:$0xff]
    %v1668 = vld [vmem:[#allocation2 + $0x3260] sm:$0xff]
    %v1669 = vld [vmem:[#allocation2 + $0x3268] sm:$0xff]
    %v1670 = vld [vmem:[#allocation2 + $0x3270] sm:$0xff]
    %v1671 = vld [vmem:[#allocation2 + $0x3278] sm:$0xff]
    %v1672 = vld [vmem:[#allocation2 + $0x3280] sm:$0xff]
    %v1673 = vld [vmem:[#allocation2 + $0x3288] sm:$0xff]
    %v1674 = vld [vmem:[#allocation2 + $0x3290] sm:$0xff]
    %v1675 = vld [vmem:[#allocation2 + $0x3298] sm:$0xff]
    %v1676 = vld [vmem:[#allocation2 + $0x32a0] sm:$0xff]
    %v1677 = vld [vmem:[#allocation2 + $0x32a8] sm:$0xff]
    %v1678 = vld [vmem:[#allocation2 + $0x32b0] sm:$0xff]
    %v1679 = vld [vmem:[#allocation2 + $0x32b8] sm:$0xff]
    %v1680 = vld [vmem:[#allocation2 + $0x32c0] sm:$0xff]
    %v1681 = vld [vmem:[#allocation2 + $0x32c8] sm:$0xff]
    %v1682 = vld [vmem:[#allocation2 + $0x32d0] sm:$0xff]
    %v1683 = vld [vmem:[#allocation2 + $0x32d8] sm:$0xff]
    %v1684 = vld [vmem:[#allocation2 + $0x32e0] sm:$0xff]
    %v1685 = vld [vmem:[#allocation2 + $0x32e8] sm:$0xff]
    %v1686 = vld [vmem:[#allocation2 + $0x32f0] sm:$0xff]
    %v1687 = vld [vmem:[#allocation2 + $0x32f8] sm:$0xff]
    %v1688 = vld [vmem:[#allocation2 + $0x3300] sm:$0xff]
    %v1689 = vld [vmem:[#allocation2 + $0x3308] sm:$0xff]
    %v1690 = vld [vmem:[#allocation2 + $0x3310] sm:$0xff]
    %v1691 = vld [vmem:[#allocation2 + $0x3318] sm:$0xff]
    %v1692 = vld [vmem:[#allocation2 + $0x3320] sm:$0xff]
    %v1693 = vld [vmem:[#allocation2 + $0x3328] sm:$0xff]
    %v1694 = vld [vmem:[#allocation2 + $0x3330] sm:$0xff]
    %v1695 = vld [vmem:[#allocation2 + $0x3338] sm:$0xff]
    %v1696 = vld [vmem:[#allocation2 + $0x3340] sm:$0xff]
    %v1697 = vld [vmem:[#allocation2 + $0x3348] sm:$0xff]
    %v1698 = vld [vmem:[#allocation2 + $0x3350] sm:$0xff]
    %v1699 = vld [vmem:[#allocation2 + $0x3358] sm:$0xff]
    %v1700 = vld [vmem:[#allocation2 + $0x3360] sm:$0xff]
    %v1701 = vld [vmem:[#allocation2 + $0x3368] sm:$0xff]
    %v1702 = vld [vmem:[#allocation2 + $0x3370] sm:$0xff]
    %v1703 = vld [vmem:[#allocation2 + $0x3378] sm:$0xff]
    %v1704 = vld [vmem:[#allocation2 + $0x3380] sm:$0xff]
    %v1705 = vld [vmem:[#allocation2 + $0x3388] sm:$0xff]
    %v1706 = vld [vmem:[#allocation2 + $0x3390] sm:$0xff]
    %v1707 = vld [vmem:[#allocation2 + $0x3398] sm:$0xff]
    %v1708 = vld [vmem:[#allocation2 + $0x33a0] sm:$0xff]
    %v1709 = vld [vmem:[#allocation2 + $0x33a8] sm:$0xff]
    %v1710 = vld [vmem:[#allocation2 + $0x33b0] sm:$0xff]
    %v1711 = vld [vmem:[#allocation2 + $0x33b8] sm:$0xff]
    %v1712 = vld [vmem:[#allocation2 + $0x33c0] sm:$0xff]
    %v1713 = vld [vmem:[#allocation2 + $0x33c8] sm:$0xff]
    %v1714 = vld [vmem:[#allocation2 + $0x33d0] sm:$0xff]
    %v1715 = vld [vmem:[#allocation2 + $0x33d8] sm:$0xff]
    %v1716 = vld [vmem:[#allocation2 + $0x33e0] sm:$0xff]
    %v1717 = vld [vmem:[#allocation2 + $0x33e8] sm:$0xff]
    %v1718 = vld [vmem:[#allocation2 + $0x33f0] sm:$0xff]
    %v1719 = vld [vmem:[#allocation2 + $0x33f8] sm:$0xff]
    %v1720 = vld [vmem:[#allocation2 + $0x3400] sm:$0xff]
    %v1721 = vld [vmem:[#allocation2 + $0x3408] sm:$0xff]
    %v1722 = vld [vmem:[#allocation2 + $0x3410] sm:$0xff]
    %v1723 = vld [vmem:[#allocation2 + $0x3418] sm:$0xff]
    %v1724 = vld [vmem:[#allocation2 + $0x3420] sm:$0xff]
    %v1725 = vld [vmem:[#allocation2 + $0x3428] sm:$0xff]
    %v1726 = vld [vmem:[#allocation2 + $0x3430] sm:$0xff]
    %v1727 = vld [vmem:[#allocation2 + $0x3438] sm:$0xff]
    %v1728 = vld [vmem:[#allocation2 + $0x3440] sm:$0xff]
    %v1729 = vld [vmem:[#allocation2 + $0x3448] sm:$0xff]
    %v1730 = vld [vmem:[#allocation2 + $0x3450] sm:$0xff]
    %v1731 = vld [vmem:[#allocation2 + $0x3458] sm:$0xff]
    %v1732 = vld [vmem:[#allocation2 + $0x3460] sm:$0xff]
    %v1733 = vld [vmem:[#allocation2 + $0x3468] sm:$0xff]
    %v1734 = vld [vmem:[#allocation2 + $0x3470] sm:$0xff]
    %v1735 = vld [vmem:[#allocation2 + $0x3478] sm:$0xff]
    %v1736 = vld [vmem:[#allocation2 + $0x3480] sm:$0xff]
    %v1737 = vld [vmem:[#allocation2 + $0x3488] sm:$0xff]
    %v1738 = vld [vmem:[#allocation2 + $0x3490] sm:$0xff]
    %v1739 = vld [vmem:[#allocation2 + $0x3498] sm:$0xff]
    %v1740 = vld [vmem:[#allocation2 + $0x34a0] sm:$0xff]
    %v1741 = vld [vmem:[#allocation2 + $0x34a8] sm:$0xff]
    %v1742 = vld [vmem:[#allocation2 + $0x34b0] sm:$0xff]
    %v1743 = vld [vmem:[#allocation2 + $0x34b8] sm:$0xff]
    %v1744 = vld [vmem:[#allocation2 + $0x34c0] sm:$0xff]
    %v1745 = vld [vmem:[#allocation2 + $0x34c8] sm:$0xff]
    %v1746 = vld [vmem:[#allocation2 + $0x34d0] sm:$0xff]
    %v1747 = vld [vmem:[#allocation2 + $0x34d8] sm:$0xff]
    %v1748 = vld [vmem:[#allocation2 + $0x34e0] sm:$0xff]
    %v1749 = vld [vmem:[#allocation2 + $0x34e8] sm:$0xff]
    %v1750 = vld [vmem:[#allocation2 + $0x34f0] sm:$0xff]
    %v1751 = vld [vmem:[#allocation2 + $0x34f8] sm:$0xff]
    %v1752 = vld [vmem:[#allocation2 + $0x3500] sm:$0xff]
    %v1753 = vld [vmem:[#allocation2 + $0x3508] sm:$0xff]
    %v1754 = vld [vmem:[#allocation2 + $0x3510] sm:$0xff]
    %v1755 = vld [vmem:[#allocation2 + $0x3518] sm:$0xff]
    %v1756 = vld [vmem:[#allocation2 + $0x3520] sm:$0xff]
    %v1757 = vld [vmem:[#allocation2 + $0x3528] sm:$0xff]
    %v1758 = vld [vmem:[#allocation2 + $0x3530] sm:$0xff]
    %v1759 = vld [vmem:[#allocation2 + $0x3538] sm:$0xff]
    %v1760 = vld [vmem:[#allocation2 + $0x3540] sm:$0xff]
    %v1761 = vld [vmem:[#allocation2 + $0x3548] sm:$0xff]
    %v1762 = vld [vmem:[#allocation2 + $0x3550] sm:$0xff]
    %v1763 = vld [vmem:[#allocation2 + $0x3558] sm:$0xff]
    %v1764 = vld [vmem:[#allocation2 + $0x3560] sm:$0xff]
    %v1765 = vld [vmem:[#allocation2 + $0x3568] sm:$0xff]
    %v1766 = vld [vmem:[#allocation2 + $0x3570] sm:$0xff]
    %v1767 = vld [vmem:[#allocation2 + $0x3578] sm:$0xff]
    %v1768 = vld [vmem:[#allocation2 + $0x3580] sm:$0xff]
    %v1769 = vld [vmem:[#allocation2 + $0x3588] sm:$0xff]
    %v1770 = vld [vmem:[#allocation2 + $0x3590] sm:$0xff]
    %v1771 = vld [vmem:[#allocation2 + $0x3598] sm:$0xff]
    %v1772 = vld [vmem:[#allocation2 + $0x35a0] sm:$0xff]
    %v1773 = vld [vmem:[#allocation2 + $0x35a8] sm:$0xff]
    %v1774 = vld [vmem:[#allocation2 + $0x35b0] sm:$0xff]
    %v1775 = vld [vmem:[#allocation2 + $0x35b8] sm:$0xff]
    %v1776 = vld [vmem:[#allocation2 + $0x35c0] sm:$0xff]
    %v1777 = vld [vmem:[#allocation2 + $0x35c8] sm:$0xff]
    %v1778 = vld [vmem:[#allocation2 + $0x35d0] sm:$0xff]
    %v1779 = vld [vmem:[#allocation2 + $0x35d8] sm:$0xff]
    %v1780 = vld [vmem:[#allocation2 + $0x35e0] sm:$0xff]
    %v1781 = vld [vmem:[#allocation2 + $0x35e8] sm:$0xff]
    %v1782 = vld [vmem:[#allocation2 + $0x35f0] sm:$0xff]
    %v1783 = vld [vmem:[#allocation2 + $0x35f8] sm:$0xff]
    %v1784 = vld [vmem:[#allocation2 + $0x3600] sm:$0xff]
    %v1785 = vld [vmem:[#allocation2 + $0x3608] sm:$0xff]
    %v1786 = vld [vmem:[#allocation2 + $0x3610] sm:$0xff]
    %v1787 = vld [vmem:[#allocation2 + $0x3618] sm:$0xff]
    %v1788 = vld [vmem:[#allocation2 + $0x3620] sm:$0xff]
    %v1789 = vld [vmem:[#allocation2 + $0x3628] sm:$0xff]
    %v1790 = vld [vmem:[#allocation2 + $0x3630] sm:$0xff]
    %v1791 = vld [vmem:[#allocation2 + $0x3638] sm:$0xff]
    %v1792 = vld [vmem:[#allocation2 + $0x3640] sm:$0xff]
    %v1793 = vld [vmem:[#allocation2 + $0x3648] sm:$0xff]
    %v1794 = vld [vmem:[#allocation2 + $0x3650] sm:$0xff]
    %v1795 = vld [vmem:[#allocation2 + $0x3658] sm:$0xff]
    %v1796 = vld [vmem:[#allocation2 + $0x3660] sm:$0xff]
    %v1797 = vld [vmem:[#allocation2 + $0x3668] sm:$0xff]
    %v1798 = vld [vmem:[#allocation2 + $0x3670] sm:$0xff]
    %v1799 = vld [vmem:[#allocation2 + $0x3678] sm:$0xff]
    %v1800 = vld [vmem:[#allocation2 + $0x3680] sm:$0xff]
    %v1801 = vld [vmem:[#allocation2 + $0x3688] sm:$0xff]
    %v1802 = vld [vmem:[#allocation2 + $0x3690] sm:$0xff]
    %v1803 = vld [vmem:[#allocation2 + $0x3698] sm:$0xff]
    %v1804 = vld [vmem:[#allocation2 + $0x36a0] sm:$0xff]
    %v1805 = vld [vmem:[#allocation2 + $0x36a8] sm:$0xff]
    %v1806 = vld [vmem:[#allocation2 + $0x36b0] sm:$0xff]
    %v1807 = vld [vmem:[#allocation2 + $0x36b8] sm:$0xff]
    %v1808 = vld [vmem:[#allocation2 + $0x36c0] sm:$0xff]
    %v1809 = vld [vmem:[#allocation2 + $0x36c8] sm:$0xff]
    %v1810 = vld [vmem:[#allocation2 + $0x36d0] sm:$0xff]
    %v1811 = vld [vmem:[#allocation2 + $0x36d8] sm:$0xff]
    %v1812 = vld [vmem:[#allocation2 + $0x36e0] sm:$0xff]
    %v1813 = vld [vmem:[#allocation2 + $0x36e8] sm:$0xff]
    %v1814 = vld [vmem:[#allocation2 + $0x36f0] sm:$0xff]
    %v1815 = vld [vmem:[#allocation2 + $0x36f8] sm:$0xff]
    %v1816 = vld [vmem:[#allocation2 + $0x3700] sm:$0xff]
    %v1817 = vld [vmem:[#allocation2 + $0x3708] sm:$0xff]
    %v1818 = vld [vmem:[#allocation2 + $0x3710] sm:$0xff]
    %v1819 = vld [vmem:[#allocation2 + $0x3718] sm:$0xff]
    %v1820 = vld [vmem:[#allocation2 + $0x3720] sm:$0xff]
    %v1821 = vld [vmem:[#allocation2 + $0x3728] sm:$0xff]
    %v1822 = vld [vmem:[#allocation2 + $0x3730] sm:$0xff]
    %v1823 = vld [vmem:[#allocation2 + $0x3738] sm:$0xff]
    %v1824 = vld [vmem:[#allocation2 + $0x3740] sm:$0xff]
    %v1825 = vld [vmem:[#allocation2 + $0x3748] sm:$0xff]
    %v1826 = vld [vmem:[#allocation2 + $0x3750] sm:$0xff]
    %v1827 = vld [vmem:[#allocation2 + $0x3758] sm:$0xff]
    %v1828 = vld [vmem:[#allocation2 + $0x3760] sm:$0xff]
    %v1829 = vld [vmem:[#allocation2 + $0x3768] sm:$0xff]
    %v1830 = vld [vmem:[#allocation2 + $0x3770] sm:$0xff]
    %v1831 = vld [vmem:[#allocation2 + $0x3778] sm:$0xff]
    %v1832 = vld [vmem:[#allocation2 + $0x3780] sm:$0xff]
    %v1833 = vld [vmem:[#allocation2 + $0x3788] sm:$0xff]
    %v1834 = vld [vmem:[#allocation2 + $0x3790] sm:$0xff]
    %v1835 = vld [vmem:[#allocation2 + $0x3798] sm:$0xff]
    %v1836 = vld [vmem:[#allocation2 + $0x37a0] sm:$0xff]
    %v1837 = vld [vmem:[#allocation2 + $0x37a8] sm:$0xff]
    %v1838 = vld [vmem:[#allocation2 + $0x37b0] sm:$0xff]
    %v1839 = vld [vmem:[#allocation2 + $0x37b8] sm:$0xff]
    %v1840 = vld [vmem:[#allocation2 + $0x37c0] sm:$0xff]
    %v1841 = vld [vmem:[#allocation2 + $0x37c8] sm:$0xff]
    %v1842 = vld [vmem:[#allocation2 + $0x37d0] sm:$0xff]
    %v1843 = vld [vmem:[#allocation2 + $0x37d8] sm:$0xff]
    %v1844 = vld [vmem:[#allocation2 + $0x37e0] sm:$0xff]
    %v1845 = vld [vmem:[#allocation2 + $0x37e8] sm:$0xff]
    %v1846 = vld [vmem:[#allocation2 + $0x37f0] sm:$0xff]
    %v1847 = vld [vmem:[#allocation2 + $0x37f8] sm:$0xff]
    %v1848 = vld [vmem:[#allocation2 + $0x3800] sm:$0xff]
    %v1849 = vld [vmem:[#allocation2 + $0x3808] sm:$0xff]
    %v1850 = vld [vmem:[#allocation2 + $0x3810] sm:$0xff]
    %v1851 = vld [vmem:[#allocation2 + $0x3818] sm:$0xff]
    %v1852 = vld [vmem:[#allocation2 + $0x3820] sm:$0xff]
    %v1853 = vld [vmem:[#allocation2 + $0x3828] sm:$0xff]
    %v1854 = vld [vmem:[#allocation2 + $0x3830] sm:$0xff]
    %v1855 = vld [vmem:[#allocation2 + $0x3838] sm:$0xff]
    %v1856 = vld [vmem:[#allocation2 + $0x3840] sm:$0xff]
    %v1857 = vld [vmem:[#allocation2 + $0x3848] sm:$0xff]
    %v1858 = vld [vmem:[#allocation2 + $0x3850] sm:$0xff]
    %v1859 = vld [vmem:[#allocation2 + $0x3858] sm:$0xff]
    %v1860 = vld [vmem:[#allocation2 + $0x3860] sm:$0xff]
    %v1861 = vld [vmem:[#allocation2 + $0x3868] sm:$0xff]
    %v1862 = vld [vmem:[#allocation2 + $0x3870] sm:$0xff]
    %v1863 = vld [vmem:[#allocation2 + $0x3878] sm:$0xff]
    %v1864 = vld [vmem:[#allocation2 + $0x3880] sm:$0xff]
    %v1865 = vld [vmem:[#allocation2 + $0x3888] sm:$0xff]
    %v1866 = vld [vmem:[#allocation2 + $0x3890] sm:$0xff]
    %v1867 = vld [vmem:[#allocation2 + $0x3898] sm:$0xff]
    %v1868 = vld [vmem:[#allocation2 + $0x38a0] sm:$0xff]
    %v1869 = vld [vmem:[#allocation2 + $0x38a8] sm:$0xff]
    %v1870 = vld [vmem:[#allocation2 + $0x38b0] sm:$0xff]
    %v1871 = vld [vmem:[#allocation2 + $0x38b8] sm:$0xff]
    %v1872 = vld [vmem:[#allocation2 + $0x38c0] sm:$0xff]
    %v1873 = vld [vmem:[#allocation2 + $0x38c8] sm:$0xff]
    %v1874 = vld [vmem:[#allocation2 + $0x38d0] sm:$0xff]
    %v1875 = vld [vmem:[#allocation2 + $0x38d8] sm:$0xff]
    %v1876 = vld [vmem:[#allocation2 + $0x38e0] sm:$0xff]
    %v1877 = vld [vmem:[#allocation2 + $0x38e8] sm:$0xff]
    %v1878 = vld [vmem:[#allocation2 + $0x38f0] sm:$0xff]
    %v1879 = vld [vmem:[#allocation2 + $0x38f8] sm:$0xff]
    %v1880 = vld [vmem:[#allocation2 + $0x3900] sm:$0xff]
    %v1881 = vld [vmem:[#allocation2 + $0x3908] sm:$0xff]
    %v1882 = vld [vmem:[#allocation2 + $0x3910] sm:$0xff]
    %v1883 = vld [vmem:[#allocation2 + $0x3918] sm:$0xff]
    %v1884 = vld [vmem:[#allocation2 + $0x3920] sm:$0xff]
    %v1885 = vld [vmem:[#allocation2 + $0x3928] sm:$0xff]
    %v1886 = vld [vmem:[#allocation2 + $0x3930] sm:$0xff]
    %v1887 = vld [vmem:[#allocation2 + $0x3938] sm:$0xff]
    %v1888 = vld [vmem:[#allocation2 + $0x3940] sm:$0xff]
    %v1889 = vld [vmem:[#allocation2 + $0x3948] sm:$0xff]
    %v1890 = vld [vmem:[#allocation2 + $0x3950] sm:$0xff]
    %v1891 = vld [vmem:[#allocation2 + $0x3958] sm:$0xff]
    %v1892 = vld [vmem:[#allocation2 + $0x3960] sm:$0xff]
    %v1893 = vld [vmem:[#allocation2 + $0x3968] sm:$0xff]
    %v1894 = vld [vmem:[#allocation2 + $0x3970] sm:$0xff]
    %v1895 = vld [vmem:[#allocation2 + $0x3978] sm:$0xff]
    %v1896 = vld [vmem:[#allocation2 + $0x3980] sm:$0xff]
    %v1897 = vld [vmem:[#allocation2 + $0x3988] sm:$0xff]
    %v1898 = vld [vmem:[#allocation2 + $0x3990] sm:$0xff]
    %v1899 = vld [vmem:[#allocation2 + $0x3998] sm:$0xff]
    %v1900 = vld [vmem:[#allocation2 + $0x39a0] sm:$0xff]
    %v1901 = vld [vmem:[#allocation2 + $0x39a8] sm:$0xff]
    %v1902 = vld [vmem:[#allocation2 + $0x39b0] sm:$0xff]
    %v1903 = vld [vmem:[#allocation2 + $0x39b8] sm:$0xff]
    %v1904 = vld [vmem:[#allocation2 + $0x39c0] sm:$0xff]
    %v1905 = vld [vmem:[#allocation2 + $0x39c8] sm:$0xff]
    %v1906 = vld [vmem:[#allocation2 + $0x39d0] sm:$0xff]
    %v1907 = vld [vmem:[#allocation2 + $0x39d8] sm:$0xff]
    %v1908 = vld [vmem:[#allocation2 + $0x39e0] sm:$0xff]
    %v1909 = vld [vmem:[#allocation2 + $0x39e8] sm:$0xff]
    %v1910 = vld [vmem:[#allocation2 + $0x39f0] sm:$0xff]
    %v1911 = vld [vmem:[#allocation2 + $0x39f8] sm:$0xff]
    %v1912 = vld [vmem:[#allocation2 + $0x3a00] sm:$0xff]
    %v1913 = vld [vmem:[#allocation2 + $0x3a08] sm:$0xff]
    %v1914 = vld [vmem:[#allocation2 + $0x3a10] sm:$0xff]
    %v1915 = vld [vmem:[#allocation2 + $0x3a18] sm:$0xff]
    %v1916 = vld [vmem:[#allocation2 + $0x3a20] sm:$0xff]
    %v1917 = vld [vmem:[#allocation2 + $0x3a28] sm:$0xff]
    %v1918 = vld [vmem:[#allocation2 + $0x3a30] sm:$0xff]
    %v1919 = vld [vmem:[#allocation2 + $0x3a38] sm:$0xff]
    %v1920 = vld [vmem:[#allocation2 + $0x3a40] sm:$0xff]
    %v1921 = vld [vmem:[#allocation2 + $0x3a48] sm:$0xff]
    %v1922 = vld [vmem:[#allocation2 + $0x3a50] sm:$0xff]
    %v1923 = vld [vmem:[#allocation2 + $0x3a58] sm:$0xff]
    %v1924 = vld [vmem:[#allocation2 + $0x3a60] sm:$0xff]
    %v1925 = vld [vmem:[#allocation2 + $0x3a68] sm:$0xff]
    %v1926 = vld [vmem:[#allocation2 + $0x3a70] sm:$0xff]
    %v1927 = vld [vmem:[#allocation2 + $0x3a78] sm:$0xff]
    %v1928 = vld [vmem:[#allocation2 + $0x3a80] sm:$0xff]
    %v1929 = vld [vmem:[#allocation2 + $0x3a88] sm:$0xff]
    %v1930 = vld [vmem:[#allocation2 + $0x3a90] sm:$0xff]
    %v1931 = vld [vmem:[#allocation2 + $0x3a98] sm:$0xff]
    %v1932 = vld [vmem:[#allocation2 + $0x3aa0] sm:$0xff]
    %v1933 = vld [vmem:[#allocation2 + $0x3aa8] sm:$0xff]
    %v1934 = vld [vmem:[#allocation2 + $0x3ab0] sm:$0xff]
    %v1935 = vld [vmem:[#allocation2 + $0x3ab8] sm:$0xff]
    %v1936 = vld [vmem:[#allocation2 + $0x3ac0] sm:$0xff]
    %v1937 = vld [vmem:[#allocation2 + $0x3ac8] sm:$0xff]
    %v1938 = vld [vmem:[#allocation2 + $0x3ad0] sm:$0xff]
    %v1939 = vld [vmem:[#allocation2 + $0x3ad8] sm:$0xff]
    %v1940 = vld [vmem:[#allocation2 + $0x3ae0] sm:$0xff]
    %v1941 = vld [vmem:[#allocation2 + $0x3ae8] sm:$0xff]
    %v1942 = vld [vmem:[#allocation2 + $0x3af0] sm:$0xff]
    %v1943 = vld [vmem:[#allocation2 + $0x3af8] sm:$0xff]
    %v1944 = vld [vmem:[#allocation2 + $0x3b00] sm:$0xff]
    %v1945 = vld [vmem:[#allocation2 + $0x3b08] sm:$0xff]
    %v1946 = vld [vmem:[#allocation2 + $0x3b10] sm:$0xff]
    %v1947 = vld [vmem:[#allocation2 + $0x3b18] sm:$0xff]
    %v1948 = vld [vmem:[#allocation2 + $0x3b20] sm:$0xff]
    %v1949 = vld [vmem:[#allocation2 + $0x3b28] sm:$0xff]
    %v1950 = vld [vmem:[#allocation2 + $0x3b30] sm:$0xff]
    %v1951 = vld [vmem:[#allocation2 + $0x3b38] sm:$0xff]
    %v1952 = vld [vmem:[#allocation2 + $0x3b40] sm:$0xff]
    %v1953 = vld [vmem:[#allocation2 + $0x3b48] sm:$0xff]
    %v1954 = vld [vmem:[#allocation2 + $0x3b50] sm:$0xff]
    %v1955 = vld [vmem:[#allocation2 + $0x3b58] sm:$0xff]
    %v1956 = vld [vmem:[#allocation2 + $0x3b60] sm:$0xff]
    %v1957 = vld [vmem:[#allocation2 + $0x3b68] sm:$0xff]
    %v1958 = vld [vmem:[#allocation2 + $0x3b70] sm:$0xff]
    %v1959 = vld [vmem:[#allocation2 + $0x3b78] sm:$0xff]
    %v1960 = vld [vmem:[#allocation2 + $0x3b80] sm:$0xff]
    %v1961 = vld [vmem:[#allocation2 + $0x3b88] sm:$0xff]
    %v1962 = vld [vmem:[#allocation2 + $0x3b90] sm:$0xff]
    %v1963 = vld [vmem:[#allocation2 + $0x3b98] sm:$0xff]
    %v1964 = vld [vmem:[#allocation2 + $0x3ba0] sm:$0xff]
    %v1965 = vld [vmem:[#allocation2 + $0x3ba8] sm:$0xff]
    %v1966 = vld [vmem:[#allocation2 + $0x3bb0] sm:$0xff]
    %v1967 = vld [vmem:[#allocation2 + $0x3bb8] sm:$0xff]
    %v1968 = vld [vmem:[#allocation2 + $0x3bc0] sm:$0xff]
    %v1969 = vld [vmem:[#allocation2 + $0x3bc8] sm:$0xff]
    %v1970 = vld [vmem:[#allocation2 + $0x3bd0] sm:$0xff]
    %v1971 = vld [vmem:[#allocation2 + $0x3bd8] sm:$0xff]
    %v1972 = vld [vmem:[#allocation2 + $0x3be0] sm:$0xff]
    %v1973 = vld [vmem:[#allocation2 + $0x3be8] sm:$0xff]
    %v1974 = vld [vmem:[#allocation2 + $0x3bf0] sm:$0xff]
    %v1975 = vld [vmem:[#allocation2 + $0x3bf8] sm:$0xff]
    %v1976 = vld [vmem:[#allocation2 + $0x3c00] sm:$0xff]
    %v1977 = vld [vmem:[#allocation2 + $0x3c08] sm:$0xff]
    %v1978 = vld [vmem:[#allocation2 + $0x3c10] sm:$0xff]
    %v1979 = vld [vmem:[#allocation2 + $0x3c18] sm:$0xff]
    %v1980 = vld [vmem:[#allocation2 + $0x3c20] sm:$0xff]
    %v1981 = vld [vmem:[#allocation2 + $0x3c28] sm:$0xff]
    %v1982 = vld [vmem:[#allocation2 + $0x3c30] sm:$0xff]
    %v1983 = vld [vmem:[#allocation2 + $0x3c38] sm:$0xff]
    %v1984 = vld [vmem:[#allocation2 + $0x3c40] sm:$0xff]
    %v1985 = vld [vmem:[#allocation2 + $0x3c48] sm:$0xff]
    %v1986 = vld [vmem:[#allocation2 + $0x3c50] sm:$0xff]
    %v1987 = vld [vmem:[#allocation2 + $0x3c58] sm:$0xff]
    %v1988 = vld [vmem:[#allocation2 + $0x3c60] sm:$0xff]
    %v1989 = vld [vmem:[#allocation2 + $0x3c68] sm:$0xff]
    %v1990 = vld [vmem:[#allocation2 + $0x3c70] sm:$0xff]
    %v1991 = vld [vmem:[#allocation2 + $0x3c78] sm:$0xff]
    %v1992 = vld [vmem:[#allocation2 + $0x3c80] sm:$0xff]
    %v1993 = vld [vmem:[#allocation2 + $0x3c88] sm:$0xff]
    %v1994 = vld [vmem:[#allocation2 + $0x3c90] sm:$0xff]
    %v1995 = vld [vmem:[#allocation2 + $0x3c98] sm:$0xff]
    %v1996 = vld [vmem:[#allocation2 + $0x3ca0] sm:$0xff]
    %v1997 = vld [vmem:[#allocation2 + $0x3ca8] sm:$0xff]
    %v1998 = vld [vmem:[#allocation2 + $0x3cb0] sm:$0xff]
    %v1999 = vld [vmem:[#allocation2 + $0x3cb8] sm:$0xff]
    %v2000 = vld [vmem:[#allocation2 + $0x3cc0] sm:$0xff]
    %v2001 = vld [vmem:[#allocation2 + $0x3cc8] sm:$0xff]
    %v2002 = vld [vmem:[#allocation2 + $0x3cd0] sm:$0xff]
    %v2003 = vld [vmem:[#allocation2 + $0x3cd8] sm:$0xff]
    %v2004 = vld [vmem:[#allocation2 + $0x3ce0] sm:$0xff]
    %v2005 = vld [vmem:[#allocation2 + $0x3ce8] sm:$0xff]
    %v2006 = vld [vmem:[#allocation2 + $0x3cf0] sm:$0xff]
    %v2007 = vld [vmem:[#allocation2 + $0x3cf8] sm:$0xff]
    %v2008 = vld [vmem:[#allocation2 + $0x3d00] sm:$0xff]
    %v2009 = vld [vmem:[#allocation2 + $0x3d08] sm:$0xff]
    %v2010 = vld [vmem:[#allocation2 + $0x3d10] sm:$0xff]
    %v2011 = vld [vmem:[#allocation2 + $0x3d18] sm:$0xff]
    %v2012 = vld [vmem:[#allocation2 + $0x3d20] sm:$0xff]
    %v2013 = vld [vmem:[#allocation2 + $0x3d28] sm:$0xff]
    %v2014 = vld [vmem:[#allocation2 + $0x3d30] sm:$0xff]
    %v2015 = vld [vmem:[#allocation2 + $0x3d38] sm:$0xff]
    %v2016 = vld [vmem:[#allocation2 + $0x3d40] sm:$0xff]
    %v2017 = vld [vmem:[#allocation2 + $0x3d48] sm:$0xff]
    %v2018 = vld [vmem:[#allocation2 + $0x3d50] sm:$0xff]
    %v2019 = vld [vmem:[#allocation2 + $0x3d58] sm:$0xff]
    %v2020 = vld [vmem:[#allocation2 + $0x3d60] sm:$0xff]
    %v2021 = vld [vmem:[#allocation2 + $0x3d68] sm:$0xff]
    %v2022 = vld [vmem:[#allocation2 + $0x3d70] sm:$0xff]
    %v2023 = vld [vmem:[#allocation2 + $0x3d78] sm:$0xff]
    %v2024 = vld [vmem:[#allocation2 + $0x3d80] sm:$0xff]
    %v2025 = vld [vmem:[#allocation2 + $0x3d88] sm:$0xff]
    %v2026 = vld [vmem:[#allocation2 + $0x3d90] sm:$0xff]
    %v2027 = vld [vmem:[#allocation2 + $0x3d98] sm:$0xff]
    %v2028 = vld [vmem:[#allocation2 + $0x3da0] sm:$0xff]
    %v2029 = vld [vmem:[#allocation2 + $0x3da8] sm:$0xff]
    %v2030 = vld [vmem:[#allocation2 + $0x3db0] sm:$0xff]
    %v2031 = vld [vmem:[#allocation2 + $0x3db8] sm:$0xff]
    %v2032 = vld [vmem:[#allocation2 + $0x3dc0] sm:$0xff]
    %v2033 = vld [vmem:[#allocation2 + $0x3dc8] sm:$0xff]
    %v2034 = vld [vmem:[#allocation2 + $0x3dd0] sm:$0xff]
    %v2035 = vld [vmem:[#allocation2 + $0x3dd8] sm:$0xff]
    %v2036 = vld [vmem:[#allocation2 + $0x3de0] sm:$0xff]
    %v2037 = vld [vmem:[#allocation2 + $0x3de8] sm:$0xff]
    %v2038 = vld [vmem:[#allocation2 + $0x3df0] sm:$0xff]
    %v2039 = vld [vmem:[#allocation2 + $0x3df8] sm:$0xff]
    %v2040 = vld [vmem:[#allocation2 + $0x3e00] sm:$0xff]
    %v2041 = vld [vmem:[#allocation2 + $0x3e08] sm:$0xff]
    %v2042 = vld [vmem:[#allocation2 + $0x3e10] sm:$0xff]
    %v2043 = vld [vmem:[#allocation2 + $0x3e18] sm:$0xff]
    %v2044 = vld [vmem:[#allocation2 + $0x3e20] sm:$0xff]
    %v2045 = vld [vmem:[#allocation2 + $0x3e28] sm:$0xff]
    %v2046 = vld [vmem:[#allocation2 + $0x3e30] sm:$0xff]
    %v2047 = vld [vmem:[#allocation2 + $0x3e38] sm:$0xff]
    %v2048 = vld [vmem:[#allocation2 + $0x3e40] sm:$0xff]
    %v2049 = vld [vmem:[#allocation2 + $0x3e48] sm:$0xff]
    %v2050 = vld [vmem:[#allocation2 + $0x3e50] sm:$0xff]
    %v2051 = vld [vmem:[#allocation2 + $0x3e58] sm:$0xff]
    %v2052 = vld [vmem:[#allocation2 + $0x3e60] sm:$0xff]
    %v2053 = vld [vmem:[#allocation2 + $0x3e68] sm:$0xff]
    %v2054 = vld [vmem:[#allocation2 + $0x3e70] sm:$0xff]
    %v2055 = vld [vmem:[#allocation2 + $0x3e78] sm:$0xff]
    %v2056 = vld [vmem:[#allocation2 + $0x3e80] sm:$0xff]
    %v2057 = vld [vmem:[#allocation2 + $0x3e88] sm:$0xff]
    %v2058 = vld [vmem:[#allocation2 + $0x3e90] sm:$0xff]
    %v2059 = vld [vmem:[#allocation2 + $0x3e98] sm:$0xff]
    %v2060 = vld [vmem:[#allocation2 + $0x3ea0] sm:$0xff]
    %v2061 = vld [vmem:[#allocation2 + $0x3ea8] sm:$0xff]
    %v2062 = vld [vmem:[#allocation2 + $0x3eb0] sm:$0xff]
    %v2063 = vld [vmem:[#allocation2 + $0x3eb8] sm:$0xff]
    %v2064 = vld [vmem:[#allocation2 + $0x3ec0] sm:$0xff]
    %v2065 = vld [vmem:[#allocation2 + $0x3ec8] sm:$0xff]
    %v2066 = vld [vmem:[#allocation2 + $0x3ed0] sm:$0xff]
    %v2067 = vld [vmem:[#allocation2 + $0x3ed8] sm:$0xff]
    %v2068 = vld [vmem:[#allocation2 + $0x3ee0] sm:$0xff]
    %v2069 = vld [vmem:[#allocation2 + $0x3ee8] sm:$0xff]
    %v2070 = vld [vmem:[#allocation2 + $0x3ef0] sm:$0xff]
    %v2071 = vld [vmem:[#allocation2 + $0x3ef8] sm:$0xff]
    %v2072 = vld [vmem:[#allocation2 + $0x3f00] sm:$0xff]
    %v2073 = vld [vmem:[#allocation2 + $0x3f08] sm:$0xff]
    %v2074 = vld [vmem:[#allocation2 + $0x3f10] sm:$0xff]
    %v2075 = vld [vmem:[#allocation2 + $0x3f18] sm:$0xff]
    %v2076 = vld [vmem:[#allocation2 + $0x3f20] sm:$0xff]
    %v2077 = vld [vmem:[#allocation2 + $0x3f28] sm:$0xff]
    %v2078 = vld [vmem:[#allocation2 + $0x3f30] sm:$0xff]
    %v2079 = vld [vmem:[#allocation2 + $0x3f38] sm:$0xff]
    %v2080 = vld [vmem:[#allocation2 + $0x3f40] sm:$0xff]
    %v2081 = vld [vmem:[#allocation2 + $0x3f48] sm:$0xff]
    %v2082 = vld [vmem:[#allocation2 + $0x3f50] sm:$0xff]
    %v2083 = vld [vmem:[#allocation2 + $0x3f58] sm:$0xff]
    %v2084 = vld [vmem:[#allocation2 + $0x3f60] sm:$0xff]
    %v2085 = vld [vmem:[#allocation2 + $0x3f68] sm:$0xff]
    %v2086 = vld [vmem:[#allocation2 + $0x3f70] sm:$0xff]
    %v2087 = vld [vmem:[#allocation2 + $0x3f78] sm:$0xff]
    %v2088 = vld [vmem:[#allocation2 + $0x3f80] sm:$0xff]
    %v2089 = vld [vmem:[#allocation2 + $0x3f88] sm:$0xff]
    %v2090 = vld [vmem:[#allocation2 + $0x3f90] sm:$0xff]
    %v2091 = vld [vmem:[#allocation2 + $0x3f98] sm:$0xff]
    %v2092 = vld [vmem:[#allocation2 + $0x3fa0] sm:$0xff]
    %v2093 = vld [vmem:[#allocation2 + $0x3fa8] sm:$0xff]
    %v2094 = vld [vmem:[#allocation2 + $0x3fb0] sm:$0xff]
    %v2095 = vld [vmem:[#allocation2 + $0x3fb8] sm:$0xff]
    %v2096 = vld [vmem:[#allocation2 + $0x3fc0] sm:$0xff]
    %v2097 = vld [vmem:[#allocation2 + $0x3fc8] sm:$0xff]
    %v2098 = vld [vmem:[#allocation2 + $0x3fd0] sm:$0xff]
    %v2099 = vld [vmem:[#allocation2 + $0x3fd8] sm:$0xff]
    %v2100 = vld [vmem:[#allocation2 + $0x3fe0] sm:$0xff]
    %v2101 = vld [vmem:[#allocation2 + $0x3fe8] sm:$0xff]
    %v2102 = vld [vmem:[#allocation2 + $0x3ff0] sm:$0xff]
    %v2103 = vld [vmem:[#allocation2 + $0x3ff8] sm:$0xff]
    %v2104 = vld [vmem:[#allocation2 + $0x4000] sm:$0xff]
    %v2105 = vld [vmem:[#allocation2 + $0x4008] sm:$0xff]
    %v2106 = vld [vmem:[#allocation2 + $0x4010] sm:$0xff]
    %v2107 = vld [vmem:[#allocation2 + $0x4018] sm:$0xff]
    %v2108 = vld [vmem:[#allocation2 + $0x4020] sm:$0xff]
    %v2109 = vld [vmem:[#allocation2 + $0x4028] sm:$0xff]
    %v2110 = vld [vmem:[#allocation2 + $0x4030] sm:$0xff]
    %v2111 = vld [vmem:[#allocation2 + $0x4038] sm:$0xff]
    %v2112 = vld [vmem:[#allocation2 + $0x4040] sm:$0xff]
    %v2113 = vld [vmem:[#allocation2 + $0x4048] sm:$0xff]
    %v2114 = vld [vmem:[#allocation2 + $0x4050] sm:$0xff]
    %v2115 = vld [vmem:[#allocation2 + $0x4058] sm:$0xff]
    %v2116 = vld [vmem:[#allocation2 + $0x4060] sm:$0xff]
    %v2117 = vld [vmem:[#allocation2 + $0x4068] sm:$0xff]
    %v2118 = vld [vmem:[#allocation2 + $0x4070] sm:$0xff]
    %v2119 = vld [vmem:[#allocation2 + $0x4078] sm:$0xff]
    %v2120 = vld [vmem:[#allocation2 + $0x4080] sm:$0xff]
    %v2121 = vld [vmem:[#allocation2 + $0x4088] sm:$0xff]
    %v2122 = vld [vmem:[#allocation2 + $0x4090] sm:$0xff]
    %v2123 = vld [vmem:[#allocation2 + $0x4098] sm:$0xff]
    %v2124 = vld [vmem:[#allocation2 + $0x40a0] sm:$0xff]
    %v2125 = vld [vmem:[#allocation2 + $0x40a8] sm:$0xff]
    %v2126 = vld [vmem:[#allocation2 + $0x40b0] sm:$0xff]
    %v2127 = vld [vmem:[#allocation2 + $0x40b8] sm:$0xff]
    %v2128 = vld [vmem:[#allocation2 + $0x40c0] sm:$0xff]
    %v2129 = vld [vmem:[#allocation2 + $0x40c8] sm:$0xff]
    %v2130 = vld [vmem:[#allocation2 + $0x40d0] sm:$0xff]
    %v2131 = vld [vmem:[#allocation2 + $0x40d8] sm:$0xff]
    %v2132 = vld [vmem:[#allocation2 + $0x40e0] sm:$0xff]
    %v2133 = vld [vmem:[#allocation2 + $0x40e8] sm:$0xff]
    %v2134 = vld [vmem:[#allocation2 + $0x40f0] sm:$0xff]
    %v2135 = vld [vmem:[#allocation2 + $0x40f8] sm:$0xff]
    %v2136 = vld [vmem:[#allocation2 + $0x4100] sm:$0xff]
    %v2137 = vld [vmem:[#allocation2 + $0x4108] sm:$0xff]
    %v2138 = vld [vmem:[#allocation2 + $0x4110] sm:$0xff]
    %v2139 = vld [vmem:[#allocation2 + $0x4118] sm:$0xff]
    %v2140 = vld [vmem:[#allocation2 + $0x4120] sm:$0xff]
    %v2141 = vld [vmem:[#allocation2 + $0x4128] sm:$0xff]
    %v2142 = vld [vmem:[#allocation2 + $0x4130] sm:$0xff]
    %v2143 = vld [vmem:[#allocation2 + $0x4138] sm:$0xff]
    %v2144 = vld [vmem:[#allocation2 + $0x4140] sm:$0xff]
    %v2145 = vld [vmem:[#allocation2 + $0x4148] sm:$0xff]
    %v2146 = vld [vmem:[#allocation2 + $0x4150] sm:$0xff]
    %v2147 = vld [vmem:[#allocation2 + $0x4158] sm:$0xff]
    %v2148 = vld [vmem:[#allocation2 + $0x4160] sm:$0xff]
    %v2149 = vld [vmem:[#allocation2 + $0x4168] sm:$0xff]
    %v2150 = vld [vmem:[#allocation2 + $0x4170] sm:$0xff]
    %v2151 = vld [vmem:[#allocation2 + $0x4178] sm:$0xff]
    %v2152 = vld [vmem:[#allocation2 + $0x4180] sm:$0xff]
    %v2153 = vld [vmem:[#allocation2 + $0x4188] sm:$0xff]
    %v2154 = vld [vmem:[#allocation2 + $0x4190] sm:$0xff]
    %v2155 = vld [vmem:[#allocation2 + $0x4198] sm:$0xff]
    %v2156 = vld [vmem:[#allocation2 + $0x41a0] sm:$0xff]
    %v2157 = vld [vmem:[#allocation2 + $0x41a8] sm:$0xff]
    %v2158 = vld [vmem:[#allocation2 + $0x41b0] sm:$0xff]
    %v2159 = vld [vmem:[#allocation2 + $0x41b8] sm:$0xff]
    %v2160 = vld [vmem:[#allocation2 + $0x41c0] sm:$0xff]
    %v2161 = vld [vmem:[#allocation2 + $0x41c8] sm:$0xff]
    %v2162 = vld [vmem:[#allocation2 + $0x41d0] sm:$0xff]
    %v2163 = vld [vmem:[#allocation2 + $0x41d8] sm:$0xff]
    %v2164 = vld [vmem:[#allocation2 + $0x41e0] sm:$0xff]
    %v2165 = vld [vmem:[#allocation2 + $0x41e8] sm:$0xff]
    %v2166 = vld [vmem:[#allocation2 + $0x41f0] sm:$0xff]
    %v2167 = vld [vmem:[#allocation2 + $0x41f8] sm:$0xff]
    %v2168 = vld [vmem:[#allocation2 + $0x4200] sm:$0xff]
    %v2169 = vld [vmem:[#allocation2 + $0x4208] sm:$0xff]
    %v2170 = vld [vmem:[#allocation2 + $0x4210] sm:$0xff]
    %v2171 = vld [vmem:[#allocation2 + $0x4218] sm:$0xff]
    %v2172 = vld [vmem:[#allocation2 + $0x4220] sm:$0xff]
    %v2173 = vld [vmem:[#allocation2 + $0x4228] sm:$0xff]
    %v2174 = vld [vmem:[#allocation2 + $0x4230] sm:$0xff]
    %v2175 = vld [vmem:[#allocation2 + $0x4238] sm:$0xff]
    %v2176 = vld [vmem:[#allocation2 + $0x4240] sm:$0xff]
    %v2177 = vld [vmem:[#allocation2 + $0x4248] sm:$0xff]
    %v2178 = vld [vmem:[#allocation2 + $0x4250] sm:$0xff]
    %v2179 = vld [vmem:[#allocation2 + $0x4258] sm:$0xff]
    %v2180 = vld [vmem:[#allocation2 + $0x4260] sm:$0xff]
    %v2181 = vld [vmem:[#allocation2 + $0x4268] sm:$0xff]
    %v2182 = vld [vmem:[#allocation2 + $0x4270] sm:$0xff]
    %v2183 = vld [vmem:[#allocation2 + $0x4278] sm:$0xff]
    %v2184 = vld [vmem:[#allocation2 + $0x4280] sm:$0xff]
    %v2185 = vld [vmem:[#allocation2 + $0x4288] sm:$0xff]
    %v2186 = vld [vmem:[#allocation2 + $0x4290] sm:$0xff]
    %v2187 = vld [vmem:[#allocation2 + $0x4298] sm:$0xff]
    %v2188 = vld [vmem:[#allocation2 + $0x42a0] sm:$0xff]
    %v2189 = vld [vmem:[#allocation2 + $0x42a8] sm:$0xff]
    %v2190 = vld [vmem:[#allocation2 + $0x42b0] sm:$0xff]
    %v2191 = vld [vmem:[#allocation2 + $0x42b8] sm:$0xff]
    %v2192 = vld [vmem:[#allocation2 + $0x42c0] sm:$0xff]
    %v2193 = vld [vmem:[#allocation2 + $0x42c8] sm:$0xff]
    %v2194 = vld [vmem:[#allocation2 + $0x42d0] sm:$0xff]
    %v2195 = vld [vmem:[#allocation2 + $0x42d8] sm:$0xff]
    %v2196 = vld [vmem:[#allocation2 + $0x42e0] sm:$0xff]
    %v2197 = vld [vmem:[#allocation2 + $0x42e8] sm:$0xff]
    %v2198 = vld [vmem:[#allocation2 + $0x42f0] sm:$0xff]
    %v2199 = vld [vmem:[#allocation2 + $0x42f8] sm:$0xff]
    %v2200 = vld [vmem:[#allocation2 + $0x4300] sm:$0xff]
    %v2201 = vld [vmem:[#allocation2 + $0x4308] sm:$0xff]
    %v2202 = vld [vmem:[#allocation2 + $0x4310] sm:$0xff]
    %v2203 = vld [vmem:[#allocation2 + $0x4318] sm:$0xff]
    %v2204 = vld [vmem:[#allocation2 + $0x4320] sm:$0xff]
    %v2205 = vld [vmem:[#allocation2 + $0x4328] sm:$0xff]
    %v2206 = vld [vmem:[#allocation2 + $0x4330] sm:$0xff]
    %v2207 = vld [vmem:[#allocation2 + $0x4338] sm:$0xff]
    %v2208 = vld [vmem:[#allocation2 + $0x4340] sm:$0xff]
    %v2209 = vld [vmem:[#allocation2 + $0x4348] sm:$0xff]
    %v2210 = vld [vmem:[#allocation2 + $0x4350] sm:$0xff]
    %v2211 = vld [vmem:[#allocation2 + $0x4358] sm:$0xff]
    %v2212 = vld [vmem:[#allocation2 + $0x4360] sm:$0xff]
    %v2213 = vld [vmem:[#allocation2 + $0x4368] sm:$0xff]
    %v2214 = vld [vmem:[#allocation2 + $0x4370] sm:$0xff]
    %v2215 = vld [vmem:[#allocation2 + $0x4378] sm:$0xff]
    %v2216 = vld [vmem:[#allocation2 + $0x4380] sm:$0xff]
    %v2217 = vld [vmem:[#allocation2 + $0x4388] sm:$0xff]
    %v2218 = vld [vmem:[#allocation2 + $0x4390] sm:$0xff]
    %v2219 = vld [vmem:[#allocation2 + $0x4398] sm:$0xff]
    %v2220 = vld [vmem:[#allocation2 + $0x43a0] sm:$0xff]
    %v2221 = vld [vmem:[#allocation2 + $0x43a8] sm:$0xff]
    %v2222 = vld [vmem:[#allocation2 + $0x43b0] sm:$0xff]
    %v2223 = vld [vmem:[#allocation2 + $0x43b8] sm:$0xff]
    %v2224 = vld [vmem:[#allocation2 + $0x43c0] sm:$0xff]
    %v2225 = vld [vmem:[#allocation2 + $0x43c8] sm:$0xff]
    %v2226 = vld [vmem:[#allocation2 + $0x43d0] sm:$0xff]
    %v2227 = vld [vmem:[#allocation2 + $0x43d8] sm:$0xff]
    %v2228 = vld [vmem:[#allocation2 + $0x43e0] sm:$0xff]
    %v2229 = vld [vmem:[#allocation2 + $0x43e8] sm:$0xff]
    %v2230 = vld [vmem:[#allocation2 + $0x43f0] sm:$0xff]
    %v2231 = vld [vmem:[#allocation2 + $0x43f8] sm:$0xff]
    %v2232 = vld [vmem:[#allocation2 + $0x4400] sm:$0xff]
    %v2233 = vld [vmem:[#allocation2 + $0x4408] sm:$0xff]
    %v2234 = vld [vmem:[#allocation2 + $0x4410] sm:$0xff]
    %v2235 = vld [vmem:[#allocation2 + $0x4418] sm:$0xff]
    %v2236 = vld [vmem:[#allocation2 + $0x4420] sm:$0xff]
    %v2237 = vld [vmem:[#allocation2 + $0x4428] sm:$0xff]
    %v2238 = vld [vmem:[#allocation2 + $0x4430] sm:$0xff]
    %v2239 = vld [vmem:[#allocation2 + $0x4438] sm:$0xff]
    %v2240 = vld [vmem:[#allocation2 + $0x4440] sm:$0xff]
    %v2241 = vld [vmem:[#allocation2 + $0x4448] sm:$0xff]
    %v2242 = vld [vmem:[#allocation2 + $0x4450] sm:$0xff]
    %v2243 = vld [vmem:[#allocation2 + $0x4458] sm:$0xff]
    %v2244 = vld [vmem:[#allocation2 + $0x4460] sm:$0xff]
    %v2245 = vld [vmem:[#allocation2 + $0x4468] sm:$0xff]
    %v2246 = vld [vmem:[#allocation2 + $0x4470] sm:$0xff]
    %v2247 = vld [vmem:[#allocation2 + $0x4478] sm:$0xff]
    %v2248 = vld [vmem:[#allocation2 + $0x4480] sm:$0xff]
    %v2249 = vld [vmem:[#allocation2 + $0x4488] sm:$0xff]
    %v2250 = vld [vmem:[#allocation2 + $0x4490] sm:$0xff]
    %v2251 = vld [vmem:[#allocation2 + $0x4498] sm:$0xff]
    %v2252 = vld [vmem:[#allocation2 + $0x44a0] sm:$0xff]
    %v2253 = vld [vmem:[#allocation2 + $0x44a8] sm:$0xff]
    %v2254 = vld [vmem:[#allocation2 + $0x44b0] sm:$0xff]
    %v2255 = vld [vmem:[#allocation2 + $0x44b8] sm:$0xff]
    %v2256 = vld [vmem:[#allocation2 + $0x44c0] sm:$0xff]
    %v2257 = vld [vmem:[#allocation2 + $0x44c8] sm:$0xff]
    %v2258 = vld [vmem:[#allocation2 + $0x44d0] sm:$0xff]
    %v2259 = vld [vmem:[#allocation2 + $0x44d8] sm:$0xff]
    %v2260 = vld [vmem:[#allocation2 + $0x44e0] sm:$0xff]
    %v2261 = vld [vmem:[#allocation2 + $0x44e8] sm:$0xff]
    %v2262 = vld [vmem:[#allocation2 + $0x44f0] sm:$0xff]
    %v2263 = vld [vmem:[#allocation2 + $0x44f8] sm:$0xff]
    %v2264 = vld [vmem:[#allocation2 + $0x4500] sm:$0xff]
    %v2265 = vld [vmem:[#allocation2 + $0x4508] sm:$0xff]
    %v2266 = vld [vmem:[#allocation2 + $0x4510] sm:$0xff]
    %v2267 = vld [vmem:[#allocation2 + $0x4518] sm:$0xff]
    %v2268 = vld [vmem:[#allocation2 + $0x4520] sm:$0xff]
    %v2269 = vld [vmem:[#allocation2 + $0x4528] sm:$0xff]
    %v2270 = vld [vmem:[#allocation2 + $0x4530] sm:$0xff]
    %v2271 = vld [vmem:[#allocation2 + $0x4538] sm:$0xff]
    %v2272 = vld [vmem:[#allocation2 + $0x4540] sm:$0xff]
    %v2273 = vld [vmem:[#allocation2 + $0x4548] sm:$0xff]
    %v2274 = vld [vmem:[#allocation2 + $0x4550] sm:$0xff]
    %v2275 = vld [vmem:[#allocation2 + $0x4558] sm:$0xff]
    %v2276 = vld [vmem:[#allocation2 + $0x4560] sm:$0xff]
    %v2277 = vld [vmem:[#allocation2 + $0x4568] sm:$0xff]
    %v2278 = vld [vmem:[#allocation2 + $0x4570] sm:$0xff]
    %v2279 = vld [vmem:[#allocation2 + $0x4578] sm:$0xff]
    %v2280 = vld [vmem:[#allocation2 + $0x4580] sm:$0xff]
    %v2281 = vld [vmem:[#allocation2 + $0x4588] sm:$0xff]
    %v2282 = vld [vmem:[#allocation2 + $0x4590] sm:$0xff]
    %v2283 = vld [vmem:[#allocation2 + $0x4598] sm:$0xff]
    %v2284 = vld [vmem:[#allocation2 + $0x45a0] sm:$0xff]
    %v2285 = vld [vmem:[#allocation2 + $0x45a8] sm:$0xff]
    %v2286 = vld [vmem:[#allocation2 + $0x45b0] sm:$0xff]
    %v2287 = vld [vmem:[#allocation2 + $0x45b8] sm:$0xff]
    %v2288 = vld [vmem:[#allocation2 + $0x45c0] sm:$0xff]
    %v2289 = vld [vmem:[#allocation2 + $0x45c8] sm:$0xff]
    %v2290 = vld [vmem:[#allocation2 + $0x45d0] sm:$0xff]
    %v2291 = vld [vmem:[#allocation2 + $0x45d8] sm:$0xff]
    %v2292 = vld [vmem:[#allocation2 + $0x45e0] sm:$0xff]
    %v2293 = vld [vmem:[#allocation2 + $0x45e8] sm:$0xff]
    %v2294 = vld [vmem:[#allocation2 + $0x45f0] sm:$0xff]
    %v2295 = vld [vmem:[#allocation2 + $0x45f8] sm:$0xff]
    %v2296 = vld [vmem:[#allocation2 + $0x4600] sm:$0xff]
    %v2297 = vld [vmem:[#allocation2 + $0x4608] sm:$0xff]
    %v2298 = vld [vmem:[#allocation2 + $0x4610] sm:$0xff]
    %v2299 = vld [vmem:[#allocation2 + $0x4618] sm:$0xff]
    %v2300 = vld [vmem:[#allocation2 + $0x4620] sm:$0xff]
    %v2301 = vld [vmem:[#allocation2 + $0x4628] sm:$0xff]
    %v2302 = vld [vmem:[#allocation2 + $0x4630] sm:$0xff]
    %v2303 = vld [vmem:[#allocation2 + $0x4638] sm:$0xff]
    %v2304 = vld [vmem:[#allocation2 + $0x4640] sm:$0xff]
    %v2305 = vld [vmem:[#allocation2 + $0x4648] sm:$0xff]
    %v2306 = vld [vmem:[#allocation2 + $0x4650] sm:$0xff]
    %v2307 = vld [vmem:[#allocation2 + $0x4658] sm:$0xff]
    %v2308 = vld [vmem:[#allocation2 + $0x4660] sm:$0xff]
    %v2309 = vld [vmem:[#allocation2 + $0x4668] sm:$0xff]
    %v2310 = vld [vmem:[#allocation2 + $0x4670] sm:$0xff]
    %v2311 = vld [vmem:[#allocation2 + $0x4678] sm:$0xff]
    %v2312 = vld [vmem:[#allocation2 + $0x4680] sm:$0xff]
    %v2313 = vld [vmem:[#allocation2 + $0x4688] sm:$0xff]
    %v2314 = vld [vmem:[#allocation2 + $0x4690] sm:$0xff]
    %v2315 = vld [vmem:[#allocation2 + $0x4698] sm:$0xff]
    %v2316 = vld [vmem:[#allocation2 + $0x46a0] sm:$0xff]
    %v2317 = vld [vmem:[#allocation2 + $0x46a8] sm:$0xff]
    %v2318 = vld [vmem:[#allocation2 + $0x46b0] sm:$0xff]
    %v2319 = vld [vmem:[#allocation2 + $0x46b8] sm:$0xff]
    %v2320 = vld [vmem:[#allocation2 + $0x46c0] sm:$0xff]
    %v2321 = vld [vmem:[#allocation2 + $0x46c8] sm:$0xff]
    %v2322 = vld [vmem:[#allocation2 + $0x46d0] sm:$0xff]
    %v2323 = vld [vmem:[#allocation2 + $0x46d8] sm:$0xff]
    %v2324 = vld [vmem:[#allocation2 + $0x46e0] sm:$0xff]
    %v2325 = vld [vmem:[#allocation2 + $0x46e8] sm:$0xff]
    %v2326 = vld [vmem:[#allocation2 + $0x46f0] sm:$0xff]
    %v2327 = vld [vmem:[#allocation2 + $0x46f8] sm:$0xff]
    %v2328 = vld [vmem:[#allocation2 + $0x4700] sm:$0xff]
    %v2329 = vld [vmem:[#allocation2 + $0x4708] sm:$0xff]
    %v2330 = vld [vmem:[#allocation2 + $0x4710] sm:$0xff]
    %v2331 = vld [vmem:[#allocation2 + $0x4718] sm:$0xff]
    %v2332 = vld [vmem:[#allocation2 + $0x4720] sm:$0xff]
    %v2333 = vld [vmem:[#allocation2 + $0x4728] sm:$0xff]
    %v2334 = vld [vmem:[#allocation2 + $0x4730] sm:$0xff]
    %v2335 = vld [vmem:[#allocation2 + $0x4738] sm:$0xff]
    %v2336 = vld [vmem:[#allocation2 + $0x4740] sm:$0xff]
    %v2337 = vld [vmem:[#allocation2 + $0x4748] sm:$0xff]
    %v2338 = vld [vmem:[#allocation2 + $0x4750] sm:$0xff]
    %v2339 = vld [vmem:[#allocation2 + $0x4758] sm:$0xff]
    %v2340 = vld [vmem:[#allocation2 + $0x4760] sm:$0xff]
    %v2341 = vld [vmem:[#allocation2 + $0x4768] sm:$0xff]
    %v2342 = vld [vmem:[#allocation2 + $0x4770] sm:$0xff]
    %v2343 = vld [vmem:[#allocation2 + $0x4778] sm:$0xff]
    %v2344 = vld [vmem:[#allocation2 + $0x4780] sm:$0xff]
    %v2345 = vld [vmem:[#allocation2 + $0x4788] sm:$0xff]
    %v2346 = vld [vmem:[#allocation2 + $0x4790] sm:$0xff]
    %v2347 = vld [vmem:[#allocation2 + $0x4798] sm:$0xff]
    %v2348 = vld [vmem:[#allocation2 + $0x47a0] sm:$0xff]
    %v2349 = vld [vmem:[#allocation2 + $0x47a8] sm:$0xff]
    %v2350 = vld [vmem:[#allocation2 + $0x47b0] sm:$0xff]
    %v2351 = vld [vmem:[#allocation2 + $0x47b8] sm:$0xff]
    %v2352 = vld [vmem:[#allocation2 + $0x47c0] sm:$0xff]
    %v2353 = vld [vmem:[#allocation2 + $0x47c8] sm:$0xff]
    %v2354 = vld [vmem:[#allocation2 + $0x47d0] sm:$0xff]
    %v2355 = vld [vmem:[#allocation2 + $0x47d8] sm:$0xff]
    %v2356 = vld [vmem:[#allocation2 + $0x47e0] sm:$0xff]
    %v2357 = vld [vmem:[#allocation2 + $0x47e8] sm:$0xff]
    %v2358 = vld [vmem:[#allocation2 + $0x47f0] sm:$0xff]
    %v2359 = vld [vmem:[#allocation2 + $0x47f8] sm:$0xff]
    %v2360 = vld [vmem:[#allocation2 + $0x4800] sm:$0xff]
    %v2361 = vld [vmem:[#allocation2 + $0x4808] sm:$0xff]
    %v2362 = vld [vmem:[#allocation2 + $0x4810] sm:$0xff]
    %v2363 = vld [vmem:[#allocation2 + $0x4818] sm:$0xff]
    %v2364 = vld [vmem:[#allocation2 + $0x4820] sm:$0xff]
    %v2365 = vld [vmem:[#allocation2 + $0x4828] sm:$0xff]
    %v2366 = vld [vmem:[#allocation2 + $0x4830] sm:$0xff]
    %v2367 = vld [vmem:[#allocation2 + $0x4838] sm:$0xff]
    %v2368 = vld [vmem:[#allocation2 + $0x4840] sm:$0xff]
    %v2369 = vld [vmem:[#allocation2 + $0x4848] sm:$0xff]
    %v2370 = vld [vmem:[#allocation2 + $0x4850] sm:$0xff]
    %v2371 = vld [vmem:[#allocation2 + $0x4858] sm:$0xff]
    %v2372 = vld [vmem:[#allocation2 + $0x4860] sm:$0xff]
    %v2373 = vld [vmem:[#allocation2 + $0x4868] sm:$0xff]
    %v2374 = vld [vmem:[#allocation2 + $0x4870] sm:$0xff]
    %v2375 = vld [vmem:[#allocation2 + $0x4878] sm:$0xff]
    %v2376 = vld [vmem:[#allocation2 + $0x4880] sm:$0xff]
    %v2377 = vld [vmem:[#allocation2 + $0x4888] sm:$0xff]
    %v2378 = vld [vmem:[#allocation2 + $0x4890] sm:$0xff]
    %v2379 = vld [vmem:[#allocation2 + $0x4898] sm:$0xff]
    %v2380 = vld [vmem:[#allocation2 + $0x48a0] sm:$0xff]
    %v2381 = vld [vmem:[#allocation2 + $0x48a8] sm:$0xff]
    %v2382 = vld [vmem:[#allocation2 + $0x48b0] sm:$0xff]
    %v2383 = vld [vmem:[#allocation2 + $0x48b8] sm:$0xff]
    %v2384 = vld [vmem:[#allocation2 + $0x48c0] sm:$0xff]
    %v2385 = vld [vmem:[#allocation2 + $0x48c8] sm:$0xff]
    %v2386 = vld [vmem:[#allocation2 + $0x48d0] sm:$0xff]
    %v2387 = vld [vmem:[#allocation2 + $0x48d8] sm:$0xff]
    %v2388 = vld [vmem:[#allocation2 + $0x48e0] sm:$0xff]
    %v2389 = vld [vmem:[#allocation2 + $0x48e8] sm:$0xff]
    %v2390 = vld [vmem:[#allocation2 + $0x48f0] sm:$0xff]
    %v2391 = vld [vmem:[#allocation2 + $0x48f8] sm:$0xff]
    %v2392 = vld [vmem:[#allocation2 + $0x4900] sm:$0xff]
    %v2393 = vld [vmem:[#allocation2 + $0x4908] sm:$0xff]
    %v2394 = vld [vmem:[#allocation2 + $0x4910] sm:$0xff]
    %v2395 = vld [vmem:[#allocation2 + $0x4918] sm:$0xff]
    %v2396 = vld [vmem:[#allocation2 + $0x4920] sm:$0xff]
    %v2397 = vld [vmem:[#allocation2 + $0x4928] sm:$0xff]
    %v2398 = vld [vmem:[#allocation2 + $0x4930] sm:$0xff]
    %v2399 = vld [vmem:[#allocation2 + $0x4938] sm:$0xff]
    %v2400 = vld [vmem:[#allocation2 + $0x4940] sm:$0xff]
    %v2401 = vld [vmem:[#allocation2 + $0x4948] sm:$0xff]
    %v2402 = vld [vmem:[#allocation2 + $0x4950] sm:$0xff]
    %v2403 = vld [vmem:[#allocation2 + $0x4958] sm:$0xff]
    %v2404 = vld [vmem:[#allocation2 + $0x4960] sm:$0xff]
    %v2405 = vld [vmem:[#allocation2 + $0x4968] sm:$0xff]
    %v2406 = vld [vmem:[#allocation2 + $0x4970] sm:$0xff]
    %v2407 = vld [vmem:[#allocation2 + $0x4978] sm:$0xff]
    %v2408 = vadd.f32 %v56, %v57
    %v2409 = vadd.f32 %v2408, %v58
    %v2410 = vadd.f32 %v2409, %v59
    %v2411 = vadd.f32 %v2410, %v60
    %v2412 = vadd.f32 %v2411, %v61
    %v2413 = vadd.f32 %v2412, %v62
    %v2414 = vadd.f32 %v2413, %v63
    %v2415 = vadd.f32 %v2414, %v64
    %v2416 = vadd.f32 %v2415, %v65
    %v2417 = vadd.f32 %v2416, %v66
    %v2418 = vadd.f32 %v2417, %v67
    %v2419 = vadd.f32 %v2418, %v68
    %v2420 = vadd.f32 %v2419, %v69
    %v2421 = vadd.f32 %v2420, %v70
    %v2422 = vadd.f32 %v2421, %v71
    %v2423 = vadd.f32 %v2422, %v72
    %v2424 = vadd.f32 %v2423, %v73
    %v2425 = vadd.f32 %v2424, %v74
    %v2426 = vadd.f32 %v2425, %v75
    %v2427 = vadd.f32 %v2426, %v76
    %v2428 = vadd.f32 %v2427, %v77
    %v2429 = vadd.f32 %v2428, %v78
    %v2430 = vadd.f32 %v2429, %v79
    %v2431 = vadd.f32 %v2430, %v80
    %v2432 = vadd.f32 %v2431, %v81
    %v2433 = vadd.f32 %v2432, %v82
    %v2434 = vadd.f32 %v2433, %v83
    %v2435 = vadd.f32 %v2434, %v84
    %v2436 = vadd.f32 %v2435, %v85
    %v2437 = vadd.f32 %v2436, %v86
    %v2438 = vadd.f32 %v2437, %v87
    %v2439 = vadd.f32 %v2438, %v88
    %v2440 = vadd.f32 %v2439, %v89
    %v2441 = vadd.f32 %v2440, %v90
    %v2442 = vadd.f32 %v2441, %v91
    %v2443 = vadd.f32 %v2442, %v92
    %v2444 = vadd.f32 %v2443, %v93
    %v2445 = vadd.f32 %v2444, %v94
    %v2446 = vadd.f32 %v2445, %v95
    %v2447 = vadd.f32 %v2446, %v96
    %v2448 = vadd.f32 %v2447, %v97
    %v2449 = vadd.f32 %v2448, %v98
    %v2450 = vadd.f32 %v2449, %v99
    %v2451 = vadd.f32 %v2450, %v100
    %v2452 = vadd.f32 %v2451, %v101
    %v2453 = vadd.f32 %v2452, %v102
    %v2454 = vadd.f32 %v2453, %v103
    %v2455 = vadd.f32 %v2454, %v104
    %v2456 = vadd.f32 %v2455, %v105
    %v2457 = vadd.f32 %v2456, %v106
    %v2458 = vadd.f32 %v2457, %v107
    %v2459 = vadd.f32 %v2458, %v108
    %v2460 = vadd.f32 %v2459, %v109
    %v2461 = vadd.f32 %v2460, %v110
    %v2462 = vadd.f32 %v2461, %v111
    %v2463 = vadd.f32 %v2462, %v112
    %v2464 = vadd.f32 %v2463, %v113
    %v2465 = vadd.f32 %v2464, %v114
    %v2466 = vadd.f32 %v2465, %v115
    %v2467 = vadd.f32 %v2466, %v116
    %v2468 = vadd.f32 %v2467, %v117
    %v2469 = vadd.f32 %v2468, %v118
    %v2470 = vadd.f32 %v2469, %v119
    %v2471 = vadd.f32 %v2470, %v120
    %v2472 = vadd.f32 %v2471, %v121
    %v2473 = vadd.f32 %v2472, %v122
    %v2474 = vadd.f32 %v2473, %v123
    %v2475 = vadd.f32 %v2474, %v124
    %v2476 = vadd.f32 %v2475, %v125
    %v2477 = vadd.f32 %v2476, %v126
    %v2478 = vadd.f32 %v2477, %v127
    %v2479 = vadd.f32 %v2478, %v128
    %v2480 = vadd.f32 %v2479, %v129
    %v2481 = vadd.f32 %v2480, %v130
    %v2482 = vadd.f32 %v2481, %v131
    %v2483 = vadd.f32 %v2482, %v132
    %v2484 = vadd.f32 %v2483, %v133
    %v2485 = vadd.f32 %v2484, %v134
    %v2486 = vadd.f32 %v2485, %v135
    %v2487 = vadd.f32 %v2486, %v136
    %v2488 = vadd.f32 %v2487, %v137
    %v2489 = vadd.f32 %v2488, %v138
    %v2490 = vadd.f32 %v2489, %v139
    %v2491 = vadd.f32 %v2490, %v140
    %v2492 = vadd.f32 %v2491, %v141
    %v2493 = vadd.f32 %v2492, %v142
    %v2494 = vadd.f32 %v2493, %v143
    %v2495 = vadd.f32 %v2494, %v144
    %v2496 = vadd.f32 %v2495, %v145
    %v2497 = vadd.f32 %v2496, %v146
    %v2498 = vadd.f32 %v2497, %v147
    %v2499 = vadd.f32 %v2498, %v148
    %v2500 = vadd.f32 %v2499, %v149
    %v2501 = vadd.f32 %v2500, %v150
    %v2502 = vadd.f32 %v2501, %v151
    %v2503 = vadd.f32 %v2502, %v152
    %v2504 = vadd.f32 %v2503, %v153
    %v2505 = vadd.f32 %v2504, %v154
    %v2506 = vadd.f32 %v2505, %v155
    %v2507 = vadd.f32 %v2506, %v156
    %v2508 = vadd.f32 %v2507, %v157
    %v2509 = vadd.f32 %v2508, %v158
    %v2510 = vadd.f32 %v2509, %v159
    %v2511 = vadd.f32 %v2510, %v160
    %v2512 = vadd.f32 %v2511, %v161
    %v2513 = vadd.f32 %v2512, %v162
    %v2514 = vadd.f32 %v2513, %v163
    %v2515 = vadd.f32 %v2514, %v164
    %v2516 = vadd.f32 %v2515, %v165
    %v2517 = vadd.f32 %v2516, %v166
    %v2518 = vadd.f32 %v2517, %v167
    %v2519 = vadd.f32 %v2518, %v168
    %v2520 = vadd.f32 %v2519, %v169
    %v2521 = vadd.f32 %v2520, %v170
    %v2522 = vadd.f32 %v2521, %v171
    %v2523 = vadd.f32 %v2522, %v172
    %v2524 = vadd.f32 %v2523, %v173
    %v2525 = vadd.f32 %v2524, %v174
    %v2526 = vadd.f32 %v2525, %v175
    %v2527 = vadd.f32 %v2526, %v176
    %v2528 = vadd.f32 %v2527, %v177
    %v2529 = vadd.f32 %v2528, %v178
    %v2530 = vadd.f32 %v2529, %v179
    %v2531 = vadd.f32 %v2530, %v180
    %v2532 = vadd.f32 %v2531, %v181
    %v2533 = vadd.f32 %v2532, %v182
    %v2534 = vadd.f32 %v2533, %v183
    %v2535 = vadd.f32 %v2534, %v184
    %v2536 = vadd.f32 %v2535, %v185
    %v2537 = vadd.f32 %v2536, %v186
    %v2538 = vadd.f32 %v2537, %v187
    %v2539 = vadd.f32 %v2538, %v188
    %v2540 = vadd.f32 %v2539, %v189
    %v2541 = vadd.f32 %v2540, %v190
    %v2542 = vadd.f32 %v2541, %v191
    %v2543 = vadd.f32 %v2542, %v192
    %v2544 = vadd.f32 %v2543, %v193
    %v2545 = vadd.f32 %v2544, %v194
    %v2546 = vadd.f32 %v2545, %v195
    %v2547 = vadd.f32 %v2546, %v196
    %v2548 = vadd.f32 %v2547, %v197
    %v2549 = vadd.f32 %v2548, %v198
    %v2550 = vadd.f32 %v2549, %v199
    %v2551 = vadd.f32 %v2550, %v200
    %v2552 = vadd.f32 %v2551, %v201
    %v2553 = vadd.f32 %v2552, %v202
    %v2554 = vadd.f32 %v2553, %v203
    %v2555 = vadd.f32 %v2554, %v204
    %v2556 = vadd.f32 %v2555, %v205
    %v2557 = vadd.f32 %v2556, %v206
    %v2558 = vadd.f32 %v2557, %v207
    %v2559 = vadd.f32 %v2558, %v208
    %v2560 = vadd.f32 %v2559, %v209
    %v2561 = vadd.f32 %v2560, %v210
    %v2562 = vadd.f32 %v2561, %v211
    %v2563 = vadd.f32 %v2562, %v212
    %v2564 = vadd.f32 %v2563, %v213
    %v2565 = vadd.f32 %v2564, %v214
    %v2566 = vadd.f32 %v2565, %v215
    %v2567 = vadd.f32 %v2566, %v216
    %v2568 = vadd.f32 %v2567, %v217
    %v2569 = vadd.f32 %v2568, %v218
    %v2570 = vadd.f32 %v2569, %v219
    %v2571 = vadd.f32 %v2570, %v220
    %v2572 = vadd.f32 %v2571, %v221
    %v2573 = vadd.f32 %v2572, %v222
    %v2574 = vadd.f32 %v2573, %v223
    %v2575 = vadd.f32 %v2574, %v224
    %v2576 = vadd.f32 %v2575, %v225
    %v2577 = vadd.f32 %v2576, %v226
    %v2578 = vadd.f32 %v2577, %v227
    %v2579 = vadd.f32 %v2578, %v228
    %v2580 = vadd.f32 %v2579, %v229
    %v2581 = vadd.f32 %v2580, %v230
    %v2582 = vadd.f32 %v2581, %v231
    %v2583 = vadd.f32 %v2582, %v232
    %v2584 = vadd.f32 %v2583, %v233
    %v2585 = vadd.f32 %v2584, %v234
    %v2586 = vadd.f32 %v2585, %v235
    %v2587 = vadd.f32 %v2586, %v236
    %v2588 = vadd.f32 %v2587, %v237
    %v2589 = vadd.f32 %v2588, %v238
    %v2590 = vadd.f32 %v2589, %v239
    %v2591 = vadd.f32 %v2590, %v240
    %v2592 = vadd.f32 %v2591, %v241
    %v2593 = vadd.f32 %v2592, %v242
    %v2594 = vadd.f32 %v2593, %v243
    %v2595 = vadd.f32 %v2594, %v244
    %v2596 = vadd.f32 %v2595, %v245
    %v2597 = vadd.f32 %v2596, %v246
    %v2598 = vadd.f32 %v2597, %v247
    %v2599 = vadd.f32 %v2598, %v248
    %v2600 = vadd.f32 %v2599, %v249
    %v2601 = vadd.f32 %v2600, %v250
    %v2602 = vadd.f32 %v2601, %v251
    %v2603 = vadd.f32 %v2602, %v252
    %v2604 = vadd.f32 %v2603, %v253
    %v2605 = vadd.f32 %v2604, %v254
    %v2606 = vadd.f32 %v2605, %v255
    %v2607 = vadd.f32 %v2606, %v256
    %v2608 = vadd.f32 %v2607, %v257
    %v2609 = vadd.f32 %v2608, %v258
    %v2610 = vadd.f32 %v2609, %v259
    %v2611 = vadd.f32 %v2610, %v260
    %v2612 = vadd.f32 %v2611, %v261
    %v2613 = vadd.f32 %v2612, %v262
    %v2614 = vadd.f32 %v2613, %v263
    %v2615 = vadd.f32 %v2614, %v264
    %v2616 = vadd.f32 %v2615, %v265
    %v2617 = vadd.f32 %v2616, %v266
    %v2618 = vadd.f32 %v2617, %v267
    %v2619 = vadd.f32 %v2618, %v268
    %v2620 = vadd.f32 %v2619, %v269
    %v2621 = vadd.f32 %v2620, %v270
    %v2622 = vadd.f32 %v2621, %v271
    %v2623 = vadd.f32 %v2622, %v272
    %v2624 = vadd.f32 %v2623, %v273
    %v2625 = vadd.f32 %v2624, %v274
    %v2626 = vadd.f32 %v2625, %v275
    %v2627 = vadd.f32 %v2626, %v276
    %v2628 = vadd.f32 %v2627, %v277
    %v2629 = vadd.f32 %v2628, %v278
    %v2630 = vadd.f32 %v2629, %v279
    %v2631 = vadd.f32 %v2630, %v280
    %v2632 = vadd.f32 %v2631, %v281
    %v2633 = vadd.f32 %v2632, %v282
    %v2634 = vadd.f32 %v2633, %v283
    %v2635 = vadd.f32 %v2634, %v284
    %v2636 = vadd.f32 %v2635, %v285
    %v2637 = vadd.f32 %v2636, %v286
    %v2638 = vadd.f32 %v2637, %v287
    %v2639 = vadd.f32 %v2638, %v288
    %v2640 = vadd.f32 %v2639, %v289
    %v2641 = vadd.f32 %v2640, %v290
    %v2642 = vadd.f32 %v2641, %v291
    %v2643 = vadd.f32 %v2642, %v292
    %v2644 = vadd.f32 %v2643, %v293
    %v2645 = vadd.f32 %v2644, %v294
    %v2646 = vadd.f32 %v2645, %v295
    %v2647 = vadd.f32 %v2646, %v296
    %v2648 = vadd.f32 %v2647, %v297
    %v2649 = vadd.f32 %v2648, %v298
    %v2650 = vadd.f32 %v2649, %v299
    %v2651 = vadd.f32 %v2650, %v300
    %v2652 = vadd.f32 %v2651, %v301
    %v2653 = vadd.f32 %v2652, %v302
    %v2654 = vadd.f32 %v2653, %v303
    %v2655 = vadd.f32 %v2654, %v304
    %v2656 = vadd.f32 %v2655, %v305
    %v2657 = vadd.f32 %v2656, %v306
    %v2658 = vadd.f32 %v2657, %v307
    %v2659 = vadd.f32 %v2658, %v308
    %v2660 = vadd.f32 %v2659, %v309
    %v2661 = vadd.f32 %v2660, %v310
    %v2662 = vadd.f32 %v2661, %v311
    %v2663 = vadd.f32 %v2662, %v312
    %v2664 = vadd.f32 %v2663, %v313
    %v2665 = vadd.f32 %v2664, %v314
    %v2666 = vadd.f32 %v2665, %v315
    %v2667 = vadd.f32 %v2666, %v316
    %v2668 = vadd.f32 %v2667, %v317
    %v2669 = vadd.f32 %v2668, %v318
    %v2670 = vadd.f32 %v2669, %v319
    %v2671 = vadd.f32 %v2670, %v320
    %v2672 = vadd.f32 %v2671, %v321
    %v2673 = vadd.f32 %v2672, %v322
    %v2674 = vadd.f32 %v2673, %v323
    %v2675 = vadd.f32 %v2674, %v324
    %v2676 = vadd.f32 %v2675, %v325
    %v2677 = vadd.f32 %v2676, %v326
    %v2678 = vadd.f32 %v2677, %v327
    %v2679 = vadd.f32 %v2678, %v328
    %v2680 = vadd.f32 %v2679, %v329
    %v2681 = vadd.f32 %v2680, %v330
    %v2682 = vadd.f32 %v2681, %v331
    %v2683 = vadd.f32 %v2682, %v332
    %v2684 = vadd.f32 %v2683, %v333
    %v2685 = vadd.f32 %v2684, %v334
    %v2686 = vadd.f32 %v2685, %v335
    %v2687 = vadd.f32 %v2686, %v336
    %v2688 = vadd.f32 %v2687, %v337
    %v2689 = vadd.f32 %v2688, %v338
    %v2690 = vadd.f32 %v2689, %v339
    %v2691 = vadd.f32 %v2690, %v340
    %v2692 = vadd.f32 %v2691, %v341
    %v2693 = vadd.f32 %v2692, %v342
    %v2694 = vadd.f32 %v2693, %v343
    %v2695 = vadd.f32 %v2694, %v344
    %v2696 = vadd.f32 %v2695, %v345
    %v2697 = vadd.f32 %v2696, %v346
    %v2698 = vadd.f32 %v2697, %v347
    %v2699 = vadd.f32 %v2698, %v348
    %v2700 = vadd.f32 %v2699, %v349
    %v2701 = vadd.f32 %v2700, %v350
    %v2702 = vadd.f32 %v2701, %v351
    %v2703 = vadd.f32 %v2702, %v352
    %v2704 = vadd.f32 %v2703, %v353
    %v2705 = vadd.f32 %v2704, %v354
    %v2706 = vadd.f32 %v2705, %v355
    %v2707 = vadd.f32 %v2706, %v356
    %v2708 = vadd.f32 %v2707, %v357
    %v2709 = vadd.f32 %v2708, %v358
    %v2710 = vadd.f32 %v2709, %v359
    %v2711 = vadd.f32 %v2710, %v360
    %v2712 = vadd.f32 %v2711, %v361
    %v2713 = vadd.f32 %v2712, %v362
    %v2714 = vadd.f32 %v2713, %v363
    %v2715 = vadd.f32 %v2714, %v364
    %v2716 = vadd.f32 %v2715, %v365
    %v2717 = vadd.f32 %v2716, %v366
    %v2718 = vadd.f32 %v2717, %v367
    %v2719 = vadd.f32 %v2718, %v368
    %v2720 = vadd.f32 %v2719, %v369
    %v2721 = vadd.f32 %v2720, %v370
    %v2722 = vadd.f32 %v2721, %v371
    %v2723 = vadd.f32 %v2722, %v372
    %v2724 = vadd.f32 %v2723, %v373
    %v2725 = vadd.f32 %v2724, %v374
    %v2726 = vadd.f32 %v2725, %v375
    %v2727 = vadd.f32 %v2726, %v376
    %v2728 = vadd.f32 %v2727, %v377
    %v2729 = vadd.f32 %v2728, %v378
    %v2730 = vadd.f32 %v2729, %v379
    %v2731 = vadd.f32 %v2730, %v380
    %v2732 = vadd.f32 %v2731, %v381
    %v2733 = vadd.f32 %v2732, %v382
    %v2734 = vadd.f32 %v2733, %v383
    %v2735 = vadd.f32 %v2734, %v384
    %v2736 = vadd.f32 %v2735, %v385
    %v2737 = vadd.f32 %v2736, %v386
    %v2738 = vadd.f32 %v2737, %v387
    %v2739 = vadd.f32 %v2738, %v388
    %v2740 = vadd.f32 %v2739, %v389
    %v2741 = vadd.f32 %v2740, %v390
    %v2742 = vadd.f32 %v2741, %v391
    %v2743 = vadd.f32 %v2742, %v392
    %v2744 = vadd.f32 %v2743, %v393
    %v2745 = vadd.f32 %v2744, %v394
    %v2746 = vadd.f32 %v2745, %v395
    %v2747 = vadd.f32 %v2746, %v396
    %v2748 = vadd.f32 %v2747, %v397
    %v2749 = vadd.f32 %v2748, %v398
    %v2750 = vadd.f32 %v2749, %v399
    %v2751 = vadd.f32 %v2750, %v400
    %v2752 = vadd.f32 %v2751, %v401
    %v2753 = vadd.f32 %v2752, %v402
    %v2754 = vadd.f32 %v2753, %v403
    %v2755 = vadd.f32 %v2754, %v404
    %v2756 = vadd.f32 %v2755, %v405
    %v2757 = vadd.f32 %v2756, %v406
    %v2758 = vadd.f32 %v2757, %v407
    %v2759 = vadd.f32 %v2758, %v408
    %v2760 = vadd.f32 %v2759, %v409
    %v2761 = vadd.f32 %v2760, %v410
    %v2762 = vadd.f32 %v2761, %v411
    %v2763 = vadd.f32 %v2762, %v412
    %v2764 = vadd.f32 %v2763, %v413
    %v2765 = vadd.f32 %v2764, %v414
    %v2766 = vadd.f32 %v2765, %v415
    %v2767 = vadd.f32 %v2766, %v416
    %v2768 = vadd.f32 %v2767, %v417
    %v2769 = vadd.f32 %v2768, %v418
    %v2770 = vadd.f32 %v2769, %v419
    %v2771 = vadd.f32 %v2770, %v420
    %v2772 = vadd.f32 %v2771, %v421
    %v2773 = vadd.f32 %v2772, %v422
    %v2774 = vadd.f32 %v2773, %v423
    %v2775 = vadd.f32 %v2774, %v424
    %v2776 = vadd.f32 %v2775, %v425
    %v2777 = vadd.f32 %v2776, %v426
    %v2778 = vadd.f32 %v2777, %v427
    %v2779 = vadd.f32 %v2778, %v428
    %v2780 = vadd.f32 %v2779, %v429
    %v2781 = vadd.f32 %v2780, %v430
    %v2782 = vadd.f32 %v2781, %v431
    %v2783 = vadd.f32 %v2782, %v432
    %v2784 = vadd.f32 %v2783, %v433
    %v2785 = vadd.f32 %v2784, %v434
    %v2786 = vadd.f32 %v2785, %v435
    %v2787 = vadd.f32 %v2786, %v436
    %v2788 = vadd.f32 %v2787, %v437
    %v2789 = vadd.f32 %v2788, %v438
    %v2790 = vadd.f32 %v2789, %v439
    %v2791 = vadd.f32 %v2790, %v440
    %v2792 = vadd.f32 %v2791, %v441
    %v2793 = vadd.f32 %v2792, %v442
    %v2794 = vadd.f32 %v2793, %v443
    %v2795 = vadd.f32 %v2794, %v444
    %v2796 = vadd.f32 %v2795, %v445
    %v2797 = vadd.f32 %v2796, %v446
    %v2798 = vadd.f32 %v2797, %v447
    %2799 = vadd.xlane.f32.xlu0 %v2798
    %v2800 = vpop.xlane.xlu0 %2799
    %v2801 = vadd.f32 %v448, %v449
    %v2802 = vadd.f32 %v2801, %v450
    %v2803 = vadd.f32 %v2802, %v451
    %v2804 = vadd.f32 %v2803, %v452
    %v2805 = vadd.f32 %v2804, %v453
    %v2806 = vadd.f32 %v2805, %v454
    %v2807 = vadd.f32 %v2806, %v455
    %v2808 = vadd.f32 %v2807, %v456
    %v2809 = vadd.f32 %v2808, %v457
    %v2810 = vadd.f32 %v2809, %v458
    %v2811 = vadd.f32 %v2810, %v459
    %v2812 = vadd.f32 %v2811, %v460
    %v2813 = vadd.f32 %v2812, %v461
    %v2814 = vadd.f32 %v2813, %v462
    %v2815 = vadd.f32 %v2814, %v463
    %v2816 = vadd.f32 %v2815, %v464
    %v2817 = vadd.f32 %v2816, %v465
    %v2818 = vadd.f32 %v2817, %v466
    %v2819 = vadd.f32 %v2818, %v467
    %v2820 = vadd.f32 %v2819, %v468
    %v2821 = vadd.f32 %v2820, %v469
    %v2822 = vadd.f32 %v2821, %v470
    %v2823 = vadd.f32 %v2822, %v471
    %v2824 = vadd.f32 %v2823, %v472
    %v2825 = vadd.f32 %v2824, %v473
    %v2826 = vadd.f32 %v2825, %v474
    %v2827 = vadd.f32 %v2826, %v475
    %v2828 = vadd.f32 %v2827, %v476
    %v2829 = vadd.f32 %v2828, %v477
    %v2830 = vadd.f32 %v2829, %v478
    %v2831 = vadd.f32 %v2830, %v479
    %v2832 = vadd.f32 %v2831, %v480
    %v2833 = vadd.f32 %v2832, %v481
    %v2834 = vadd.f32 %v2833, %v482
    %v2835 = vadd.f32 %v2834, %v483
    %v2836 = vadd.f32 %v2835, %v484
    %v2837 = vadd.f32 %v2836, %v485
    %v2838 = vadd.f32 %v2837, %v486
    %v2839 = vadd.f32 %v2838, %v487
    %v2840 = vadd.f32 %v2839, %v488
    %v2841 = vadd.f32 %v2840, %v489
    %v2842 = vadd.f32 %v2841, %v490
    %v2843 = vadd.f32 %v2842, %v491
    %v2844 = vadd.f32 %v2843, %v492
    %v2845 = vadd.f32 %v2844, %v493
    %v2846 = vadd.f32 %v2845, %v494
    %v2847 = vadd.f32 %v2846, %v495
    %v2848 = vadd.f32 %v2847, %v496
    %v2849 = vadd.f32 %v2848, %v497
    %v2850 = vadd.f32 %v2849, %v498
    %v2851 = vadd.f32 %v2850, %v499
    %v2852 = vadd.f32 %v2851, %v500
    %v2853 = vadd.f32 %v2852, %v501
    %v2854 = vadd.f32 %v2853, %v502
    %v2855 = vadd.f32 %v2854, %v503
    %v2856 = vadd.f32 %v2855, %v504
    %v2857 = vadd.f32 %v2856, %v505
    %v2858 = vadd.f32 %v2857, %v506
    %v2859 = vadd.f32 %v2858, %v507
    %v2860 = vadd.f32 %v2859, %v508
    %v2861 = vadd.f32 %v2860, %v509
    %v2862 = vadd.f32 %v2861, %v510
    %v2863 = vadd.f32 %v2862, %v511
    %v2864 = vadd.f32 %v2863, %v512
    %v2865 = vadd.f32 %v2864, %v513
    %v2866 = vadd.f32 %v2865, %v514
    %v2867 = vadd.f32 %v2866, %v515
    %v2868 = vadd.f32 %v2867, %v516
    %v2869 = vadd.f32 %v2868, %v517
    %v2870 = vadd.f32 %v2869, %v518
    %v2871 = vadd.f32 %v2870, %v519
    %v2872 = vadd.f32 %v2871, %v520
    %v2873 = vadd.f32 %v2872, %v521
    %v2874 = vadd.f32 %v2873, %v522
    %v2875 = vadd.f32 %v2874, %v523
    %v2876 = vadd.f32 %v2875, %v524
    %v2877 = vadd.f32 %v2876, %v525
    %v2878 = vadd.f32 %v2877, %v526
    %v2879 = vadd.f32 %v2878, %v527
    %v2880 = vadd.f32 %v2879, %v528
    %v2881 = vadd.f32 %v2880, %v529
    %v2882 = vadd.f32 %v2881, %v530
    %v2883 = vadd.f32 %v2882, %v531
    %v2884 = vadd.f32 %v2883, %v532
    %v2885 = vadd.f32 %v2884, %v533
    %v2886 = vadd.f32 %v2885, %v534
    %v2887 = vadd.f32 %v2886, %v535
    %v2888 = vadd.f32 %v2887, %v536
    %v2889 = vadd.f32 %v2888, %v537
    %v2890 = vadd.f32 %v2889, %v538
    %v2891 = vadd.f32 %v2890, %v539
    %v2892 = vadd.f32 %v2891, %v540
    %v2893 = vadd.f32 %v2892, %v541
    %v2894 = vadd.f32 %v2893, %v542
    %v2895 = vadd.f32 %v2894, %v543
    %v2896 = vadd.f32 %v2895, %v544
    %v2897 = vadd.f32 %v2896, %v545
    %v2898 = vadd.f32 %v2897, %v546
    %v2899 = vadd.f32 %v2898, %v547
    %v2900 = vadd.f32 %v2899, %v548
    %v2901 = vadd.f32 %v2900, %v549
    %v2902 = vadd.f32 %v2901, %v550
    %v2903 = vadd.f32 %v2902, %v551
    %v2904 = vadd.f32 %v2903, %v552
    %v2905 = vadd.f32 %v2904, %v553
    %v2906 = vadd.f32 %v2905, %v554
    %v2907 = vadd.f32 %v2906, %v555
    %v2908 = vadd.f32 %v2907, %v556
    %v2909 = vadd.f32 %v2908, %v557
    %v2910 = vadd.f32 %v2909, %v558
    %v2911 = vadd.f32 %v2910, %v559
    %v2912 = vadd.f32 %v2911, %v560
    %v2913 = vadd.f32 %v2912, %v561
    %v2914 = vadd.f32 %v2913, %v562
    %v2915 = vadd.f32 %v2914, %v563
    %v2916 = vadd.f32 %v2915, %v564
    %v2917 = vadd.f32 %v2916, %v565
    %v2918 = vadd.f32 %v2917, %v566
    %v2919 = vadd.f32 %v2918, %v567
    %v2920 = vadd.f32 %v2919, %v568
    %v2921 = vadd.f32 %v2920, %v569
    %v2922 = vadd.f32 %v2921, %v570
    %v2923 = vadd.f32 %v2922, %v571
    %v2924 = vadd.f32 %v2923, %v572
    %v2925 = vadd.f32 %v2924, %v573
    %v2926 = vadd.f32 %v2925, %v574
    %v2927 = vadd.f32 %v2926, %v575
    %v2928 = vadd.f32 %v2927, %v576
    %v2929 = vadd.f32 %v2928, %v577
    %v2930 = vadd.f32 %v2929, %v578
    %v2931 = vadd.f32 %v2930, %v579
    %v2932 = vadd.f32 %v2931, %v580
    %v2933 = vadd.f32 %v2932, %v581
    %v2934 = vadd.f32 %v2933, %v582
    %v2935 = vadd.f32 %v2934, %v583
    %v2936 = vadd.f32 %v2935, %v584
    %v2937 = vadd.f32 %v2936, %v585
    %v2938 = vadd.f32 %v2937, %v586
    %v2939 = vadd.f32 %v2938, %v587
    %v2940 = vadd.f32 %v2939, %v588
    %v2941 = vadd.f32 %v2940, %v589
    %v2942 = vadd.f32 %v2941, %v590
    %v2943 = vadd.f32 %v2942, %v591
    %v2944 = vadd.f32 %v2943, %v592
    %v2945 = vadd.f32 %v2944, %v593
    %v2946 = vadd.f32 %v2945, %v594
    %v2947 = vadd.f32 %v2946, %v595
    %v2948 = vadd.f32 %v2947, %v596
    %v2949 = vadd.f32 %v2948, %v597
    %v2950 = vadd.f32 %v2949, %v598
    %v2951 = vadd.f32 %v2950, %v599
    %v2952 = vadd.f32 %v2951, %v600
    %v2953 = vadd.f32 %v2952, %v601
    %v2954 = vadd.f32 %v2953, %v602
    %v2955 = vadd.f32 %v2954, %v603
    %v2956 = vadd.f32 %v2955, %v604
    %v2957 = vadd.f32 %v2956, %v605
    %v2958 = vadd.f32 %v2957, %v606
    %v2959 = vadd.f32 %v2958, %v607
    %v2960 = vadd.f32 %v2959, %v608
    %v2961 = vadd.f32 %v2960, %v609
    %v2962 = vadd.f32 %v2961, %v610
    %v2963 = vadd.f32 %v2962, %v611
    %v2964 = vadd.f32 %v2963, %v612
    %v2965 = vadd.f32 %v2964, %v613
    %v2966 = vadd.f32 %v2965, %v614
    %v2967 = vadd.f32 %v2966, %v615
    %v2968 = vadd.f32 %v2967, %v616
    %v2969 = vadd.f32 %v2968, %v617
    %v2970 = vadd.f32 %v2969, %v618
    %v2971 = vadd.f32 %v2970, %v619
    %v2972 = vadd.f32 %v2971, %v620
    %v2973 = vadd.f32 %v2972, %v621
    %v2974 = vadd.f32 %v2973, %v622
    %v2975 = vadd.f32 %v2974, %v623
    %v2976 = vadd.f32 %v2975, %v624
    %v2977 = vadd.f32 %v2976, %v625
    %v2978 = vadd.f32 %v2977, %v626
    %v2979 = vadd.f32 %v2978, %v627
    %v2980 = vadd.f32 %v2979, %v628
    %v2981 = vadd.f32 %v2980, %v629
    %v2982 = vadd.f32 %v2981, %v630
    %v2983 = vadd.f32 %v2982, %v631
    %v2984 = vadd.f32 %v2983, %v632
    %v2985 = vadd.f32 %v2984, %v633
    %v2986 = vadd.f32 %v2985, %v634
    %v2987 = vadd.f32 %v2986, %v635
    %v2988 = vadd.f32 %v2987, %v636
    %v2989 = vadd.f32 %v2988, %v637
    %v2990 = vadd.f32 %v2989, %v638
    %v2991 = vadd.f32 %v2990, %v639
    %v2992 = vadd.f32 %v2991, %v640
    %v2993 = vadd.f32 %v2992, %v641
    %v2994 = vadd.f32 %v2993, %v642
    %v2995 = vadd.f32 %v2994, %v643
    %v2996 = vadd.f32 %v2995, %v644
    %v2997 = vadd.f32 %v2996, %v645
    %v2998 = vadd.f32 %v2997, %v646
    %v2999 = vadd.f32 %v2998, %v647
    %v3000 = vadd.f32 %v2999, %v648
    %v3001 = vadd.f32 %v3000, %v649
    %v3002 = vadd.f32 %v3001, %v650
    %v3003 = vadd.f32 %v3002, %v651
    %v3004 = vadd.f32 %v3003, %v652
    %v3005 = vadd.f32 %v3004, %v653
    %v3006 = vadd.f32 %v3005, %v654
    %v3007 = vadd.f32 %v3006, %v655
    %v3008 = vadd.f32 %v3007, %v656
    %v3009 = vadd.f32 %v3008, %v657
    %v3010 = vadd.f32 %v3009, %v658
    %v3011 = vadd.f32 %v3010, %v659
    %v3012 = vadd.f32 %v3011, %v660
    %v3013 = vadd.f32 %v3012, %v661
    %v3014 = vadd.f32 %v3013, %v662
    %v3015 = vadd.f32 %v3014, %v663
    %v3016 = vadd.f32 %v3015, %v664
    %v3017 = vadd.f32 %v3016, %v665
    %v3018 = vadd.f32 %v3017, %v666
    %v3019 = vadd.f32 %v3018, %v667
    %v3020 = vadd.f32 %v3019, %v668
    %v3021 = vadd.f32 %v3020, %v669
    %v3022 = vadd.f32 %v3021, %v670
    %v3023 = vadd.f32 %v3022, %v671
    %v3024 = vadd.f32 %v3023, %v672
    %v3025 = vadd.f32 %v3024, %v673
    %v3026 = vadd.f32 %v3025, %v674
    %v3027 = vadd.f32 %v3026, %v675
    %v3028 = vadd.f32 %v3027, %v676
    %v3029 = vadd.f32 %v3028, %v677
    %v3030 = vadd.f32 %v3029, %v678
    %v3031 = vadd.f32 %v3030, %v679
    %v3032 = vadd.f32 %v3031, %v680
    %v3033 = vadd.f32 %v3032, %v681
    %v3034 = vadd.f32 %v3033, %v682
    %v3035 = vadd.f32 %v3034, %v683
    %v3036 = vadd.f32 %v3035, %v684
    %v3037 = vadd.f32 %v3036, %v685
    %v3038 = vadd.f32 %v3037, %v686
    %v3039 = vadd.f32 %v3038, %v687
    %v3040 = vadd.f32 %v3039, %v688
    %v3041 = vadd.f32 %v3040, %v689
    %v3042 = vadd.f32 %v3041, %v690
    %v3043 = vadd.f32 %v3042, %v691
    %v3044 = vadd.f32 %v3043, %v692
    %v3045 = vadd.f32 %v3044, %v693
    %v3046 = vadd.f32 %v3045, %v694
    %v3047 = vadd.f32 %v3046, %v695
    %v3048 = vadd.f32 %v3047, %v696
    %v3049 = vadd.f32 %v3048, %v697
    %v3050 = vadd.f32 %v3049, %v698
    %v3051 = vadd.f32 %v3050, %v699
    %v3052 = vadd.f32 %v3051, %v700
    %v3053 = vadd.f32 %v3052, %v701
    %v3054 = vadd.f32 %v3053, %v702
    %v3055 = vadd.f32 %v3054, %v703
    %v3056 = vadd.f32 %v3055, %v704
    %v3057 = vadd.f32 %v3056, %v705
    %v3058 = vadd.f32 %v3057, %v706
    %v3059 = vadd.f32 %v3058, %v707
    %v3060 = vadd.f32 %v3059, %v708
    %v3061 = vadd.f32 %v3060, %v709
    %v3062 = vadd.f32 %v3061, %v710
    %v3063 = vadd.f32 %v3062, %v711
    %v3064 = vadd.f32 %v3063, %v712
    %v3065 = vadd.f32 %v3064, %v713
    %v3066 = vadd.f32 %v3065, %v714
    %v3067 = vadd.f32 %v3066, %v715
    %v3068 = vadd.f32 %v3067, %v716
    %v3069 = vadd.f32 %v3068, %v717
    %v3070 = vadd.f32 %v3069, %v718
    %v3071 = vadd.f32 %v3070, %v719
    %v3072 = vadd.f32 %v3071, %v720
    %v3073 = vadd.f32 %v3072, %v721
    %v3074 = vadd.f32 %v3073, %v722
    %v3075 = vadd.f32 %v3074, %v723
    %v3076 = vadd.f32 %v3075, %v724
    %v3077 = vadd.f32 %v3076, %v725
    %v3078 = vadd.f32 %v3077, %v726
    %v3079 = vadd.f32 %v3078, %v727
    %v3080 = vadd.f32 %v3079, %v728
    %v3081 = vadd.f32 %v3080, %v729
    %v3082 = vadd.f32 %v3081, %v730
    %v3083 = vadd.f32 %v3082, %v731
    %v3084 = vadd.f32 %v3083, %v732
    %v3085 = vadd.f32 %v3084, %v733
    %v3086 = vadd.f32 %v3085, %v734
    %v3087 = vadd.f32 %v3086, %v735
    %v3088 = vadd.f32 %v3087, %v736
    %v3089 = vadd.f32 %v3088, %v737
    %v3090 = vadd.f32 %v3089, %v738
    %v3091 = vadd.f32 %v3090, %v739
    %v3092 = vadd.f32 %v3091, %v740
    %v3093 = vadd.f32 %v3092, %v741
    %v3094 = vadd.f32 %v3093, %v742
    %v3095 = vadd.f32 %v3094, %v743
    %v3096 = vadd.f32 %v3095, %v744
    %v3097 = vadd.f32 %v3096, %v745
    %v3098 = vadd.f32 %v3097, %v746
    %v3099 = vadd.f32 %v3098, %v747
    %v3100 = vadd.f32 %v3099, %v748
    %v3101 = vadd.f32 %v3100, %v749
    %v3102 = vadd.f32 %v3101, %v750
    %v3103 = vadd.f32 %v3102, %v751
    %v3104 = vadd.f32 %v3103, %v752
    %v3105 = vadd.f32 %v3104, %v753
    %v3106 = vadd.f32 %v3105, %v754
    %v3107 = vadd.f32 %v3106, %v755
    %v3108 = vadd.f32 %v3107, %v756
    %v3109 = vadd.f32 %v3108, %v757
    %v3110 = vadd.f32 %v3109, %v758
    %v3111 = vadd.f32 %v3110, %v759
    %v3112 = vadd.f32 %v3111, %v760
    %v3113 = vadd.f32 %v3112, %v761
    %v3114 = vadd.f32 %v3113, %v762
    %v3115 = vadd.f32 %v3114, %v763
    %v3116 = vadd.f32 %v3115, %v764
    %v3117 = vadd.f32 %v3116, %v765
    %v3118 = vadd.f32 %v3117, %v766
    %v3119 = vadd.f32 %v3118, %v767
    %v3120 = vadd.f32 %v3119, %v768
    %v3121 = vadd.f32 %v3120, %v769
    %v3122 = vadd.f32 %v3121, %v770
    %v3123 = vadd.f32 %v3122, %v771
    %v3124 = vadd.f32 %v3123, %v772
    %v3125 = vadd.f32 %v3124, %v773
    %v3126 = vadd.f32 %v3125, %v774
    %v3127 = vadd.f32 %v3126, %v775
    %v3128 = vadd.f32 %v3127, %v776
    %v3129 = vadd.f32 %v3128, %v777
    %v3130 = vadd.f32 %v3129, %v778
    %v3131 = vadd.f32 %v3130, %v779
    %v3132 = vadd.f32 %v3131, %v780
    %v3133 = vadd.f32 %v3132, %v781
    %v3134 = vadd.f32 %v3133, %v782
    %v3135 = vadd.f32 %v3134, %v783
    %v3136 = vadd.f32 %v3135, %v784
    %v3137 = vadd.f32 %v3136, %v785
    %v3138 = vadd.f32 %v3137, %v786
    %v3139 = vadd.f32 %v3138, %v787
    %v3140 = vadd.f32 %v3139, %v788
    %v3141 = vadd.f32 %v3140, %v789
    %v3142 = vadd.f32 %v3141, %v790
    %v3143 = vadd.f32 %v3142, %v791
    %v3144 = vadd.f32 %v3143, %v792
    %v3145 = vadd.f32 %v3144, %v793
    %v3146 = vadd.f32 %v3145, %v794
    %v3147 = vadd.f32 %v3146, %v795
    %v3148 = vadd.f32 %v3147, %v796
    %v3149 = vadd.f32 %v3148, %v797
    %v3150 = vadd.f32 %v3149, %v798
    %v3151 = vadd.f32 %v3150, %v799
    %v3152 = vadd.f32 %v3151, %v800
    %v3153 = vadd.f32 %v3152, %v801
    %v3154 = vadd.f32 %v3153, %v802
    %v3155 = vadd.f32 %v3154, %v803
    %v3156 = vadd.f32 %v3155, %v804
    %v3157 = vadd.f32 %v3156, %v805
    %v3158 = vadd.f32 %v3157, %v806
    %v3159 = vadd.f32 %v3158, %v807
    %v3160 = vadd.f32 %v3159, %v808
    %v3161 = vadd.f32 %v3160, %v809
    %v3162 = vadd.f32 %v3161, %v810
    %v3163 = vadd.f32 %v3162, %v811
    %v3164 = vadd.f32 %v3163, %v812
    %v3165 = vadd.f32 %v3164, %v813
    %v3166 = vadd.f32 %v3165, %v814
    %v3167 = vadd.f32 %v3166, %v815
    %v3168 = vadd.f32 %v3167, %v816
    %v3169 = vadd.f32 %v3168, %v817
    %v3170 = vadd.f32 %v3169, %v818
    %v3171 = vadd.f32 %v3170, %v819
    %v3172 = vadd.f32 %v3171, %v820
    %v3173 = vadd.f32 %v3172, %v821
    %v3174 = vadd.f32 %v3173, %v822
    %v3175 = vadd.f32 %v3174, %v823
    %v3176 = vadd.f32 %v3175, %v824
    %v3177 = vadd.f32 %v3176, %v825
    %v3178 = vadd.f32 %v3177, %v826
    %v3179 = vadd.f32 %v3178, %v827
    %v3180 = vadd.f32 %v3179, %v828
    %v3181 = vadd.f32 %v3180, %v829
    %v3182 = vadd.f32 %v3181, %v830
    %v3183 = vadd.f32 %v3182, %v831
    %v3184 = vadd.f32 %v3183, %v832
    %v3185 = vadd.f32 %v3184, %v833
    %v3186 = vadd.f32 %v3185, %v834
    %v3187 = vadd.f32 %v3186, %v835
    %v3188 = vadd.f32 %v3187, %v836
    %v3189 = vadd.f32 %v3188, %v837
    %v3190 = vadd.f32 %v3189, %v838
    %v3191 = vadd.f32 %v3190, %v839
    %3192 = vadd.xlane.f32.xlu0 %v3191
    %v3193 = vpop.xlane.xlu0 %3192
    %v3194 = vadd.f32 %v840, %v841
    %v3195 = vadd.f32 %v3194, %v842
    %v3196 = vadd.f32 %v3195, %v843
    %v3197 = vadd.f32 %v3196, %v844
    %v3198 = vadd.f32 %v3197, %v845
    %v3199 = vadd.f32 %v3198, %v846
    %v3200 = vadd.f32 %v3199, %v847
    %v3201 = vadd.f32 %v3200, %v848
    %v3202 = vadd.f32 %v3201, %v849
    %v3203 = vadd.f32 %v3202, %v850
    %v3204 = vadd.f32 %v3203, %v851
    %v3205 = vadd.f32 %v3204, %v852
    %v3206 = vadd.f32 %v3205, %v853
    %v3207 = vadd.f32 %v3206, %v854
    %v3208 = vadd.f32 %v3207, %v855
    %v3209 = vadd.f32 %v3208, %v856
    %v3210 = vadd.f32 %v3209, %v857
    %v3211 = vadd.f32 %v3210, %v858
    %v3212 = vadd.f32 %v3211, %v859
    %v3213 = vadd.f32 %v3212, %v860
    %v3214 = vadd.f32 %v3213, %v861
    %v3215 = vadd.f32 %v3214, %v862
    %v3216 = vadd.f32 %v3215, %v863
    %v3217 = vadd.f32 %v3216, %v864
    %v3218 = vadd.f32 %v3217, %v865
    %v3219 = vadd.f32 %v3218, %v866
    %v3220 = vadd.f32 %v3219, %v867
    %v3221 = vadd.f32 %v3220, %v868
    %v3222 = vadd.f32 %v3221, %v869
    %v3223 = vadd.f32 %v3222, %v870
    %v3224 = vadd.f32 %v3223, %v871
    %v3225 = vadd.f32 %v3224, %v872
    %v3226 = vadd.f32 %v3225, %v873
    %v3227 = vadd.f32 %v3226, %v874
    %v3228 = vadd.f32 %v3227, %v875
    %v3229 = vadd.f32 %v3228, %v876
    %v3230 = vadd.f32 %v3229, %v877
    %v3231 = vadd.f32 %v3230, %v878
    %v3232 = vadd.f32 %v3231, %v879
    %v3233 = vadd.f32 %v3232, %v880
    %v3234 = vadd.f32 %v3233, %v881
    %v3235 = vadd.f32 %v3234, %v882
    %v3236 = vadd.f32 %v3235, %v883
    %v3237 = vadd.f32 %v3236, %v884
    %v3238 = vadd.f32 %v3237, %v885
    %v3239 = vadd.f32 %v3238, %v886
    %v3240 = vadd.f32 %v3239, %v887
    %v3241 = vadd.f32 %v3240, %v888
    %v3242 = vadd.f32 %v3241, %v889
    %v3243 = vadd.f32 %v3242, %v890
    %v3244 = vadd.f32 %v3243, %v891
    %v3245 = vadd.f32 %v3244, %v892
    %v3246 = vadd.f32 %v3245, %v893
    %v3247 = vadd.f32 %v3246, %v894
    %v3248 = vadd.f32 %v3247, %v895
    %v3249 = vadd.f32 %v3248, %v896
    %v3250 = vadd.f32 %v3249, %v897
    %v3251 = vadd.f32 %v3250, %v898
    %v3252 = vadd.f32 %v3251, %v899
    %v3253 = vadd.f32 %v3252, %v900
    %v3254 = vadd.f32 %v3253, %v901
    %v3255 = vadd.f32 %v3254, %v902
    %v3256 = vadd.f32 %v3255, %v903
    %v3257 = vadd.f32 %v3256, %v904
    %v3258 = vadd.f32 %v3257, %v905
    %v3259 = vadd.f32 %v3258, %v906
    %v3260 = vadd.f32 %v3259, %v907
    %v3261 = vadd.f32 %v3260, %v908
    %v3262 = vadd.f32 %v3261, %v909
    %v3263 = vadd.f32 %v3262, %v910
    %v3264 = vadd.f32 %v3263, %v911
    %v3265 = vadd.f32 %v3264, %v912
    %v3266 = vadd.f32 %v3265, %v913
    %v3267 = vadd.f32 %v3266, %v914
    %v3268 = vadd.f32 %v3267, %v915
    %v3269 = vadd.f32 %v3268, %v916
    %v3270 = vadd.f32 %v3269, %v917
    %v3271 = vadd.f32 %v3270, %v918
    %v3272 = vadd.f32 %v3271, %v919
    %v3273 = vadd.f32 %v3272, %v920
    %v3274 = vadd.f32 %v3273, %v921
    %v3275 = vadd.f32 %v3274, %v922
    %v3276 = vadd.f32 %v3275, %v923
    %v3277 = vadd.f32 %v3276, %v924
    %v3278 = vadd.f32 %v3277, %v925
    %v3279 = vadd.f32 %v3278, %v926
    %v3280 = vadd.f32 %v3279, %v927
    %v3281 = vadd.f32 %v3280, %v928
    %v3282 = vadd.f32 %v3281, %v929
    %v3283 = vadd.f32 %v3282, %v930
    %v3284 = vadd.f32 %v3283, %v931
    %v3285 = vadd.f32 %v3284, %v932
    %v3286 = vadd.f32 %v3285, %v933
    %v3287 = vadd.f32 %v3286, %v934
    %v3288 = vadd.f32 %v3287, %v935
    %v3289 = vadd.f32 %v3288, %v936
    %v3290 = vadd.f32 %v3289, %v937
    %v3291 = vadd.f32 %v3290, %v938
    %v3292 = vadd.f32 %v3291, %v939
    %v3293 = vadd.f32 %v3292, %v940
    %v3294 = vadd.f32 %v3293, %v941
    %v3295 = vadd.f32 %v3294, %v942
    %v3296 = vadd.f32 %v3295, %v943
    %v3297 = vadd.f32 %v3296, %v944
    %v3298 = vadd.f32 %v3297, %v945
    %v3299 = vadd.f32 %v3298, %v946
    %v3300 = vadd.f32 %v3299, %v947
    %v3301 = vadd.f32 %v3300, %v948
    %v3302 = vadd.f32 %v3301, %v949
    %v3303 = vadd.f32 %v3302, %v950
    %v3304 = vadd.f32 %v3303, %v951
    %v3305 = vadd.f32 %v3304, %v952
    %v3306 = vadd.f32 %v3305, %v953
    %v3307 = vadd.f32 %v3306, %v954
    %v3308 = vadd.f32 %v3307, %v955
    %v3309 = vadd.f32 %v3308, %v956
    %v3310 = vadd.f32 %v3309, %v957
    %v3311 = vadd.f32 %v3310, %v958
    %v3312 = vadd.f32 %v3311, %v959
    %v3313 = vadd.f32 %v3312, %v960
    %v3314 = vadd.f32 %v3313, %v961
    %v3315 = vadd.f32 %v3314, %v962
    %v3316 = vadd.f32 %v3315, %v963
    %v3317 = vadd.f32 %v3316, %v964
    %v3318 = vadd.f32 %v3317, %v965
    %v3319 = vadd.f32 %v3318, %v966
    %v3320 = vadd.f32 %v3319, %v967
    %v3321 = vadd.f32 %v3320, %v968
    %v3322 = vadd.f32 %v3321, %v969
    %v3323 = vadd.f32 %v3322, %v970
    %v3324 = vadd.f32 %v3323, %v971
    %v3325 = vadd.f32 %v3324, %v972
    %v3326 = vadd.f32 %v3325, %v973
    %v3327 = vadd.f32 %v3326, %v974
    %v3328 = vadd.f32 %v3327, %v975
    %v3329 = vadd.f32 %v3328, %v976
    %v3330 = vadd.f32 %v3329, %v977
    %v3331 = vadd.f32 %v3330, %v978
    %v3332 = vadd.f32 %v3331, %v979
    %v3333 = vadd.f32 %v3332, %v980
    %v3334 = vadd.f32 %v3333, %v981
    %v3335 = vadd.f32 %v3334, %v982
    %v3336 = vadd.f32 %v3335, %v983
    %v3337 = vadd.f32 %v3336, %v984
    %v3338 = vadd.f32 %v3337, %v985
    %v3339 = vadd.f32 %v3338, %v986
    %v3340 = vadd.f32 %v3339, %v987
    %v3341 = vadd.f32 %v3340, %v988
    %v3342 = vadd.f32 %v3341, %v989
    %v3343 = vadd.f32 %v3342, %v990
    %v3344 = vadd.f32 %v3343, %v991
    %v3345 = vadd.f32 %v3344, %v992
    %v3346 = vadd.f32 %v3345, %v993
    %v3347 = vadd.f32 %v3346, %v994
    %v3348 = vadd.f32 %v3347, %v995
    %v3349 = vadd.f32 %v3348, %v996
    %v3350 = vadd.f32 %v3349, %v997
    %v3351 = vadd.f32 %v3350, %v998
    %v3352 = vadd.f32 %v3351, %v999
    %v3353 = vadd.f32 %v3352, %v1000
    %v3354 = vadd.f32 %v3353, %v1001
    %v3355 = vadd.f32 %v3354, %v1002
    %v3356 = vadd.f32 %v3355, %v1003
    %v3357 = vadd.f32 %v3356, %v1004
    %v3358 = vadd.f32 %v3357, %v1005
    %v3359 = vadd.f32 %v3358, %v1006
    %v3360 = vadd.f32 %v3359, %v1007
    %v3361 = vadd.f32 %v3360, %v1008
    %v3362 = vadd.f32 %v3361, %v1009
    %v3363 = vadd.f32 %v3362, %v1010
    %v3364 = vadd.f32 %v3363, %v1011
    %v3365 = vadd.f32 %v3364, %v1012
    %v3366 = vadd.f32 %v3365, %v1013
    %v3367 = vadd.f32 %v3366, %v1014
    %v3368 = vadd.f32 %v3367, %v1015
    %v3369 = vadd.f32 %v3368, %v1016
    %v3370 = vadd.f32 %v3369, %v1017
    %v3371 = vadd.f32 %v3370, %v1018
    %v3372 = vadd.f32 %v3371, %v1019
    %v3373 = vadd.f32 %v3372, %v1020
    %v3374 = vadd.f32 %v3373, %v1021
    %v3375 = vadd.f32 %v3374, %v1022
    %v3376 = vadd.f32 %v3375, %v1023
    %v3377 = vadd.f32 %v3376, %v1024
    %v3378 = vadd.f32 %v3377, %v1025
    %v3379 = vadd.f32 %v3378, %v1026
    %v3380 = vadd.f32 %v3379, %v1027
    %v3381 = vadd.f32 %v3380, %v1028
    %v3382 = vadd.f32 %v3381, %v1029
    %v3383 = vadd.f32 %v3382, %v1030
    %v3384 = vadd.f32 %v3383, %v1031
    %v3385 = vadd.f32 %v3384, %v1032
    %v3386 = vadd.f32 %v3385, %v1033
    %v3387 = vadd.f32 %v3386, %v1034
    %v3388 = vadd.f32 %v3387, %v1035
    %v3389 = vadd.f32 %v3388, %v1036
    %v3390 = vadd.f32 %v3389, %v1037
    %v3391 = vadd.f32 %v3390, %v1038
    %v3392 = vadd.f32 %v3391, %v1039
    %v3393 = vadd.f32 %v3392, %v1040
    %v3394 = vadd.f32 %v3393, %v1041
    %v3395 = vadd.f32 %v3394, %v1042
    %v3396 = vadd.f32 %v3395, %v1043
    %v3397 = vadd.f32 %v3396, %v1044
    %v3398 = vadd.f32 %v3397, %v1045
    %v3399 = vadd.f32 %v3398, %v1046
    %v3400 = vadd.f32 %v3399, %v1047
    %v3401 = vadd.f32 %v3400, %v1048
    %v3402 = vadd.f32 %v3401, %v1049
    %v3403 = vadd.f32 %v3402, %v1050
    %v3404 = vadd.f32 %v3403, %v1051
    %v3405 = vadd.f32 %v3404, %v1052
    %v3406 = vadd.f32 %v3405, %v1053
    %v3407 = vadd.f32 %v3406, %v1054
    %v3408 = vadd.f32 %v3407, %v1055
    %v3409 = vadd.f32 %v3408, %v1056
    %v3410 = vadd.f32 %v3409, %v1057
    %v3411 = vadd.f32 %v3410, %v1058
    %v3412 = vadd.f32 %v3411, %v1059
    %v3413 = vadd.f32 %v3412, %v1060
    %v3414 = vadd.f32 %v3413, %v1061
    %v3415 = vadd.f32 %v3414, %v1062
    %v3416 = vadd.f32 %v3415, %v1063
    %v3417 = vadd.f32 %v3416, %v1064
    %v3418 = vadd.f32 %v3417, %v1065
    %v3419 = vadd.f32 %v3418, %v1066
    %v3420 = vadd.f32 %v3419, %v1067
    %v3421 = vadd.f32 %v3420, %v1068
    %v3422 = vadd.f32 %v3421, %v1069
    %v3423 = vadd.f32 %v3422, %v1070
    %v3424 = vadd.f32 %v3423, %v1071
    %v3425 = vadd.f32 %v3424, %v1072
    %v3426 = vadd.f32 %v3425, %v1073
    %v3427 = vadd.f32 %v3426, %v1074
    %v3428 = vadd.f32 %v3427, %v1075
    %v3429 = vadd.f32 %v3428, %v1076
    %v3430 = vadd.f32 %v3429, %v1077
    %v3431 = vadd.f32 %v3430, %v1078
    %v3432 = vadd.f32 %v3431, %v1079
    %v3433 = vadd.f32 %v3432, %v1080
    %v3434 = vadd.f32 %v3433, %v1081
    %v3435 = vadd.f32 %v3434, %v1082
    %v3436 = vadd.f32 %v3435, %v1083
    %v3437 = vadd.f32 %v3436, %v1084
    %v3438 = vadd.f32 %v3437, %v1085
    %v3439 = vadd.f32 %v3438, %v1086
    %v3440 = vadd.f32 %v3439, %v1087
    %v3441 = vadd.f32 %v3440, %v1088
    %v3442 = vadd.f32 %v3441, %v1089
    %v3443 = vadd.f32 %v3442, %v1090
    %v3444 = vadd.f32 %v3443, %v1091
    %v3445 = vadd.f32 %v3444, %v1092
    %v3446 = vadd.f32 %v3445, %v1093
    %v3447 = vadd.f32 %v3446, %v1094
    %v3448 = vadd.f32 %v3447, %v1095
    %v3449 = vadd.f32 %v3448, %v1096
    %v3450 = vadd.f32 %v3449, %v1097
    %v3451 = vadd.f32 %v3450, %v1098
    %v3452 = vadd.f32 %v3451, %v1099
    %v3453 = vadd.f32 %v3452, %v1100
    %v3454 = vadd.f32 %v3453, %v1101
    %v3455 = vadd.f32 %v3454, %v1102
    %v3456 = vadd.f32 %v3455, %v1103
    %v3457 = vadd.f32 %v3456, %v1104
    %v3458 = vadd.f32 %v3457, %v1105
    %v3459 = vadd.f32 %v3458, %v1106
    %v3460 = vadd.f32 %v3459, %v1107
    %v3461 = vadd.f32 %v3460, %v1108
    %v3462 = vadd.f32 %v3461, %v1109
    %v3463 = vadd.f32 %v3462, %v1110
    %v3464 = vadd.f32 %v3463, %v1111
    %v3465 = vadd.f32 %v3464, %v1112
    %v3466 = vadd.f32 %v3465, %v1113
    %v3467 = vadd.f32 %v3466, %v1114
    %v3468 = vadd.f32 %v3467, %v1115
    %v3469 = vadd.f32 %v3468, %v1116
    %v3470 = vadd.f32 %v3469, %v1117
    %v3471 = vadd.f32 %v3470, %v1118
    %v3472 = vadd.f32 %v3471, %v1119
    %v3473 = vadd.f32 %v3472, %v1120
    %v3474 = vadd.f32 %v3473, %v1121
    %v3475 = vadd.f32 %v3474, %v1122
    %v3476 = vadd.f32 %v3475, %v1123
    %v3477 = vadd.f32 %v3476, %v1124
    %v3478 = vadd.f32 %v3477, %v1125
    %v3479 = vadd.f32 %v3478, %v1126
    %v3480 = vadd.f32 %v3479, %v1127
    %v3481 = vadd.f32 %v3480, %v1128
    %v3482 = vadd.f32 %v3481, %v1129
    %v3483 = vadd.f32 %v3482, %v1130
    %v3484 = vadd.f32 %v3483, %v1131
    %v3485 = vadd.f32 %v3484, %v1132
    %v3486 = vadd.f32 %v3485, %v1133
    %v3487 = vadd.f32 %v3486, %v1134
    %v3488 = vadd.f32 %v3487, %v1135
    %v3489 = vadd.f32 %v3488, %v1136
    %v3490 = vadd.f32 %v3489, %v1137
    %v3491 = vadd.f32 %v3490, %v1138
    %v3492 = vadd.f32 %v3491, %v1139
    %v3493 = vadd.f32 %v3492, %v1140
    %v3494 = vadd.f32 %v3493, %v1141
    %v3495 = vadd.f32 %v3494, %v1142
    %v3496 = vadd.f32 %v3495, %v1143
    %v3497 = vadd.f32 %v3496, %v1144
    %v3498 = vadd.f32 %v3497, %v1145
    %v3499 = vadd.f32 %v3498, %v1146
    %v3500 = vadd.f32 %v3499, %v1147
    %v3501 = vadd.f32 %v3500, %v1148
    %v3502 = vadd.f32 %v3501, %v1149
    %v3503 = vadd.f32 %v3502, %v1150
    %v3504 = vadd.f32 %v3503, %v1151
    %v3505 = vadd.f32 %v3504, %v1152
    %v3506 = vadd.f32 %v3505, %v1153
    %v3507 = vadd.f32 %v3506, %v1154
    %v3508 = vadd.f32 %v3507, %v1155
    %v3509 = vadd.f32 %v3508, %v1156
    %v3510 = vadd.f32 %v3509, %v1157
    %v3511 = vadd.f32 %v3510, %v1158
    %v3512 = vadd.f32 %v3511, %v1159
    %v3513 = vadd.f32 %v3512, %v1160
    %v3514 = vadd.f32 %v3513, %v1161
    %v3515 = vadd.f32 %v3514, %v1162
    %v3516 = vadd.f32 %v3515, %v1163
    %v3517 = vadd.f32 %v3516, %v1164
    %v3518 = vadd.f32 %v3517, %v1165
    %v3519 = vadd.f32 %v3518, %v1166
    %v3520 = vadd.f32 %v3519, %v1167
    %v3521 = vadd.f32 %v3520, %v1168
    %v3522 = vadd.f32 %v3521, %v1169
    %v3523 = vadd.f32 %v3522, %v1170
    %v3524 = vadd.f32 %v3523, %v1171
    %v3525 = vadd.f32 %v3524, %v1172
    %v3526 = vadd.f32 %v3525, %v1173
    %v3527 = vadd.f32 %v3526, %v1174
    %v3528 = vadd.f32 %v3527, %v1175
    %v3529 = vadd.f32 %v3528, %v1176
    %v3530 = vadd.f32 %v3529, %v1177
    %v3531 = vadd.f32 %v3530, %v1178
    %v3532 = vadd.f32 %v3531, %v1179
    %v3533 = vadd.f32 %v3532, %v1180
    %v3534 = vadd.f32 %v3533, %v1181
    %v3535 = vadd.f32 %v3534, %v1182
    %v3536 = vadd.f32 %v3535, %v1183
    %v3537 = vadd.f32 %v3536, %v1184
    %v3538 = vadd.f32 %v3537, %v1185
    %v3539 = vadd.f32 %v3538, %v1186
    %v3540 = vadd.f32 %v3539, %v1187
    %v3541 = vadd.f32 %v3540, %v1188
    %v3542 = vadd.f32 %v3541, %v1189
    %v3543 = vadd.f32 %v3542, %v1190
    %v3544 = vadd.f32 %v3543, %v1191
    %v3545 = vadd.f32 %v3544, %v1192
    %v3546 = vadd.f32 %v3545, %v1193
    %v3547 = vadd.f32 %v3546, %v1194
    %v3548 = vadd.f32 %v3547, %v1195
    %v3549 = vadd.f32 %v3548, %v1196
    %v3550 = vadd.f32 %v3549, %v1197
    %v3551 = vadd.f32 %v3550, %v1198
    %v3552 = vadd.f32 %v3551, %v1199
    %v3553 = vadd.f32 %v3552, %v1200
    %v3554 = vadd.f32 %v3553, %v1201
    %v3555 = vadd.f32 %v3554, %v1202
    %v3556 = vadd.f32 %v3555, %v1203
    %v3557 = vadd.f32 %v3556, %v1204
    %v3558 = vadd.f32 %v3557, %v1205
    %v3559 = vadd.f32 %v3558, %v1206
    %v3560 = vadd.f32 %v3559, %v1207
    %v3561 = vadd.f32 %v3560, %v1208
    %v3562 = vadd.f32 %v3561, %v1209
    %v3563 = vadd.f32 %v3562, %v1210
    %v3564 = vadd.f32 %v3563, %v1211
    %v3565 = vadd.f32 %v3564, %v1212
    %v3566 = vadd.f32 %v3565, %v1213
    %v3567 = vadd.f32 %v3566, %v1214
    %v3568 = vadd.f32 %v3567, %v1215
    %v3569 = vadd.f32 %v3568, %v1216
    %v3570 = vadd.f32 %v3569, %v1217
    %v3571 = vadd.f32 %v3570, %v1218
    %v3572 = vadd.f32 %v3571, %v1219
    %v3573 = vadd.f32 %v3572, %v1220
    %v3574 = vadd.f32 %v3573, %v1221
    %v3575 = vadd.f32 %v3574, %v1222
    %v3576 = vadd.f32 %v3575, %v1223
    %v3577 = vadd.f32 %v3576, %v1224
    %v3578 = vadd.f32 %v3577, %v1225
    %v3579 = vadd.f32 %v3578, %v1226
    %v3580 = vadd.f32 %v3579, %v1227
    %v3581 = vadd.f32 %v3580, %v1228
    %v3582 = vadd.f32 %v3581, %v1229
    %v3583 = vadd.f32 %v3582, %v1230
    %v3584 = vadd.f32 %v3583, %v1231
    %3585 = vadd.xlane.f32.xlu0 %v3584
    %v3586 = vpop.xlane.xlu0 %3585
    %v3587 = vadd.f32 %v1232, %v1233
    %v3588 = vadd.f32 %v3587, %v1234
    %v3589 = vadd.f32 %v3588, %v1235
    %v3590 = vadd.f32 %v3589, %v1236
    %v3591 = vadd.f32 %v3590, %v1237
    %v3592 = vadd.f32 %v3591, %v1238
    %v3593 = vadd.f32 %v3592, %v1239
    %v3594 = vadd.f32 %v3593, %v1240
    %v3595 = vadd.f32 %v3594, %v1241
    %v3596 = vadd.f32 %v3595, %v1242
    %v3597 = vadd.f32 %v3596, %v1243
    %v3598 = vadd.f32 %v3597, %v1244
    %v3599 = vadd.f32 %v3598, %v1245
    %v3600 = vadd.f32 %v3599, %v1246
    %v3601 = vadd.f32 %v3600, %v1247
    %v3602 = vadd.f32 %v3601, %v1248
    %v3603 = vadd.f32 %v3602, %v1249
    %v3604 = vadd.f32 %v3603, %v1250
    %v3605 = vadd.f32 %v3604, %v1251
    %v3606 = vadd.f32 %v3605, %v1252
    %v3607 = vadd.f32 %v3606, %v1253
    %v3608 = vadd.f32 %v3607, %v1254
    %v3609 = vadd.f32 %v3608, %v1255
    %v3610 = vadd.f32 %v3609, %v1256
    %v3611 = vadd.f32 %v3610, %v1257
    %v3612 = vadd.f32 %v3611, %v1258
    %v3613 = vadd.f32 %v3612, %v1259
    %v3614 = vadd.f32 %v3613, %v1260
    %v3615 = vadd.f32 %v3614, %v1261
    %v3616 = vadd.f32 %v3615, %v1262
    %v3617 = vadd.f32 %v3616, %v1263
    %v3618 = vadd.f32 %v3617, %v1264
    %v3619 = vadd.f32 %v3618, %v1265
    %v3620 = vadd.f32 %v3619, %v1266
    %v3621 = vadd.f32 %v3620, %v1267
    %v3622 = vadd.f32 %v3621, %v1268
    %v3623 = vadd.f32 %v3622, %v1269
    %v3624 = vadd.f32 %v3623, %v1270
    %v3625 = vadd.f32 %v3624, %v1271
    %v3626 = vadd.f32 %v3625, %v1272
    %v3627 = vadd.f32 %v3626, %v1273
    %v3628 = vadd.f32 %v3627, %v1274
    %v3629 = vadd.f32 %v3628, %v1275
    %v3630 = vadd.f32 %v3629, %v1276
    %v3631 = vadd.f32 %v3630, %v1277
    %v3632 = vadd.f32 %v3631, %v1278
    %v3633 = vadd.f32 %v3632, %v1279
    %v3634 = vadd.f32 %v3633, %v1280
    %v3635 = vadd.f32 %v3634, %v1281
    %v3636 = vadd.f32 %v3635, %v1282
    %v3637 = vadd.f32 %v3636, %v1283
    %v3638 = vadd.f32 %v3637, %v1284
    %v3639 = vadd.f32 %v3638, %v1285
    %v3640 = vadd.f32 %v3639, %v1286
    %v3641 = vadd.f32 %v3640, %v1287
    %v3642 = vadd.f32 %v3641, %v1288
    %v3643 = vadd.f32 %v3642, %v1289
    %v3644 = vadd.f32 %v3643, %v1290
    %v3645 = vadd.f32 %v3644, %v1291
    %v3646 = vadd.f32 %v3645, %v1292
    %v3647 = vadd.f32 %v3646, %v1293
    %v3648 = vadd.f32 %v3647, %v1294
    %v3649 = vadd.f32 %v3648, %v1295
    %v3650 = vadd.f32 %v3649, %v1296
    %v3651 = vadd.f32 %v3650, %v1297
    %v3652 = vadd.f32 %v3651, %v1298
    %v3653 = vadd.f32 %v3652, %v1299
    %v3654 = vadd.f32 %v3653, %v1300
    %v3655 = vadd.f32 %v3654, %v1301
    %v3656 = vadd.f32 %v3655, %v1302
    %v3657 = vadd.f32 %v3656, %v1303
    %v3658 = vadd.f32 %v3657, %v1304
    %v3659 = vadd.f32 %v3658, %v1305
    %v3660 = vadd.f32 %v3659, %v1306
    %v3661 = vadd.f32 %v3660, %v1307
    %v3662 = vadd.f32 %v3661, %v1308
    %v3663 = vadd.f32 %v3662, %v1309
    %v3664 = vadd.f32 %v3663, %v1310
    %v3665 = vadd.f32 %v3664, %v1311
    %v3666 = vadd.f32 %v3665, %v1312
    %v3667 = vadd.f32 %v3666, %v1313
    %v3668 = vadd.f32 %v3667, %v1314
    %v3669 = vadd.f32 %v3668, %v1315
    %v3670 = vadd.f32 %v3669, %v1316
    %v3671 = vadd.f32 %v3670, %v1317
    %v3672 = vadd.f32 %v3671, %v1318
    %v3673 = vadd.f32 %v3672, %v1319
    %v3674 = vadd.f32 %v3673, %v1320
    %v3675 = vadd.f32 %v3674, %v1321
    %v3676 = vadd.f32 %v3675, %v1322
    %v3677 = vadd.f32 %v3676, %v1323
    %v3678 = vadd.f32 %v3677, %v1324
    %v3679 = vadd.f32 %v3678, %v1325
    %v3680 = vadd.f32 %v3679, %v1326
    %v3681 = vadd.f32 %v3680, %v1327
    %v3682 = vadd.f32 %v3681, %v1328
    %v3683 = vadd.f32 %v3682, %v1329
    %v3684 = vadd.f32 %v3683, %v1330
    %v3685 = vadd.f32 %v3684, %v1331
    %v3686 = vadd.f32 %v3685, %v1332
    %v3687 = vadd.f32 %v3686, %v1333
    %v3688 = vadd.f32 %v3687, %v1334
    %v3689 = vadd.f32 %v3688, %v1335
    %v3690 = vadd.f32 %v3689, %v1336
    %v3691 = vadd.f32 %v3690, %v1337
    %v3692 = vadd.f32 %v3691, %v1338
    %v3693 = vadd.f32 %v3692, %v1339
    %v3694 = vadd.f32 %v3693, %v1340
    %v3695 = vadd.f32 %v3694, %v1341
    %v3696 = vadd.f32 %v3695, %v1342
    %v3697 = vadd.f32 %v3696, %v1343
    %v3698 = vadd.f32 %v3697, %v1344
    %v3699 = vadd.f32 %v3698, %v1345
    %v3700 = vadd.f32 %v3699, %v1346
    %v3701 = vadd.f32 %v3700, %v1347
    %v3702 = vadd.f32 %v3701, %v1348
    %v3703 = vadd.f32 %v3702, %v1349
    %v3704 = vadd.f32 %v3703, %v1350
    %v3705 = vadd.f32 %v3704, %v1351
    %v3706 = vadd.f32 %v3705, %v1352
    %v3707 = vadd.f32 %v3706, %v1353
    %v3708 = vadd.f32 %v3707, %v1354
    %v3709 = vadd.f32 %v3708, %v1355
    %v3710 = vadd.f32 %v3709, %v1356
    %v3711 = vadd.f32 %v3710, %v1357
    %v3712 = vadd.f32 %v3711, %v1358
    %v3713 = vadd.f32 %v3712, %v1359
    %v3714 = vadd.f32 %v3713, %v1360
    %v3715 = vadd.f32 %v3714, %v1361
    %v3716 = vadd.f32 %v3715, %v1362
    %v3717 = vadd.f32 %v3716, %v1363
    %v3718 = vadd.f32 %v3717, %v1364
    %v3719 = vadd.f32 %v3718, %v1365
    %v3720 = vadd.f32 %v3719, %v1366
    %v3721 = vadd.f32 %v3720, %v1367
    %v3722 = vadd.f32 %v3721, %v1368
    %v3723 = vadd.f32 %v3722, %v1369
    %v3724 = vadd.f32 %v3723, %v1370
    %v3725 = vadd.f32 %v3724, %v1371
    %v3726 = vadd.f32 %v3725, %v1372
    %v3727 = vadd.f32 %v3726, %v1373
    %v3728 = vadd.f32 %v3727, %v1374
    %v3729 = vadd.f32 %v3728, %v1375
    %v3730 = vadd.f32 %v3729, %v1376
    %v3731 = vadd.f32 %v3730, %v1377
    %v3732 = vadd.f32 %v3731, %v1378
    %v3733 = vadd.f32 %v3732, %v1379
    %v3734 = vadd.f32 %v3733, %v1380
    %v3735 = vadd.f32 %v3734, %v1381
    %v3736 = vadd.f32 %v3735, %v1382
    %v3737 = vadd.f32 %v3736, %v1383
    %v3738 = vadd.f32 %v3737, %v1384
    %v3739 = vadd.f32 %v3738, %v1385
    %v3740 = vadd.f32 %v3739, %v1386
    %v3741 = vadd.f32 %v3740, %v1387
    %v3742 = vadd.f32 %v3741, %v1388
    %v3743 = vadd.f32 %v3742, %v1389
    %v3744 = vadd.f32 %v3743, %v1390
    %v3745 = vadd.f32 %v3744, %v1391
    %v3746 = vadd.f32 %v3745, %v1392
    %v3747 = vadd.f32 %v3746, %v1393
    %v3748 = vadd.f32 %v3747, %v1394
    %v3749 = vadd.f32 %v3748, %v1395
    %v3750 = vadd.f32 %v3749, %v1396
    %v3751 = vadd.f32 %v3750, %v1397
    %v3752 = vadd.f32 %v3751, %v1398
    %v3753 = vadd.f32 %v3752, %v1399
    %v3754 = vadd.f32 %v3753, %v1400
    %v3755 = vadd.f32 %v3754, %v1401
    %v3756 = vadd.f32 %v3755, %v1402
    %v3757 = vadd.f32 %v3756, %v1403
    %v3758 = vadd.f32 %v3757, %v1404
    %v3759 = vadd.f32 %v3758, %v1405
    %v3760 = vadd.f32 %v3759, %v1406
    %v3761 = vadd.f32 %v3760, %v1407
    %v3762 = vadd.f32 %v3761, %v1408
    %v3763 = vadd.f32 %v3762, %v1409
    %v3764 = vadd.f32 %v3763, %v1410
    %v3765 = vadd.f32 %v3764, %v1411
    %v3766 = vadd.f32 %v3765, %v1412
    %v3767 = vadd.f32 %v3766, %v1413
    %v3768 = vadd.f32 %v3767, %v1414
    %v3769 = vadd.f32 %v3768, %v1415
    %v3770 = vadd.f32 %v3769, %v1416
    %v3771 = vadd.f32 %v3770, %v1417
    %v3772 = vadd.f32 %v3771, %v1418
    %v3773 = vadd.f32 %v3772, %v1419
    %v3774 = vadd.f32 %v3773, %v1420
    %v3775 = vadd.f32 %v3774, %v1421
    %v3776 = vadd.f32 %v3775, %v1422
    %v3777 = vadd.f32 %v3776, %v1423
    %v3778 = vadd.f32 %v3777, %v1424
    %v3779 = vadd.f32 %v3778, %v1425
    %v3780 = vadd.f32 %v3779, %v1426
    %v3781 = vadd.f32 %v3780, %v1427
    %v3782 = vadd.f32 %v3781, %v1428
    %v3783 = vadd.f32 %v3782, %v1429
    %v3784 = vadd.f32 %v3783, %v1430
    %v3785 = vadd.f32 %v3784, %v1431
    %v3786 = vadd.f32 %v3785, %v1432
    %v3787 = vadd.f32 %v3786, %v1433
    %v3788 = vadd.f32 %v3787, %v1434
    %v3789 = vadd.f32 %v3788, %v1435
    %v3790 = vadd.f32 %v3789, %v1436
    %v3791 = vadd.f32 %v3790, %v1437
    %v3792 = vadd.f32 %v3791, %v1438
    %v3793 = vadd.f32 %v3792, %v1439
    %v3794 = vadd.f32 %v3793, %v1440
    %v3795 = vadd.f32 %v3794, %v1441
    %v3796 = vadd.f32 %v3795, %v1442
    %v3797 = vadd.f32 %v3796, %v1443
    %v3798 = vadd.f32 %v3797, %v1444
    %v3799 = vadd.f32 %v3798, %v1445
    %v3800 = vadd.f32 %v3799, %v1446
    %v3801 = vadd.f32 %v3800, %v1447
    %v3802 = vadd.f32 %v3801, %v1448
    %v3803 = vadd.f32 %v3802, %v1449
    %v3804 = vadd.f32 %v3803, %v1450
    %v3805 = vadd.f32 %v3804, %v1451
    %v3806 = vadd.f32 %v3805, %v1452
    %v3807 = vadd.f32 %v3806, %v1453
    %v3808 = vadd.f32 %v3807, %v1454
    %v3809 = vadd.f32 %v3808, %v1455
    %v3810 = vadd.f32 %v3809, %v1456
    %v3811 = vadd.f32 %v3810, %v1457
    %v3812 = vadd.f32 %v3811, %v1458
    %v3813 = vadd.f32 %v3812, %v1459
    %v3814 = vadd.f32 %v3813, %v1460
    %v3815 = vadd.f32 %v3814, %v1461
    %v3816 = vadd.f32 %v3815, %v1462
    %v3817 = vadd.f32 %v3816, %v1463
    %v3818 = vadd.f32 %v3817, %v1464
    %v3819 = vadd.f32 %v3818, %v1465
    %v3820 = vadd.f32 %v3819, %v1466
    %v3821 = vadd.f32 %v3820, %v1467
    %v3822 = vadd.f32 %v3821, %v1468
    %v3823 = vadd.f32 %v3822, %v1469
    %v3824 = vadd.f32 %v3823, %v1470
    %v3825 = vadd.f32 %v3824, %v1471
    %v3826 = vadd.f32 %v3825, %v1472
    %v3827 = vadd.f32 %v3826, %v1473
    %v3828 = vadd.f32 %v3827, %v1474
    %v3829 = vadd.f32 %v3828, %v1475
    %v3830 = vadd.f32 %v3829, %v1476
    %v3831 = vadd.f32 %v3830, %v1477
    %v3832 = vadd.f32 %v3831, %v1478
    %v3833 = vadd.f32 %v3832, %v1479
    %v3834 = vadd.f32 %v3833, %v1480
    %v3835 = vadd.f32 %v3834, %v1481
    %v3836 = vadd.f32 %v3835, %v1482
    %v3837 = vadd.f32 %v3836, %v1483
    %v3838 = vadd.f32 %v3837, %v1484
    %v3839 = vadd.f32 %v3838, %v1485
    %v3840 = vadd.f32 %v3839, %v1486
    %v3841 = vadd.f32 %v3840, %v1487
    %v3842 = vadd.f32 %v3841, %v1488
    %v3843 = vadd.f32 %v3842, %v1489
    %v3844 = vadd.f32 %v3843, %v1490
    %v3845 = vadd.f32 %v3844, %v1491
    %v3846 = vadd.f32 %v3845, %v1492
    %v3847 = vadd.f32 %v3846, %v1493
    %v3848 = vadd.f32 %v3847, %v1494
    %v3849 = vadd.f32 %v3848, %v1495
    %v3850 = vadd.f32 %v3849, %v1496
    %v3851 = vadd.f32 %v3850, %v1497
    %v3852 = vadd.f32 %v3851, %v1498
    %v3853 = vadd.f32 %v3852, %v1499
    %v3854 = vadd.f32 %v3853, %v1500
    %v3855 = vadd.f32 %v3854, %v1501
    %v3856 = vadd.f32 %v3855, %v1502
    %v3857 = vadd.f32 %v3856, %v1503
    %v3858 = vadd.f32 %v3857, %v1504
    %v3859 = vadd.f32 %v3858, %v1505
    %v3860 = vadd.f32 %v3859, %v1506
    %v3861 = vadd.f32 %v3860, %v1507
    %v3862 = vadd.f32 %v3861, %v1508
    %v3863 = vadd.f32 %v3862, %v1509
    %v3864 = vadd.f32 %v3863, %v1510
    %v3865 = vadd.f32 %v3864, %v1511
    %v3866 = vadd.f32 %v3865, %v1512
    %v3867 = vadd.f32 %v3866, %v1513
    %v3868 = vadd.f32 %v3867, %v1514
    %v3869 = vadd.f32 %v3868, %v1515
    %v3870 = vadd.f32 %v3869, %v1516
    %v3871 = vadd.f32 %v3870, %v1517
    %v3872 = vadd.f32 %v3871, %v1518
    %v3873 = vadd.f32 %v3872, %v1519
    %v3874 = vadd.f32 %v3873, %v1520
    %v3875 = vadd.f32 %v3874, %v1521
    %v3876 = vadd.f32 %v3875, %v1522
    %v3877 = vadd.f32 %v3876, %v1523
    %v3878 = vadd.f32 %v3877, %v1524
    %v3879 = vadd.f32 %v3878, %v1525
    %v3880 = vadd.f32 %v3879, %v1526
    %v3881 = vadd.f32 %v3880, %v1527
    %v3882 = vadd.f32 %v3881, %v1528
    %v3883 = vadd.f32 %v3882, %v1529
    %v3884 = vadd.f32 %v3883, %v1530
    %v3885 = vadd.f32 %v3884, %v1531
    %v3886 = vadd.f32 %v3885, %v1532
    %v3887 = vadd.f32 %v3886, %v1533
    %v3888 = vadd.f32 %v3887, %v1534
    %v3889 = vadd.f32 %v3888, %v1535
    %v3890 = vadd.f32 %v3889, %v1536
    %v3891 = vadd.f32 %v3890, %v1537
    %v3892 = vadd.f32 %v3891, %v1538
    %v3893 = vadd.f32 %v3892, %v1539
    %v3894 = vadd.f32 %v3893, %v1540
    %v3895 = vadd.f32 %v3894, %v1541
    %v3896 = vadd.f32 %v3895, %v1542
    %v3897 = vadd.f32 %v3896, %v1543
    %v3898 = vadd.f32 %v3897, %v1544
    %v3899 = vadd.f32 %v3898, %v1545
    %v3900 = vadd.f32 %v3899, %v1546
    %v3901 = vadd.f32 %v3900, %v1547
    %v3902 = vadd.f32 %v3901, %v1548
    %v3903 = vadd.f32 %v3902, %v1549
    %v3904 = vadd.f32 %v3903, %v1550
    %v3905 = vadd.f32 %v3904, %v1551
    %v3906 = vadd.f32 %v3905, %v1552
    %v3907 = vadd.f32 %v3906, %v1553
    %v3908 = vadd.f32 %v3907, %v1554
    %v3909 = vadd.f32 %v3908, %v1555
    %v3910 = vadd.f32 %v3909, %v1556
    %v3911 = vadd.f32 %v3910, %v1557
    %v3912 = vadd.f32 %v3911, %v1558
    %v3913 = vadd.f32 %v3912, %v1559
    %v3914 = vadd.f32 %v3913, %v1560
    %v3915 = vadd.f32 %v3914, %v1561
    %v3916 = vadd.f32 %v3915, %v1562
    %v3917 = vadd.f32 %v3916, %v1563
    %v3918 = vadd.f32 %v3917, %v1564
    %v3919 = vadd.f32 %v3918, %v1565
    %v3920 = vadd.f32 %v3919, %v1566
    %v3921 = vadd.f32 %v3920, %v1567
    %v3922 = vadd.f32 %v3921, %v1568
    %v3923 = vadd.f32 %v3922, %v1569
    %v3924 = vadd.f32 %v3923, %v1570
    %v3925 = vadd.f32 %v3924, %v1571
    %v3926 = vadd.f32 %v3925, %v1572
    %v3927 = vadd.f32 %v3926, %v1573
    %v3928 = vadd.f32 %v3927, %v1574
    %v3929 = vadd.f32 %v3928, %v1575
    %v3930 = vadd.f32 %v3929, %v1576
    %v3931 = vadd.f32 %v3930, %v1577
    %v3932 = vadd.f32 %v3931, %v1578
    %v3933 = vadd.f32 %v3932, %v1579
    %v3934 = vadd.f32 %v3933, %v1580
    %v3935 = vadd.f32 %v3934, %v1581
    %v3936 = vadd.f32 %v3935, %v1582
    %v3937 = vadd.f32 %v3936, %v1583
    %v3938 = vadd.f32 %v3937, %v1584
    %v3939 = vadd.f32 %v3938, %v1585
    %v3940 = vadd.f32 %v3939, %v1586
    %v3941 = vadd.f32 %v3940, %v1587
    %v3942 = vadd.f32 %v3941, %v1588
    %v3943 = vadd.f32 %v3942, %v1589
    %v3944 = vadd.f32 %v3943, %v1590
    %v3945 = vadd.f32 %v3944, %v1591
    %v3946 = vadd.f32 %v3945, %v1592
    %v3947 = vadd.f32 %v3946, %v1593
    %v3948 = vadd.f32 %v3947, %v1594
    %v3949 = vadd.f32 %v3948, %v1595
    %v3950 = vadd.f32 %v3949, %v1596
    %v3951 = vadd.f32 %v3950, %v1597
    %v3952 = vadd.f32 %v3951, %v1598
    %v3953 = vadd.f32 %v3952, %v1599
    %v3954 = vadd.f32 %v3953, %v1600
    %v3955 = vadd.f32 %v3954, %v1601
    %v3956 = vadd.f32 %v3955, %v1602
    %v3957 = vadd.f32 %v3956, %v1603
    %v3958 = vadd.f32 %v3957, %v1604
    %v3959 = vadd.f32 %v3958, %v1605
    %v3960 = vadd.f32 %v3959, %v1606
    %v3961 = vadd.f32 %v3960, %v1607
    %v3962 = vadd.f32 %v3961, %v1608
    %v3963 = vadd.f32 %v3962, %v1609
    %v3964 = vadd.f32 %v3963, %v1610
    %v3965 = vadd.f32 %v3964, %v1611
    %v3966 = vadd.f32 %v3965, %v1612
    %v3967 = vadd.f32 %v3966, %v1613
    %v3968 = vadd.f32 %v3967, %v1614
    %v3969 = vadd.f32 %v3968, %v1615
    %v3970 = vadd.f32 %v3969, %v1616
    %v3971 = vadd.f32 %v3970, %v1617
    %v3972 = vadd.f32 %v3971, %v1618
    %v3973 = vadd.f32 %v3972, %v1619
    %v3974 = vadd.f32 %v3973, %v1620
    %v3975 = vadd.f32 %v3974, %v1621
    %v3976 = vadd.f32 %v3975, %v1622
    %v3977 = vadd.f32 %v3976, %v1623
    %3978 = vadd.xlane.f32.xlu0 %v3977
    %v3979 = vpop.xlane.xlu0 %3978
    %v3980 = vadd.f32 %v1624, %v1625
    %v3981 = vadd.f32 %v3980, %v1626
    %v3982 = vadd.f32 %v3981, %v1627
    %v3983 = vadd.f32 %v3982, %v1628
    %v3984 = vadd.f32 %v3983, %v1629
    %v3985 = vadd.f32 %v3984, %v1630
    %v3986 = vadd.f32 %v3985, %v1631
    %v3987 = vadd.f32 %v3986, %v1632
    %v3988 = vadd.f32 %v3987, %v1633
    %v3989 = vadd.f32 %v3988, %v1634
    %v3990 = vadd.f32 %v3989, %v1635
    %v3991 = vadd.f32 %v3990, %v1636
    %v3992 = vadd.f32 %v3991, %v1637
    %v3993 = vadd.f32 %v3992, %v1638
    %v3994 = vadd.f32 %v3993, %v1639
    %v3995 = vadd.f32 %v3994, %v1640
    %v3996 = vadd.f32 %v3995, %v1641
    %v3997 = vadd.f32 %v3996, %v1642
    %v3998 = vadd.f32 %v3997, %v1643
    %v3999 = vadd.f32 %v3998, %v1644
    %v4000 = vadd.f32 %v3999, %v1645
    %v4001 = vadd.f32 %v4000, %v1646
    %v4002 = vadd.f32 %v4001, %v1647
    %v4003 = vadd.f32 %v4002, %v1648
    %v4004 = vadd.f32 %v4003, %v1649
    %v4005 = vadd.f32 %v4004, %v1650
    %v4006 = vadd.f32 %v4005, %v1651
    %v4007 = vadd.f32 %v4006, %v1652
    %v4008 = vadd.f32 %v4007, %v1653
    %v4009 = vadd.f32 %v4008, %v1654
    %v4010 = vadd.f32 %v4009, %v1655
    %v4011 = vadd.f32 %v4010, %v1656
    %v4012 = vadd.f32 %v4011, %v1657
    %v4013 = vadd.f32 %v4012, %v1658
    %v4014 = vadd.f32 %v4013, %v1659
    %v4015 = vadd.f32 %v4014, %v1660
    %v4016 = vadd.f32 %v4015, %v1661
    %v4017 = vadd.f32 %v4016, %v1662
    %v4018 = vadd.f32 %v4017, %v1663
    %v4019 = vadd.f32 %v4018, %v1664
    %v4020 = vadd.f32 %v4019, %v1665
    %v4021 = vadd.f32 %v4020, %v1666
    %v4022 = vadd.f32 %v4021, %v1667
    %v4023 = vadd.f32 %v4022, %v1668
    %v4024 = vadd.f32 %v4023, %v1669
    %v4025 = vadd.f32 %v4024, %v1670
    %v4026 = vadd.f32 %v4025, %v1671
    %v4027 = vadd.f32 %v4026, %v1672
    %v4028 = vadd.f32 %v4027, %v1673
    %v4029 = vadd.f32 %v4028, %v1674
    %v4030 = vadd.f32 %v4029, %v1675
    %v4031 = vadd.f32 %v4030, %v1676
    %v4032 = vadd.f32 %v4031, %v1677
    %v4033 = vadd.f32 %v4032, %v1678
    %v4034 = vadd.f32 %v4033, %v1679
    %v4035 = vadd.f32 %v4034, %v1680
    %v4036 = vadd.f32 %v4035, %v1681
    %v4037 = vadd.f32 %v4036, %v1682
    %v4038 = vadd.f32 %v4037, %v1683
    %v4039 = vadd.f32 %v4038, %v1684
    %v4040 = vadd.f32 %v4039, %v1685
    %v4041 = vadd.f32 %v4040, %v1686
    %v4042 = vadd.f32 %v4041, %v1687
    %v4043 = vadd.f32 %v4042, %v1688
    %v4044 = vadd.f32 %v4043, %v1689
    %v4045 = vadd.f32 %v4044, %v1690
    %v4046 = vadd.f32 %v4045, %v1691
    %v4047 = vadd.f32 %v4046, %v1692
    %v4048 = vadd.f32 %v4047, %v1693
    %v4049 = vadd.f32 %v4048, %v1694
    %v4050 = vadd.f32 %v4049, %v1695
    %v4051 = vadd.f32 %v4050, %v1696
    %v4052 = vadd.f32 %v4051, %v1697
    %v4053 = vadd.f32 %v4052, %v1698
    %v4054 = vadd.f32 %v4053, %v1699
    %v4055 = vadd.f32 %v4054, %v1700
    %v4056 = vadd.f32 %v4055, %v1701
    %v4057 = vadd.f32 %v4056, %v1702
    %v4058 = vadd.f32 %v4057, %v1703
    %v4059 = vadd.f32 %v4058, %v1704
    %v4060 = vadd.f32 %v4059, %v1705
    %v4061 = vadd.f32 %v4060, %v1706
    %v4062 = vadd.f32 %v4061, %v1707
    %v4063 = vadd.f32 %v4062, %v1708
    %v4064 = vadd.f32 %v4063, %v1709
    %v4065 = vadd.f32 %v4064, %v1710
    %v4066 = vadd.f32 %v4065, %v1711
    %v4067 = vadd.f32 %v4066, %v1712
    %v4068 = vadd.f32 %v4067, %v1713
    %v4069 = vadd.f32 %v4068, %v1714
    %v4070 = vadd.f32 %v4069, %v1715
    %v4071 = vadd.f32 %v4070, %v1716
    %v4072 = vadd.f32 %v4071, %v1717
    %v4073 = vadd.f32 %v4072, %v1718
    %v4074 = vadd.f32 %v4073, %v1719
    %v4075 = vadd.f32 %v4074, %v1720
    %v4076 = vadd.f32 %v4075, %v1721
    %v4077 = vadd.f32 %v4076, %v1722
    %v4078 = vadd.f32 %v4077, %v1723
    %v4079 = vadd.f32 %v4078, %v1724
    %v4080 = vadd.f32 %v4079, %v1725
    %v4081 = vadd.f32 %v4080, %v1726
    %v4082 = vadd.f32 %v4081, %v1727
    %v4083 = vadd.f32 %v4082, %v1728
    %v4084 = vadd.f32 %v4083, %v1729
    %v4085 = vadd.f32 %v4084, %v1730
    %v4086 = vadd.f32 %v4085, %v1731
    %v4087 = vadd.f32 %v4086, %v1732
    %v4088 = vadd.f32 %v4087, %v1733
    %v4089 = vadd.f32 %v4088, %v1734
    %v4090 = vadd.f32 %v4089, %v1735
    %v4091 = vadd.f32 %v4090, %v1736
    %v4092 = vadd.f32 %v4091, %v1737
    %v4093 = vadd.f32 %v4092, %v1738
    %v4094 = vadd.f32 %v4093, %v1739
    %v4095 = vadd.f32 %v4094, %v1740
    %v4096 = vadd.f32 %v4095, %v1741
    %v4097 = vadd.f32 %v4096, %v1742
    %v4098 = vadd.f32 %v4097, %v1743
    %v4099 = vadd.f32 %v4098, %v1744
    %v4100 = vadd.f32 %v4099, %v1745
    %v4101 = vadd.f32 %v4100, %v1746
    %v4102 = vadd.f32 %v4101, %v1747
    %v4103 = vadd.f32 %v4102, %v1748
    %v4104 = vadd.f32 %v4103, %v1749
    %v4105 = vadd.f32 %v4104, %v1750
    %v4106 = vadd.f32 %v4105, %v1751
    %v4107 = vadd.f32 %v4106, %v1752
    %v4108 = vadd.f32 %v4107, %v1753
    %v4109 = vadd.f32 %v4108, %v1754
    %v4110 = vadd.f32 %v4109, %v1755
    %v4111 = vadd.f32 %v4110, %v1756
    %v4112 = vadd.f32 %v4111, %v1757
    %v4113 = vadd.f32 %v4112, %v1758
    %v4114 = vadd.f32 %v4113, %v1759
    %v4115 = vadd.f32 %v4114, %v1760
    %v4116 = vadd.f32 %v4115, %v1761
    %v4117 = vadd.f32 %v4116, %v1762
    %v4118 = vadd.f32 %v4117, %v1763
    %v4119 = vadd.f32 %v4118, %v1764
    %v4120 = vadd.f32 %v4119, %v1765
    %v4121 = vadd.f32 %v4120, %v1766
    %v4122 = vadd.f32 %v4121, %v1767
    %v4123 = vadd.f32 %v4122, %v1768
    %v4124 = vadd.f32 %v4123, %v1769
    %v4125 = vadd.f32 %v4124, %v1770
    %v4126 = vadd.f32 %v4125, %v1771
    %v4127 = vadd.f32 %v4126, %v1772
    %v4128 = vadd.f32 %v4127, %v1773
    %v4129 = vadd.f32 %v4128, %v1774
    %v4130 = vadd.f32 %v4129, %v1775
    %v4131 = vadd.f32 %v4130, %v1776
    %v4132 = vadd.f32 %v4131, %v1777
    %v4133 = vadd.f32 %v4132, %v1778
    %v4134 = vadd.f32 %v4133, %v1779
    %v4135 = vadd.f32 %v4134, %v1780
    %v4136 = vadd.f32 %v4135, %v1781
    %v4137 = vadd.f32 %v4136, %v1782
    %v4138 = vadd.f32 %v4137, %v1783
    %v4139 = vadd.f32 %v4138, %v1784
    %v4140 = vadd.f32 %v4139, %v1785
    %v4141 = vadd.f32 %v4140, %v1786
    %v4142 = vadd.f32 %v4141, %v1787
    %v4143 = vadd.f32 %v4142, %v1788
    %v4144 = vadd.f32 %v4143, %v1789
    %v4145 = vadd.f32 %v4144, %v1790
    %v4146 = vadd.f32 %v4145, %v1791
    %v4147 = vadd.f32 %v4146, %v1792
    %v4148 = vadd.f32 %v4147, %v1793
    %v4149 = vadd.f32 %v4148, %v1794
    %v4150 = vadd.f32 %v4149, %v1795
    %v4151 = vadd.f32 %v4150, %v1796
    %v4152 = vadd.f32 %v4151, %v1797
    %v4153 = vadd.f32 %v4152, %v1798
    %v4154 = vadd.f32 %v4153, %v1799
    %v4155 = vadd.f32 %v4154, %v1800
    %v4156 = vadd.f32 %v4155, %v1801
    %v4157 = vadd.f32 %v4156, %v1802
    %v4158 = vadd.f32 %v4157, %v1803
    %v4159 = vadd.f32 %v4158, %v1804
    %v4160 = vadd.f32 %v4159, %v1805
    %v4161 = vadd.f32 %v4160, %v1806
    %v4162 = vadd.f32 %v4161, %v1807
    %v4163 = vadd.f32 %v4162, %v1808
    %v4164 = vadd.f32 %v4163, %v1809
    %v4165 = vadd.f32 %v4164, %v1810
    %v4166 = vadd.f32 %v4165, %v1811
    %v4167 = vadd.f32 %v4166, %v1812
    %v4168 = vadd.f32 %v4167, %v1813
    %v4169 = vadd.f32 %v4168, %v1814
    %v4170 = vadd.f32 %v4169, %v1815
    %v4171 = vadd.f32 %v4170, %v1816
    %v4172 = vadd.f32 %v4171, %v1817
    %v4173 = vadd.f32 %v4172, %v1818
    %v4174 = vadd.f32 %v4173, %v1819
    %v4175 = vadd.f32 %v4174, %v1820
    %v4176 = vadd.f32 %v4175, %v1821
    %v4177 = vadd.f32 %v4176, %v1822
    %v4178 = vadd.f32 %v4177, %v1823
    %v4179 = vadd.f32 %v4178, %v1824
    %v4180 = vadd.f32 %v4179, %v1825
    %v4181 = vadd.f32 %v4180, %v1826
    %v4182 = vadd.f32 %v4181, %v1827
    %v4183 = vadd.f32 %v4182, %v1828
    %v4184 = vadd.f32 %v4183, %v1829
    %v4185 = vadd.f32 %v4184, %v1830
    %v4186 = vadd.f32 %v4185, %v1831
    %v4187 = vadd.f32 %v4186, %v1832
    %v4188 = vadd.f32 %v4187, %v1833
    %v4189 = vadd.f32 %v4188, %v1834
    %v4190 = vadd.f32 %v4189, %v1835
    %v4191 = vadd.f32 %v4190, %v1836
    %v4192 = vadd.f32 %v4191, %v1837
    %v4193 = vadd.f32 %v4192, %v1838
    %v4194 = vadd.f32 %v4193, %v1839
    %v4195 = vadd.f32 %v4194, %v1840
    %v4196 = vadd.f32 %v4195, %v1841
    %v4197 = vadd.f32 %v4196, %v1842
    %v4198 = vadd.f32 %v4197, %v1843
    %v4199 = vadd.f32 %v4198, %v1844
    %v4200 = vadd.f32 %v4199, %v1845
    %v4201 = vadd.f32 %v4200, %v1846
    %v4202 = vadd.f32 %v4201, %v1847
    %v4203 = vadd.f32 %v4202, %v1848
    %v4204 = vadd.f32 %v4203, %v1849
    %v4205 = vadd.f32 %v4204, %v1850
    %v4206 = vadd.f32 %v4205, %v1851
    %v4207 = vadd.f32 %v4206, %v1852
    %v4208 = vadd.f32 %v4207, %v1853
    %v4209 = vadd.f32 %v4208, %v1854
    %v4210 = vadd.f32 %v4209, %v1855
    %v4211 = vadd.f32 %v4210, %v1856
    %v4212 = vadd.f32 %v4211, %v1857
    %v4213 = vadd.f32 %v4212, %v1858
    %v4214 = vadd.f32 %v4213, %v1859
    %v4215 = vadd.f32 %v4214, %v1860
    %v4216 = vadd.f32 %v4215, %v1861
    %v4217 = vadd.f32 %v4216, %v1862
    %v4218 = vadd.f32 %v4217, %v1863
    %v4219 = vadd.f32 %v4218, %v1864
    %v4220 = vadd.f32 %v4219, %v1865
    %v4221 = vadd.f32 %v4220, %v1866
    %v4222 = vadd.f32 %v4221, %v1867
    %v4223 = vadd.f32 %v4222, %v1868
    %v4224 = vadd.f32 %v4223, %v1869
    %v4225 = vadd.f32 %v4224, %v1870
    %v4226 = vadd.f32 %v4225, %v1871
    %v4227 = vadd.f32 %v4226, %v1872
    %v4228 = vadd.f32 %v4227, %v1873
    %v4229 = vadd.f32 %v4228, %v1874
    %v4230 = vadd.f32 %v4229, %v1875
    %v4231 = vadd.f32 %v4230, %v1876
    %v4232 = vadd.f32 %v4231, %v1877
    %v4233 = vadd.f32 %v4232, %v1878
    %v4234 = vadd.f32 %v4233, %v1879
    %v4235 = vadd.f32 %v4234, %v1880
    %v4236 = vadd.f32 %v4235, %v1881
    %v4237 = vadd.f32 %v4236, %v1882
    %v4238 = vadd.f32 %v4237, %v1883
    %v4239 = vadd.f32 %v4238, %v1884
    %v4240 = vadd.f32 %v4239, %v1885
    %v4241 = vadd.f32 %v4240, %v1886
    %v4242 = vadd.f32 %v4241, %v1887
    %v4243 = vadd.f32 %v4242, %v1888
    %v4244 = vadd.f32 %v4243, %v1889
    %v4245 = vadd.f32 %v4244, %v1890
    %v4246 = vadd.f32 %v4245, %v1891
    %v4247 = vadd.f32 %v4246, %v1892
    %v4248 = vadd.f32 %v4247, %v1893
    %v4249 = vadd.f32 %v4248, %v1894
    %v4250 = vadd.f32 %v4249, %v1895
    %v4251 = vadd.f32 %v4250, %v1896
    %v4252 = vadd.f32 %v4251, %v1897
    %v4253 = vadd.f32 %v4252, %v1898
    %v4254 = vadd.f32 %v4253, %v1899
    %v4255 = vadd.f32 %v4254, %v1900
    %v4256 = vadd.f32 %v4255, %v1901
    %v4257 = vadd.f32 %v4256, %v1902
    %v4258 = vadd.f32 %v4257, %v1903
    %v4259 = vadd.f32 %v4258, %v1904
    %v4260 = vadd.f32 %v4259, %v1905
    %v4261 = vadd.f32 %v4260, %v1906
    %v4262 = vadd.f32 %v4261, %v1907
    %v4263 = vadd.f32 %v4262, %v1908
    %v4264 = vadd.f32 %v4263, %v1909
    %v4265 = vadd.f32 %v4264, %v1910
    %v4266 = vadd.f32 %v4265, %v1911
    %v4267 = vadd.f32 %v4266, %v1912
    %v4268 = vadd.f32 %v4267, %v1913
    %v4269 = vadd.f32 %v4268, %v1914
    %v4270 = vadd.f32 %v4269, %v1915
    %v4271 = vadd.f32 %v4270, %v1916
    %v4272 = vadd.f32 %v4271, %v1917
    %v4273 = vadd.f32 %v4272, %v1918
    %v4274 = vadd.f32 %v4273, %v1919
    %v4275 = vadd.f32 %v4274, %v1920
    %v4276 = vadd.f32 %v4275, %v1921
    %v4277 = vadd.f32 %v4276, %v1922
    %v4278 = vadd.f32 %v4277, %v1923
    %v4279 = vadd.f32 %v4278, %v1924
    %v4280 = vadd.f32 %v4279, %v1925
    %v4281 = vadd.f32 %v4280, %v1926
    %v4282 = vadd.f32 %v4281, %v1927
    %v4283 = vadd.f32 %v4282, %v1928
    %v4284 = vadd.f32 %v4283, %v1929
    %v4285 = vadd.f32 %v4284, %v1930
    %v4286 = vadd.f32 %v4285, %v1931
    %v4287 = vadd.f32 %v4286, %v1932
    %v4288 = vadd.f32 %v4287, %v1933
    %v4289 = vadd.f32 %v4288, %v1934
    %v4290 = vadd.f32 %v4289, %v1935
    %v4291 = vadd.f32 %v4290, %v1936
    %v4292 = vadd.f32 %v4291, %v1937
    %v4293 = vadd.f32 %v4292, %v1938
    %v4294 = vadd.f32 %v4293, %v1939
    %v4295 = vadd.f32 %v4294, %v1940
    %v4296 = vadd.f32 %v4295, %v1941
    %v4297 = vadd.f32 %v4296, %v1942
    %v4298 = vadd.f32 %v4297, %v1943
    %v4299 = vadd.f32 %v4298, %v1944
    %v4300 = vadd.f32 %v4299, %v1945
    %v4301 = vadd.f32 %v4300, %v1946
    %v4302 = vadd.f32 %v4301, %v1947
    %v4303 = vadd.f32 %v4302, %v1948
    %v4304 = vadd.f32 %v4303, %v1949
    %v4305 = vadd.f32 %v4304, %v1950
    %v4306 = vadd.f32 %v4305, %v1951
    %v4307 = vadd.f32 %v4306, %v1952
    %v4308 = vadd.f32 %v4307, %v1953
    %v4309 = vadd.f32 %v4308, %v1954
    %v4310 = vadd.f32 %v4309, %v1955
    %v4311 = vadd.f32 %v4310, %v1956
    %v4312 = vadd.f32 %v4311, %v1957
    %v4313 = vadd.f32 %v4312, %v1958
    %v4314 = vadd.f32 %v4313, %v1959
    %v4315 = vadd.f32 %v4314, %v1960
    %v4316 = vadd.f32 %v4315, %v1961
    %v4317 = vadd.f32 %v4316, %v1962
    %v4318 = vadd.f32 %v4317, %v1963
    %v4319 = vadd.f32 %v4318, %v1964
    %v4320 = vadd.f32 %v4319, %v1965
    %v4321 = vadd.f32 %v4320, %v1966
    %v4322 = vadd.f32 %v4321, %v1967
    %v4323 = vadd.f32 %v4322, %v1968
    %v4324 = vadd.f32 %v4323, %v1969
    %v4325 = vadd.f32 %v4324, %v1970
    %v4326 = vadd.f32 %v4325, %v1971
    %v4327 = vadd.f32 %v4326, %v1972
    %v4328 = vadd.f32 %v4327, %v1973
    %v4329 = vadd.f32 %v4328, %v1974
    %v4330 = vadd.f32 %v4329, %v1975
    %v4331 = vadd.f32 %v4330, %v1976
    %v4332 = vadd.f32 %v4331, %v1977
    %v4333 = vadd.f32 %v4332, %v1978
    %v4334 = vadd.f32 %v4333, %v1979
    %v4335 = vadd.f32 %v4334, %v1980
    %v4336 = vadd.f32 %v4335, %v1981
    %v4337 = vadd.f32 %v4336, %v1982
    %v4338 = vadd.f32 %v4337, %v1983
    %v4339 = vadd.f32 %v4338, %v1984
    %v4340 = vadd.f32 %v4339, %v1985
    %v4341 = vadd.f32 %v4340, %v1986
    %v4342 = vadd.f32 %v4341, %v1987
    %v4343 = vadd.f32 %v4342, %v1988
    %v4344 = vadd.f32 %v4343, %v1989
    %v4345 = vadd.f32 %v4344, %v1990
    %v4346 = vadd.f32 %v4345, %v1991
    %v4347 = vadd.f32 %v4346, %v1992
    %v4348 = vadd.f32 %v4347, %v1993
    %v4349 = vadd.f32 %v4348, %v1994
    %v4350 = vadd.f32 %v4349, %v1995
    %v4351 = vadd.f32 %v4350, %v1996
    %v4352 = vadd.f32 %v4351, %v1997
    %v4353 = vadd.f32 %v4352, %v1998
    %v4354 = vadd.f32 %v4353, %v1999
    %v4355 = vadd.f32 %v4354, %v2000
    %v4356 = vadd.f32 %v4355, %v2001
    %v4357 = vadd.f32 %v4356, %v2002
    %v4358 = vadd.f32 %v4357, %v2003
    %v4359 = vadd.f32 %v4358, %v2004
    %v4360 = vadd.f32 %v4359, %v2005
    %v4361 = vadd.f32 %v4360, %v2006
    %v4362 = vadd.f32 %v4361, %v2007
    %v4363 = vadd.f32 %v4362, %v2008
    %v4364 = vadd.f32 %v4363, %v2009
    %v4365 = vadd.f32 %v4364, %v2010
    %v4366 = vadd.f32 %v4365, %v2011
    %v4367 = vadd.f32 %v4366, %v2012
    %v4368 = vadd.f32 %v4367, %v2013
    %v4369 = vadd.f32 %v4368, %v2014
    %v4370 = vadd.f32 %v4369, %v2015
    %4371 = vadd.xlane.f32.xlu0 %v4370
    %v4372 = vpop.xlane.xlu0 %4371
    %v4373 = vadd.f32 %v2016, %v2017
    %v4374 = vadd.f32 %v4373, %v2018
    %v4375 = vadd.f32 %v4374, %v2019
    %v4376 = vadd.f32 %v4375, %v2020
    %v4377 = vadd.f32 %v4376, %v2021
    %v4378 = vadd.f32 %v4377, %v2022
    %v4379 = vadd.f32 %v4378, %v2023
    %v4380 = vadd.f32 %v4379, %v2024
    %v4381 = vadd.f32 %v4380, %v2025
    %v4382 = vadd.f32 %v4381, %v2026
    %v4383 = vadd.f32 %v4382, %v2027
    %v4384 = vadd.f32 %v4383, %v2028
    %v4385 = vadd.f32 %v4384, %v2029
    %v4386 = vadd.f32 %v4385, %v2030
    %v4387 = vadd.f32 %v4386, %v2031
    %v4388 = vadd.f32 %v4387, %v2032
    %v4389 = vadd.f32 %v4388, %v2033
    %v4390 = vadd.f32 %v4389, %v2034
    %v4391 = vadd.f32 %v4390, %v2035
    %v4392 = vadd.f32 %v4391, %v2036
    %v4393 = vadd.f32 %v4392, %v2037
    %v4394 = vadd.f32 %v4393, %v2038
    %v4395 = vadd.f32 %v4394, %v2039
    %v4396 = vadd.f32 %v4395, %v2040
    %v4397 = vadd.f32 %v4396, %v2041
    %v4398 = vadd.f32 %v4397, %v2042
    %v4399 = vadd.f32 %v4398, %v2043
    %v4400 = vadd.f32 %v4399, %v2044
    %v4401 = vadd.f32 %v4400, %v2045
    %v4402 = vadd.f32 %v4401, %v2046
    %v4403 = vadd.f32 %v4402, %v2047
    %v4404 = vadd.f32 %v4403, %v2048
    %v4405 = vadd.f32 %v4404, %v2049
    %v4406 = vadd.f32 %v4405, %v2050
    %v4407 = vadd.f32 %v4406, %v2051
    %v4408 = vadd.f32 %v4407, %v2052
    %v4409 = vadd.f32 %v4408, %v2053
    %v4410 = vadd.f32 %v4409, %v2054
    %v4411 = vadd.f32 %v4410, %v2055
    %v4412 = vadd.f32 %v4411, %v2056
    %v4413 = vadd.f32 %v4412, %v2057
    %v4414 = vadd.f32 %v4413, %v2058
    %v4415 = vadd.f32 %v4414, %v2059
    %v4416 = vadd.f32 %v4415, %v2060
    %v4417 = vadd.f32 %v4416, %v2061
    %v4418 = vadd.f32 %v4417, %v2062
    %v4419 = vadd.f32 %v4418, %v2063
    %v4420 = vadd.f32 %v4419, %v2064
    %v4421 = vadd.f32 %v4420, %v2065
    %v4422 = vadd.f32 %v4421, %v2066
    %v4423 = vadd.f32 %v4422, %v2067
    %v4424 = vadd.f32 %v4423, %v2068
    %v4425 = vadd.f32 %v4424, %v2069
    %v4426 = vadd.f32 %v4425, %v2070
    %v4427 = vadd.f32 %v4426, %v2071
    %v4428 = vadd.f32 %v4427, %v2072
    %v4429 = vadd.f32 %v4428, %v2073
    %v4430 = vadd.f32 %v4429, %v2074
    %v4431 = vadd.f32 %v4430, %v2075
    %v4432 = vadd.f32 %v4431, %v2076
    %v4433 = vadd.f32 %v4432, %v2077
    %v4434 = vadd.f32 %v4433, %v2078
    %v4435 = vadd.f32 %v4434, %v2079
    %v4436 = vadd.f32 %v4435, %v2080
    %v4437 = vadd.f32 %v4436, %v2081
    %v4438 = vadd.f32 %v4437, %v2082
    %v4439 = vadd.f32 %v4438, %v2083
    %v4440 = vadd.f32 %v4439, %v2084
    %v4441 = vadd.f32 %v4440, %v2085
    %v4442 = vadd.f32 %v4441, %v2086
    %v4443 = vadd.f32 %v4442, %v2087
    %v4444 = vadd.f32 %v4443, %v2088
    %v4445 = vadd.f32 %v4444, %v2089
    %v4446 = vadd.f32 %v4445, %v2090
    %v4447 = vadd.f32 %v4446, %v2091
    %v4448 = vadd.f32 %v4447, %v2092
    %v4449 = vadd.f32 %v4448, %v2093
    %v4450 = vadd.f32 %v4449, %v2094
    %v4451 = vadd.f32 %v4450, %v2095
    %v4452 = vadd.f32 %v4451, %v2096
    %v4453 = vadd.f32 %v4452, %v2097
    %v4454 = vadd.f32 %v4453, %v2098
    %v4455 = vadd.f32 %v4454, %v2099
    %v4456 = vadd.f32 %v4455, %v2100
    %v4457 = vadd.f32 %v4456, %v2101
    %v4458 = vadd.f32 %v4457, %v2102
    %v4459 = vadd.f32 %v4458, %v2103
    %v4460 = vadd.f32 %v4459, %v2104
    %v4461 = vadd.f32 %v4460, %v2105
    %v4462 = vadd.f32 %v4461, %v2106
    %v4463 = vadd.f32 %v4462, %v2107
    %v4464 = vadd.f32 %v4463, %v2108
    %v4465 = vadd.f32 %v4464, %v2109
    %v4466 = vadd.f32 %v4465, %v2110
    %v4467 = vadd.f32 %v4466, %v2111
    %v4468 = vadd.f32 %v4467, %v2112
    %v4469 = vadd.f32 %v4468, %v2113
    %v4470 = vadd.f32 %v4469, %v2114
    %v4471 = vadd.f32 %v4470, %v2115
    %v4472 = vadd.f32 %v4471, %v2116
    %v4473 = vadd.f32 %v4472, %v2117
    %v4474 = vadd.f32 %v4473, %v2118
    %v4475 = vadd.f32 %v4474, %v2119
    %v4476 = vadd.f32 %v4475, %v2120
    %v4477 = vadd.f32 %v4476, %v2121
    %v4478 = vadd.f32 %v4477, %v2122
    %v4479 = vadd.f32 %v4478, %v2123
    %v4480 = vadd.f32 %v4479, %v2124
    %v4481 = vadd.f32 %v4480, %v2125
    %v4482 = vadd.f32 %v4481, %v2126
    %v4483 = vadd.f32 %v4482, %v2127
    %v4484 = vadd.f32 %v4483, %v2128
    %v4485 = vadd.f32 %v4484, %v2129
    %v4486 = vadd.f32 %v4485, %v2130
    %v4487 = vadd.f32 %v4486, %v2131
    %v4488 = vadd.f32 %v4487, %v2132
    %v4489 = vadd.f32 %v4488, %v2133
    %v4490 = vadd.f32 %v4489, %v2134
    %v4491 = vadd.f32 %v4490, %v2135
    %v4492 = vadd.f32 %v4491, %v2136
    %v4493 = vadd.f32 %v4492, %v2137
    %v4494 = vadd.f32 %v4493, %v2138
    %v4495 = vadd.f32 %v4494, %v2139
    %v4496 = vadd.f32 %v4495, %v2140
    %v4497 = vadd.f32 %v4496, %v2141
    %v4498 = vadd.f32 %v4497, %v2142
    %v4499 = vadd.f32 %v4498, %v2143
    %v4500 = vadd.f32 %v4499, %v2144
    %v4501 = vadd.f32 %v4500, %v2145
    %v4502 = vadd.f32 %v4501, %v2146
    %v4503 = vadd.f32 %v4502, %v2147
    %v4504 = vadd.f32 %v4503, %v2148
    %v4505 = vadd.f32 %v4504, %v2149
    %v4506 = vadd.f32 %v4505, %v2150
    %v4507 = vadd.f32 %v4506, %v2151
    %v4508 = vadd.f32 %v4507, %v2152
    %v4509 = vadd.f32 %v4508, %v2153
    %v4510 = vadd.f32 %v4509, %v2154
    %v4511 = vadd.f32 %v4510, %v2155
    %v4512 = vadd.f32 %v4511, %v2156
    %v4513 = vadd.f32 %v4512, %v2157
    %v4514 = vadd.f32 %v4513, %v2158
    %v4515 = vadd.f32 %v4514, %v2159
    %v4516 = vadd.f32 %v4515, %v2160
    %v4517 = vadd.f32 %v4516, %v2161
    %v4518 = vadd.f32 %v4517, %v2162
    %v4519 = vadd.f32 %v4518, %v2163
    %v4520 = vadd.f32 %v4519, %v2164
    %v4521 = vadd.f32 %v4520, %v2165
    %v4522 = vadd.f32 %v4521, %v2166
    %v4523 = vadd.f32 %v4522, %v2167
    %v4524 = vadd.f32 %v4523, %v2168
    %v4525 = vadd.f32 %v4524, %v2169
    %v4526 = vadd.f32 %v4525, %v2170
    %v4527 = vadd.f32 %v4526, %v2171
    %v4528 = vadd.f32 %v4527, %v2172
    %v4529 = vadd.f32 %v4528, %v2173
    %v4530 = vadd.f32 %v4529, %v2174
    %v4531 = vadd.f32 %v4530, %v2175
    %v4532 = vadd.f32 %v4531, %v2176
    %v4533 = vadd.f32 %v4532, %v2177
    %v4534 = vadd.f32 %v4533, %v2178
    %v4535 = vadd.f32 %v4534, %v2179
    %v4536 = vadd.f32 %v4535, %v2180
    %v4537 = vadd.f32 %v4536, %v2181
    %v4538 = vadd.f32 %v4537, %v2182
    %v4539 = vadd.f32 %v4538, %v2183
    %v4540 = vadd.f32 %v4539, %v2184
    %v4541 = vadd.f32 %v4540, %v2185
    %v4542 = vadd.f32 %v4541, %v2186
    %v4543 = vadd.f32 %v4542, %v2187
    %v4544 = vadd.f32 %v4543, %v2188
    %v4545 = vadd.f32 %v4544, %v2189
    %v4546 = vadd.f32 %v4545, %v2190
    %v4547 = vadd.f32 %v4546, %v2191
    %v4548 = vadd.f32 %v4547, %v2192
    %v4549 = vadd.f32 %v4548, %v2193
    %v4550 = vadd.f32 %v4549, %v2194
    %v4551 = vadd.f32 %v4550, %v2195
    %v4552 = vadd.f32 %v4551, %v2196
    %v4553 = vadd.f32 %v4552, %v2197
    %v4554 = vadd.f32 %v4553, %v2198
    %v4555 = vadd.f32 %v4554, %v2199
    %v4556 = vadd.f32 %v4555, %v2200
    %v4557 = vadd.f32 %v4556, %v2201
    %v4558 = vadd.f32 %v4557, %v2202
    %v4559 = vadd.f32 %v4558, %v2203
    %v4560 = vadd.f32 %v4559, %v2204
    %v4561 = vadd.f32 %v4560, %v2205
    %v4562 = vadd.f32 %v4561, %v2206
    %v4563 = vadd.f32 %v4562, %v2207
    %v4564 = vadd.f32 %v4563, %v2208
    %v4565 = vadd.f32 %v4564, %v2209
    %v4566 = vadd.f32 %v4565, %v2210
    %v4567 = vadd.f32 %v4566, %v2211
    %v4568 = vadd.f32 %v4567, %v2212
    %v4569 = vadd.f32 %v4568, %v2213
    %v4570 = vadd.f32 %v4569, %v2214
    %v4571 = vadd.f32 %v4570, %v2215
    %v4572 = vadd.f32 %v4571, %v2216
    %v4573 = vadd.f32 %v4572, %v2217
    %v4574 = vadd.f32 %v4573, %v2218
    %v4575 = vadd.f32 %v4574, %v2219
    %v4576 = vadd.f32 %v4575, %v2220
    %v4577 = vadd.f32 %v4576, %v2221
    %v4578 = vadd.f32 %v4577, %v2222
    %v4579 = vadd.f32 %v4578, %v2223
    %v4580 = vadd.f32 %v4579, %v2224
    %v4581 = vadd.f32 %v4580, %v2225
    %v4582 = vadd.f32 %v4581, %v2226
    %v4583 = vadd.f32 %v4582, %v2227
    %v4584 = vadd.f32 %v4583, %v2228
    %v4585 = vadd.f32 %v4584, %v2229
    %v4586 = vadd.f32 %v4585, %v2230
    %v4587 = vadd.f32 %v4586, %v2231
    %v4588 = vadd.f32 %v4587, %v2232
    %v4589 = vadd.f32 %v4588, %v2233
    %v4590 = vadd.f32 %v4589, %v2234
    %v4591 = vadd.f32 %v4590, %v2235
    %v4592 = vadd.f32 %v4591, %v2236
    %v4593 = vadd.f32 %v4592, %v2237
    %v4594 = vadd.f32 %v4593, %v2238
    %v4595 = vadd.f32 %v4594, %v2239
    %v4596 = vadd.f32 %v4595, %v2240
    %v4597 = vadd.f32 %v4596, %v2241
    %v4598 = vadd.f32 %v4597, %v2242
    %v4599 = vadd.f32 %v4598, %v2243
    %v4600 = vadd.f32 %v4599, %v2244
    %v4601 = vadd.f32 %v4600, %v2245
    %v4602 = vadd.f32 %v4601, %v2246
    %v4603 = vadd.f32 %v4602, %v2247
    %v4604 = vadd.f32 %v4603, %v2248
    %v4605 = vadd.f32 %v4604, %v2249
    %v4606 = vadd.f32 %v4605, %v2250
    %v4607 = vadd.f32 %v4606, %v2251
    %v4608 = vadd.f32 %v4607, %v2252
    %v4609 = vadd.f32 %v4608, %v2253
    %v4610 = vadd.f32 %v4609, %v2254
    %v4611 = vadd.f32 %v4610, %v2255
    %v4612 = vadd.f32 %v4611, %v2256
    %v4613 = vadd.f32 %v4612, %v2257
    %v4614 = vadd.f32 %v4613, %v2258
    %v4615 = vadd.f32 %v4614, %v2259
    %v4616 = vadd.f32 %v4615, %v2260
    %v4617 = vadd.f32 %v4616, %v2261
    %v4618 = vadd.f32 %v4617, %v2262
    %v4619 = vadd.f32 %v4618, %v2263
    %v4620 = vadd.f32 %v4619, %v2264
    %v4621 = vadd.f32 %v4620, %v2265
    %v4622 = vadd.f32 %v4621, %v2266
    %v4623 = vadd.f32 %v4622, %v2267
    %v4624 = vadd.f32 %v4623, %v2268
    %v4625 = vadd.f32 %v4624, %v2269
    %v4626 = vadd.f32 %v4625, %v2270
    %v4627 = vadd.f32 %v4626, %v2271
    %v4628 = vadd.f32 %v4627, %v2272
    %v4629 = vadd.f32 %v4628, %v2273
    %v4630 = vadd.f32 %v4629, %v2274
    %v4631 = vadd.f32 %v4630, %v2275
    %v4632 = vadd.f32 %v4631, %v2276
    %v4633 = vadd.f32 %v4632, %v2277
    %v4634 = vadd.f32 %v4633, %v2278
    %v4635 = vadd.f32 %v4634, %v2279
    %v4636 = vadd.f32 %v4635, %v2280
    %v4637 = vadd.f32 %v4636, %v2281
    %v4638 = vadd.f32 %v4637, %v2282
    %v4639 = vadd.f32 %v4638, %v2283
    %v4640 = vadd.f32 %v4639, %v2284
    %v4641 = vadd.f32 %v4640, %v2285
    %v4642 = vadd.f32 %v4641, %v2286
    %v4643 = vadd.f32 %v4642, %v2287
    %v4644 = vadd.f32 %v4643, %v2288
    %v4645 = vadd.f32 %v4644, %v2289
    %v4646 = vadd.f32 %v4645, %v2290
    %v4647 = vadd.f32 %v4646, %v2291
    %v4648 = vadd.f32 %v4647, %v2292
    %v4649 = vadd.f32 %v4648, %v2293
    %v4650 = vadd.f32 %v4649, %v2294
    %v4651 = vadd.f32 %v4650, %v2295
    %v4652 = vadd.f32 %v4651, %v2296
    %v4653 = vadd.f32 %v4652, %v2297
    %v4654 = vadd.f32 %v4653, %v2298
    %v4655 = vadd.f32 %v4654, %v2299
    %v4656 = vadd.f32 %v4655, %v2300
    %v4657 = vadd.f32 %v4656, %v2301
    %v4658 = vadd.f32 %v4657, %v2302
    %v4659 = vadd.f32 %v4658, %v2303
    %v4660 = vadd.f32 %v4659, %v2304
    %v4661 = vadd.f32 %v4660, %v2305
    %v4662 = vadd.f32 %v4661, %v2306
    %v4663 = vadd.f32 %v4662, %v2307
    %v4664 = vadd.f32 %v4663, %v2308
    %v4665 = vadd.f32 %v4664, %v2309
    %v4666 = vadd.f32 %v4665, %v2310
    %v4667 = vadd.f32 %v4666, %v2311
    %v4668 = vadd.f32 %v4667, %v2312
    %v4669 = vadd.f32 %v4668, %v2313
    %v4670 = vadd.f32 %v4669, %v2314
    %v4671 = vadd.f32 %v4670, %v2315
    %v4672 = vadd.f32 %v4671, %v2316
    %v4673 = vadd.f32 %v4672, %v2317
    %v4674 = vadd.f32 %v4673, %v2318
    %v4675 = vadd.f32 %v4674, %v2319
    %v4676 = vadd.f32 %v4675, %v2320
    %v4677 = vadd.f32 %v4676, %v2321
    %v4678 = vadd.f32 %v4677, %v2322
    %v4679 = vadd.f32 %v4678, %v2323
    %v4680 = vadd.f32 %v4679, %v2324
    %v4681 = vadd.f32 %v4680, %v2325
    %v4682 = vadd.f32 %v4681, %v2326
    %v4683 = vadd.f32 %v4682, %v2327
    %v4684 = vadd.f32 %v4683, %v2328
    %v4685 = vadd.f32 %v4684, %v2329
    %v4686 = vadd.f32 %v4685, %v2330
    %v4687 = vadd.f32 %v4686, %v2331
    %v4688 = vadd.f32 %v4687, %v2332
    %v4689 = vadd.f32 %v4688, %v2333
    %v4690 = vadd.f32 %v4689, %v2334
    %v4691 = vadd.f32 %v4690, %v2335
    %v4692 = vadd.f32 %v4691, %v2336
    %v4693 = vadd.f32 %v4692, %v2337
    %v4694 = vadd.f32 %v4693, %v2338
    %v4695 = vadd.f32 %v4694, %v2339
    %v4696 = vadd.f32 %v4695, %v2340
    %v4697 = vadd.f32 %v4696, %v2341
    %v4698 = vadd.f32 %v4697, %v2342
    %v4699 = vadd.f32 %v4698, %v2343
    %v4700 = vadd.f32 %v4699, %v2344
    %v4701 = vadd.f32 %v4700, %v2345
    %v4702 = vadd.f32 %v4701, %v2346
    %v4703 = vadd.f32 %v4702, %v2347
    %v4704 = vadd.f32 %v4703, %v2348
    %v4705 = vadd.f32 %v4704, %v2349
    %v4706 = vadd.f32 %v4705, %v2350
    %v4707 = vadd.f32 %v4706, %v2351
    %v4708 = vadd.f32 %v4707, %v2352
    %v4709 = vadd.f32 %v4708, %v2353
    %v4710 = vadd.f32 %v4709, %v2354
    %v4711 = vadd.f32 %v4710, %v2355
    %v4712 = vadd.f32 %v4711, %v2356
    %v4713 = vadd.f32 %v4712, %v2357
    %v4714 = vadd.f32 %v4713, %v2358
    %v4715 = vadd.f32 %v4714, %v2359
    %v4716 = vadd.f32 %v4715, %v2360
    %v4717 = vadd.f32 %v4716, %v2361
    %v4718 = vadd.f32 %v4717, %v2362
    %v4719 = vadd.f32 %v4718, %v2363
    %v4720 = vadd.f32 %v4719, %v2364
    %v4721 = vadd.f32 %v4720, %v2365
    %v4722 = vadd.f32 %v4721, %v2366
    %v4723 = vadd.f32 %v4722, %v2367
    %v4724 = vadd.f32 %v4723, %v2368
    %v4725 = vadd.f32 %v4724, %v2369
    %v4726 = vadd.f32 %v4725, %v2370
    %v4727 = vadd.f32 %v4726, %v2371
    %v4728 = vadd.f32 %v4727, %v2372
    %v4729 = vadd.f32 %v4728, %v2373
    %v4730 = vadd.f32 %v4729, %v2374
    %v4731 = vadd.f32 %v4730, %v2375
    %v4732 = vadd.f32 %v4731, %v2376
    %v4733 = vadd.f32 %v4732, %v2377
    %v4734 = vadd.f32 %v4733, %v2378
    %v4735 = vadd.f32 %v4734, %v2379
    %v4736 = vadd.f32 %v4735, %v2380
    %v4737 = vadd.f32 %v4736, %v2381
    %v4738 = vadd.f32 %v4737, %v2382
    %v4739 = vadd.f32 %v4738, %v2383
    %v4740 = vadd.f32 %v4739, %v2384
    %v4741 = vadd.f32 %v4740, %v2385
    %v4742 = vadd.f32 %v4741, %v2386
    %v4743 = vadd.f32 %v4742, %v2387
    %v4744 = vadd.f32 %v4743, %v2388
    %v4745 = vadd.f32 %v4744, %v2389
    %v4746 = vadd.f32 %v4745, %v2390
    %v4747 = vadd.f32 %v4746, %v2391
    %v4748 = vadd.f32 %v4747, %v2392
    %v4749 = vadd.f32 %v4748, %v2393
    %v4750 = vadd.f32 %v4749, %v2394
    %v4751 = vadd.f32 %v4750, %v2395
    %v4752 = vadd.f32 %v4751, %v2396
    %v4753 = vadd.f32 %v4752, %v2397
    %v4754 = vadd.f32 %v4753, %v2398
    %v4755 = vadd.f32 %v4754, %v2399
    %v4756 = vadd.f32 %v4755, %v2400
    %v4757 = vadd.f32 %v4756, %v2401
    %v4758 = vadd.f32 %v4757, %v2402
    %v4759 = vadd.f32 %v4758, %v2403
    %v4760 = vadd.f32 %v4759, %v2404
    %v4761 = vadd.f32 %v4760, %v2405
    %v4762 = vadd.f32 %v4761, %v2406
    %v4763 = vadd.f32 %v4762, %v2407
    %4764 = vadd.xlane.f32.xlu0 %v4763
    %v4765 = vpop.xlane.xlu0 %4764
    %v4766 = vld [vmem:[%s1] sm:$0xff]
    %v4767 = vld [vmem:[%s1 + $0x8] sm:$0xff]
    %v4768 = vld [vmem:[%s1 + $0x10] sm:$0xff]
    %v4769 = vld [vmem:[%s1 + $0x18] sm:$0xff]
    %v4770 = vld [vmem:[%s1 + $0x20] sm:$0xff]
    %v4771 = vld [vmem:[%s1 + $0x28] sm:$0xff]
    %v4772 = vmul.f32 %v2800, %v4766
    %v4773 = vmul.f32 %v3193, %v4767
    %v4774 = vmul.f32 %v3586, %v4768
    %v4775 = vmul.f32 %v3979, %v4769
    %v4776 = vmul.f32 %v4372, %v4770
    %v4777 = vmul.f32 %v4765, %v4771
    %v4778 = vld [vmem:[#allocation4] sm:$0xff]
    %v4779 = vld [vmem:[#allocation4 + $0x8] sm:$0xff]
    %v4780 = vld [vmem:[#allocation6] sm:$0x1]
    %v4782 = vlaneseq
    %v4783 = vshrl.u32 %v4782, 7
    %v4784 = vsub.s32 0, %v4783
    %v4785 = vrot.slane %v4780, %v4784
    %vm4787 = vcmask 392192
    %v4789 = vsel %vm4787, %v4778, 0
    %v4792 = vsel %vm4787, %v4779, 0
    %4794 = vmatprep.subr.mxu0 0.0
    %4795 = vmatpush1.msra.mxu0 0.0
    %4796 = vmatprep.subr.mxu0 0.0
    %4797 = vmatpush1.msra.mxu0 0.0
    %4798 = vmatprep.subr.mxu0 0.0
    %4799 = vmatpush1.msra.mxu0 0.0
    %4800 = vmatprep.subr.mxu0 0.0
    %4801 = vmatpush1.msra.mxu0 0.0
    %4802 = vmatprep.subr.mxu0 0.0
    %4803 = vmatpush1.msra.mxu0 0.0
    %4804 = vmatprep.subr.mxu0 0.0
    %4805 = vmatpush1.msra.mxu0 0.0
    %4806 = vmatprep.subr.mxu0 0.0
    %4807 = vmatpush1.msra.mxu0 0.0
    %4808 = vmatprep.subr.mxu0 0.0
    %4809 = vmatpush1.msra.mxu0 0.0
    %4810 = vmatprep.subr.mxu0 0.0
    %4811 = vmatpush1.msra.mxu0 0.0
    %4812 = vmatprep.subr.mxu0 0.0
    %4813 = vmatpush1.msra.mxu0 0.0
    %4814 = vmatprep.subr.mxu0 0.0
    %4815 = vmatpush1.msra.mxu0 %v4777
    %4816 = vmatprep.subr.mxu0 0.0
    %4817 = vmatpush1.msra.mxu0 %v4776
    %4818 = vmatprep.subr.mxu0 0.0
    %4819 = vmatpush1.msra.mxu0 %v4775
    %4820 = vmatprep.subr.mxu0 0.0
    %4821 = vmatpush1.msra.mxu0 %v4774
    %4822 = vmatprep.subr.mxu0 0.0
    %4823 = vmatpush1.msra.mxu0 %v4773
    %4824 = vmatprep.subr.mxu0 0.0
    %4825 = vmatpush1.msra.mxu0 %v4772
    %4826 = vmatprep.subr.mxu0 0.0
    %4827 = vmatpush2.msra.mxu0 0.0
    %4828 = vmatprep.subr.mxu0 0.0
    %4829 = vmatpush2.msra.mxu0 0.0
    %4830 = vmatprep.subr.mxu0 0.0
    %4831 = vmatpush2.msra.mxu0 0.0
    %4832 = vmatprep.subr.mxu0 0.0
    %4833 = vmatpush2.msra.mxu0 0.0
    %4834 = vmatprep.subr.mxu0 0.0
    %4835 = vmatpush2.msra.mxu0 0.0
    %4836 = vmatprep.subr.mxu0 0.0
    %4837 = vmatpush2.msra.mxu0 0.0
    %4838 = vmatprep.subr.mxu0 0.0
    %4839 = vmatpush2.msra.mxu0 0.0
    %4840 = vmatprep.subr.mxu0 0.0
    %4841 = vmatpush2.msra.mxu0 0.0
    %4842 = vmatprep.subr.mxu0 0.0
    %4843 = vmatpush2.msra.mxu0 0.0
    %4844 = vmatprep.subr.mxu0 0.0
    %4845 = vmatpush2.msra.mxu0 0.0
    %4846 = vmatprep.subr.mxu0 0.0
    %4847 = vmatpush2.msra.mxu0 0.0
    %4848 = vmatprep.subr.mxu0 0.0
    %4849 = vmatpush2.msra.mxu0 0.0
    %4850 = vmatprep.subr.mxu0 0.0
    %4851 = vmatpush2.msra.mxu0 0.0
    %4852 = vmatprep.subr.mxu0 0.0
    %4853 = vmatpush2.msra.mxu0 0.0
    %4854 = vmatprep.subr.mxu0 0.0
    %4855 = vmatpush2.msra.mxu0 0.0
    %4856 = vmatprep.subr.mxu0 0.0
    %4857 = vmatpush2.msra.mxu0 0.0
    %4858 = vmatprep.mubr.f32.mxu0 0.0
    %4859 = vmatmul.mubr.f32.gmra.mxu0 %v4789
    %v4860 = vpop.f32.mrf.mxu0
    %v4861 = vadd.f32 %v4785, %v4860
    %v4862 = vpop.f32.mrf.mxu0
    %4863 = vmatprep.mubr.f32.mxu0 0.0
    %4864 = vmatmul.mubr.f32.gmra.mxu0 %v4792
    %v4865 = vpop.f32.mrf.mxu0
    %v4866 = vadd.f32 %v4785, %v4865
    %v4867 = vpop.f32.mrf.mxu0
    %4868 = vdwg.mxu0
    %vm4869 = vcmask 15360
    %4870 = vst.msk [vmem:[%s4] sm:$0xff] %vm4869, %v4861
    %4871 = vst.msk [vmem:[%s4 + $0x8] sm:$0xff] %vm4869, %v4866
    // Predicated region
    $region30: #{tpu_custom_call.1} parent=1 // pred_check
      _
    $region31: #{tpu_custom_call.1} parent=1 // pred_check_branch
      %4873 = sbr.rel (0) target = $region33
    $region32: #{tpu_custom_call.1} parent=1 // pred_region
      _
    $region33: #{tpu_custom_call.1} parent=1 // pred_fallthru
      _
    // Predicated region
    $region34: #{tpu_custom_call.1} parent=1 // pred_check
      _
    $region35: #{tpu_custom_call.1} parent=1 // pred_check_branch
      %4875 = sbr.rel (0) target = $region37
    $region36: #{tpu_custom_call.1} parent=1 // pred_region
      _
    $region37: #{tpu_custom_call.1} parent=1 // pred_fallthru
      _
    %4876 = vsyncpa [#allocation3], 1
    %4877 = vsyncpa [#allocation5], 1

</llo_original>
